<compile_context>
chip_gen: v5e
topology: v5e:2x2
jax: 0.10.0
libtpu: 0.0.40
codegen_flags: <defaults>
</compile_context>

<pallas_src>
import math
import functools

import jax
import jax.numpy as jnp
import numpy as np
from jax.experimental import pallas as pl
from jax.experimental.pallas import tpu as pltpu

_INV_SQRT_2PI = 1.0 / math.sqrt(2.0 * math.pi)
_LN3 = math.log(3.0)


def _round_up(x, m):
    return ((x + m - 1) // m) * m


def _auto_vmem_limit():
    """Chip-aware scoped-VMEM request (leave ~1/4 headroom for Mosaic scratch)."""
    cap = 64 * 1024 * 1024  # conservative (v7x-sized) fallback
    try:
        info = pltpu.get_tpu_info()
        cap = int(getattr(info, "vmem_capacity_bytes", cap))
    except Exception:
        pass
    return int(min(cap - cap // 4, 96 * 1024 * 1024))


def _estimate_step_vmem(TL, S_pad, d_model, H, E, D):
    """Rough per-grid-step VMEM footprint (bytes) used to pick the L tile."""
    bf, f4 = 2, 4
    # streaming blocks (double-buffered by the pipeline)
    stream = 2 * (TL * d_model * bf                 # queries tile (bf16)
                  + TL * d_model * f4               # out tile
                  + 2 * H * TL * S_pad * f4         # series + prior tiles
                  + TL * H * f4)                    # sigma slab
    # grid-invariant inputs (K/V + weights; still double-buffered by default)
    weights = (2 * d_model * H * E + d_model * H * D + d_model * H
               + H * D * d_model) * bf
    resident = 2 * (2 * S_pad * d_model * bf + weights)
    # persistent scratch + f32 working set (scores / exp / prior live tiles)
    scratch = H * S_pad * (E + D) * bf + TL * H * (E + D) * f4
    working = 8 * TL * S_pad * f4 + 4 * TL * max(d_model, H * E) * f4
    return stream + resident + scratch + working


def _choose_l_tile(L, budget, S_pad, d_model, H, E, D):
    """Largest divisor of L that is a multiple of 8 (or L itself) fitting the budget."""
    cands = [t for t in range(L, 0, -1) if L % t == 0 and (t == L or t % 8 == 0)]
    for t in cands:
        if _estimate_step_vmem(t, S_pad, d_model, H, E, D) <= budget:
            return t
    return cands[-1]


def _attention_layer_kernel(
    q_in_ref, k_in_ref, v_in_ref,
    wq_ref, bq_ref, wk_ref, bk_ref, wv_ref, bv_ref,
    wsig_ref, bsig_ref, wout_ref, bout_ref,
    out_ref, series_ref, prior_ref, sigma_ref,
    kh_scr, vh_scr, q_scr, oh_scr,
    *, n_heads, d_keys, d_values, s_real,
):
    H, E, D = n_heads, d_keys, d_values
    f32 = jnp.float32
    bf16 = jnp.bfloat16

    x = q_in_ref[0]                    # (TL, d_model) bf16 — current tile of query rows
    TL, d_model = x.shape
    S_pad = k_in_ref.shape[1]
    l_idx = pl.program_id(1)

    # --- K/V head projections: computed once per batch element (grid axis 1 is
    # "arbitrary", so l runs 0..NLT-1 sequentially and the scratch persists). ---
    @pl.when(l_idx == 0)
    def _():
        kx = k_in_ref[0]               # (S_pad, d_model) bf16, padded key rows are zero
        vx = v_in_ref[0]
        for h in range(H):             # small static unroll; values die each iteration
            kh = jnp.dot(kx, wk_ref[h], preferred_element_type=f32) + bk_ref[h]
            vh = jnp.dot(vx, wv_ref[h], preferred_element_type=f32) + bv_ref[h]
            kh_scr[h] = kh.astype(bf16)
            vh_scr[h] = vh.astype(bf16)

    # --- Q and sigma projections: single wide, lane-dense matmuls per L tile. ---
    q_scr[...] = jnp.dot(x, wq_ref[...], preferred_element_type=f32) + bq_ref[...]
    sig = jnp.dot(x, wsig_ref[...], preferred_element_type=f32) + bsig_ref[...]
    sg = jax.nn.sigmoid(sig * 5.0) + 1e-5
    sg = jnp.exp(sg * _LN3) - 1.0                      # 3**sg - 1   (EUP exp)
    sigma_ref[0] = sg                                  # lane-dense (TL, H) slab

    # --- |i-j|^2 hoisted out of the head loop; rows are global positions of this tile. ---
    row = jax.lax.broadcasted_iota(jnp.int32, (TL, S_pad), 0) + l_idx * TL
    col = jax.lax.broadcasted_iota(jnp.int32, (TL, S_pad), 1)
    dist = (row - col).astype(f32)
    dist2 = dist * dist
    pad_mask = (col >= s_real) if s_real < S_pad else None   # padded key columns

    scale = 1.0 / math.sqrt(E)
    dims_q_kT = (((1,), (1,)), ((), ()))               # contract E with E -> (TL, S_pad)

    for h in range(H):                                 # H is small & static
        qh = q_scr[:, h * E:(h + 1) * E].astype(bf16)  # (TL, E)
        kh = kh_scr[h]                                 # (S_pad, E) bf16
        vh = vh_scr[h]                                 # (S_pad, D) bf16

        scores = jax.lax.dot_general(qh, kh, dims_q_kT,
                                     preferred_element_type=f32) * scale
        if pad_mask is not None:
            scores = jnp.where(pad_mask, -1e30, scores)
        m = jnp.max(scores, axis=-1, keepdims=True)
        e = jnp.exp(scores - m)
        denom = jnp.sum(e, axis=-1, keepdims=True)
        ser = e * pl.reciprocal(denom, approx=True)    # (TL, S_pad); padded cols exactly 0
        series_ref[0, h] = ser

        # Gaussian prior: exact reciprocal on the tiny (TL, 1) sigma column (it gets
        # squared in the exponent), everything per-head done on columns.
        sgh = sigma_ref[0, :, h:h + 1]                 # (TL, 1)
        inv_sg = 1.0 / sgh
        coef = inv_sg * _INV_SQRT_2PI
        neg_half_inv_var = (-0.5) * inv_sg * inv_sg
        prior_ref[0, h] = coef * jnp.exp(dist2 * neg_half_inv_var)

        # Stage the per-head context; the output projection is one wide matmul below.
        oh_scr[:, h * D:(h + 1) * D] = jnp.dot(ser.astype(bf16), vh,
                                               preferred_element_type=f32)

    out_ref[0] = (jnp.dot(oh_scr[...].astype(bf16), wout_ref[...],
                          preferred_element_type=f32) + bout_ref[...])


def attention_layer_forward(params, queries, keys, values, attn_mask=None, *, l_tile=None):
    """Pallas forward of AttentionLayer. Returns (out, series, prior, sigma)."""
    del attn_mask  # mask_flag=False in MAAT
    B, L, d_model = queries.shape
    _, S, _ = keys.shape
    H = params["n_heads"]
    E = params["wq_t"].shape[1] // H
    D = params["wv_t"].shape[1] // H

    S_pad = _round_up(S, 128)           # lane-dense series/prior/score tiles
    vmem_limit = _auto_vmem_limit()

    TL = l_tile if l_tile is not None else _choose_l_tile(
        L, vmem_limit // 2, S_pad, d_model, H, E, D)
    assert L % TL == 0, "L must be divisible by the query-row tile"
    assert TL == L or TL % 8 == 0, "query-row tile must be a multiple of 8 (or the full L)"
    NLT = L // TL

    bf16, f32 = jnp.bfloat16, jnp.float32

    q_in = queries.astype(bf16)
    k_in = keys.astype(bf16)
    v_in = values.astype(bf16)
    if S_pad != S:
        pad = ((0, 0), (0, S_pad - S), (0, 0))
        k_in = jnp.pad(k_in, pad)
        v_in = jnp.pad(v_in, pad)

    # Wide lane-dense weights for Q / sigma / output projections; per-head stacked
    # weights for the once-per-batch K/V projections (avoids any array lane-slicing).
    wq_full = params["wq_t"].astype(bf16)                                     # (dm, H*E)
    wsig = params["wsig_t"].astype(bf16)                                      # (dm, H)
    wout_full = params["wout_t"].astype(bf16)                                 # (H*D, dm)
    wk_h = jnp.transpose(params["wk_t"].reshape(d_model, H, E), (1, 0, 2)).astype(bf16)
    wv_h = jnp.transpose(params["wv_t"].reshape(d_model, H, D), (1, 0, 2)).astype(bf16)
    bq = params["bq"].astype(f32)                                             # (1, H*E)
    bk_h = params["bk"].reshape(H, E)[:, None, :].astype(f32)                 # (H, 1, E)
    bv_h = params["bv"].reshape(H, D)[:, None, :].astype(f32)
    bsig = params["bsig"].astype(f32)
    bout = params["bout"].astype(f32)

    kernel = functools.partial(_attention_layer_kernel,
                               n_heads=H, d_keys=E, d_values=D, s_real=S)

    def full_spec(arr):
        zeros = (0,) * arr.ndim
        return pl.BlockSpec(arr.shape, lambda b, l, _z=zeros: _z)

    in_specs = [
        pl.BlockSpec((1, TL, d_model), lambda b, l: (b, l, 0)),      # queries (L-tiled)
        pl.BlockSpec((1, S_pad, d_model), lambda b, l: (b, 0, 0)),   # keys (full S_pad)
        pl.BlockSpec((1, S_pad, d_model), lambda b, l: (b, 0, 0)),   # values (full S_pad)
        full_spec(wq_full), full_spec(bq),
        full_spec(wk_h), full_spec(bk_h),
        full_spec(wv_h), full_spec(bv_h),
        full_spec(wsig), full_spec(bsig),
        full_spec(wout_full), full_spec(bout),
    ]
    out_specs = (
        pl.BlockSpec((1, TL, d_model), lambda b, l: (b, l, 0)),
        pl.BlockSpec((1, H, TL, S_pad), lambda b, l: (b, 0, l, 0)),
        pl.BlockSpec((1, H, TL, S_pad), lambda b, l: (b, 0, l, 0)),
        pl.BlockSpec((1, TL, H), lambda b, l: (b, l, 0)),            # sigma slab
    )
    out_shape = (
        jax.ShapeDtypeStruct((B, L, d_model), f32),
        jax.ShapeDtypeStruct((B, H, L, S_pad), f32),
        jax.ShapeDtypeStruct((B, H, L, S_pad), f32),
        jax.ShapeDtypeStruct((B, L, H), f32),
    )
    scratch_shapes = [
        pltpu.VMEM((H, S_pad, E), bf16),   # cached K head projections (per batch elem)
        pltpu.VMEM((H, S_pad, D), bf16),   # cached V head projections
        pltpu.VMEM((TL, H * E), f32),      # wide Q projection for this tile
        pltpu.VMEM((TL, H * D), f32),      # staged per-head context for the out-proj
    ]

    f = pl.pallas_call(
        kernel,
        out_shape=out_shape,
        grid_spec=pltpu.PrefetchScalarGridSpec(
            num_scalar_prefetch=0,
            grid=(B, NLT),
            in_specs=in_specs,
            out_specs=out_specs,
            scratch_shapes=scratch_shapes,
        ),
        compiler_params=pltpu.CompilerParams(
            dimension_semantics=("parallel", "arbitrary"),
            vmem_limit_bytes=vmem_limit,
        ),
    )
    out, series_p, prior_p, sigma_slab = f(
        q_in, k_in, v_in,
        wq_full, bq, wk_h, bk_h, wv_h, bv_h,
        wsig, bsig, wout_full, bout)

    if S_pad != S:
        series = series_p[..., :S]
        prior = prior_p[..., :S]
    else:
        series, prior = series_p, prior_p
    # sigma is a pure broadcast of the per-(l, head) column; the module returns the full
    # (B, H, L, S) tensor, so materialize it here (outside the kernel's HBM writeback).
    sigma = jnp.broadcast_to(
        jnp.transpose(sigma_slab, (0, 2, 1))[..., None], (B, H, L, S))
    return out, series, prior, sigma


def init_params(key, d_model, n_heads, d_keys=None, d_values=None):
    """Deterministic synthetic parameters (PyTorch Linear-style uniform init)."""
    d_keys = d_keys or d_model // n_heads
    d_values = d_values or d_model // n_heads
    ks = jax.random.split(key, 10)

    def lin(kw, kb, fan_in, fan_out):
        bound = 1.0 / math.sqrt(fan_in)
        w_t = jax.random.uniform(kw, (fan_in, fan_out), jnp.float32, -bound, bound)
        b = jax.random.uniform(kb, (1, fan_out), jnp.float32, -bound, bound)
        return w_t, b

    wq_t, bq = lin(ks[0], ks[1], d_model, d_keys * n_heads)
    wk_t, bk = lin(ks[2], ks[3], d_model, d_keys * n_heads)
    wv_t, bv = lin(ks[4], ks[5], d_model, d_values * n_heads)
    wsig_t, bsig = lin(ks[6], ks[7], d_model, n_heads)
    wout_t, bout = lin(ks[8], ks[9], d_values * n_heads, d_model)
    return dict(n_heads=n_heads,
                wq_t=wq_t, bq=bq, wk_t=wk_t, bk=bk, wv_t=wv_t, bv=bv,
                wsig_t=wsig_t, bsig=bsig, wout_t=wout_t, bout=bout)


def ref_forward(params, queries, keys, values):
    """Pure-JAX reference mirroring the PyTorch forward, for validation."""
    B, L, dm = queries.shape
    S = keys.shape[1]
    H = params["n_heads"]
    E = params["wq_t"].shape[1] // H
    D = params["wv_t"].shape[1] // H

    q = (queries @ params["wq_t"] + params["bq"]).reshape(B, L, H, E)
    k = (keys @ params["wk_t"] + params["bk"]).reshape(B, S, H, E)
    v = (values @ params["wv_t"] + params["bv"]).reshape(B, S, H, D)
    sigma = (queries @ params["wsig_t"] + params["bsig"]).reshape(B, L, H)

    scale = 1.0 / math.sqrt(E)
    scores = jnp.einsum("blhe,bshe->bhls", q, k)
    series = jax.nn.softmax(scale * scores, axis=-1)

    sig = jnp.transpose(sigma, (0, 2, 1))
    sig = jax.nn.sigmoid(sig * 5.0) + 1e-5
    sig = jnp.power(3.0, sig) - 1.0
    sig = jnp.broadcast_to(sig[..., None], (B, H, L, S))

    dist = jnp.abs(jnp.arange(L, dtype=jnp.float32)[:, None]
                   - jnp.arange(S, dtype=jnp.float32)[None, :])
    prior = 1.0 / (math.sqrt(2.0 * math.pi) * sig) * jnp.exp(
        -(dist ** 2) / (2.0 * (sig ** 2)))

    V = jnp.einsum("bhls,bshd->blhd", series, v).reshape(B, L, H * D)
    out = V @ params["wout_t"] + params["bout"]
    return out, series, prior, sig


if __name__ == "__main__":
    B, L, S, d_model, n_heads = 2, 16, 16, 32, 4

    key = jax.random.PRNGKey(0)
    kp, kq, kk, kv = jax.random.split(key, 4)
    params = init_params(kp, d_model, n_heads)

    queries = jax.random.normal(kq, (B, L, d_model), jnp.float32)
    keys = jax.random.normal(kk, (B, S, d_model), jnp.float32)
    values = jax.random.normal(kv, (B, S, d_model), jnp.float32)

    refs = ref_forward(params, queries, keys, values)
    names = ("out", "series", "prior", "sigma")

    # l_tile=None exercises the chip-aware auto-tiling path (TL == L here);
    # l_tile=8 exercises the multi-tile (batch, L-tile) grid (grid = (2, 2)) and the
    # K/V-scratch reuse across L tiles.
    for lt in (None, 8):
        outs = attention_layer_forward(params, queries, keys, values,
                                       attn_mask=None, l_tile=lt)
        outs = jax.block_until_ready(outs)
        # Tolerance reflects explicit bf16 matmul operands (== single-pass bf16 MXU)
        # and the EUP approx reciprocal in the softmax denominator.
        for name, got, want in zip(names, outs, refs):
            assert got.shape == want.shape, (name, got.shape, want.shape)
            np.testing.assert_allclose(np.asarray(got), np.asarray(want),
                                       rtol=5e-2, atol=2e-2,
                                       err_msg=f"{name} (l_tile={lt})")

    print("KERNEL_OK")
</pallas_src>

<mosaic_0001>
module attributes {stable_mosaic.version = 11 : i64} {
  func.func @_attention_layer_kernel(%arg0: i32, %arg1: i32, %arg2: memref<1x16x32xbf16, #tpu.memory_space<vmem>>, %arg3: memref<1x128x32xbf16, #tpu.memory_space<vmem>>, %arg4: memref<1x128x32xbf16, #tpu.memory_space<vmem>>, %arg5: memref<32x32xbf16, #tpu.memory_space<vmem>>, %arg6: memref<1x32xf32, #tpu.memory_space<vmem>>, %arg7: memref<4x32x8xbf16, #tpu.memory_space<vmem>>, %arg8: memref<4x1x8xf32, #tpu.memory_space<vmem>>, %arg9: memref<4x32x8xbf16, #tpu.memory_space<vmem>>, %arg10: memref<4x1x8xf32, #tpu.memory_space<vmem>>, %arg11: memref<32x4xbf16, #tpu.memory_space<vmem>>, %arg12: memref<1x4xf32, #tpu.memory_space<vmem>>, %arg13: memref<32x32xbf16, #tpu.memory_space<vmem>>, %arg14: memref<1x32xf32, #tpu.memory_space<vmem>>, %arg15: memref<1x16x32xf32, #tpu.memory_space<vmem>>, %arg16: memref<1x4x16x128xf32, #tpu.memory_space<vmem>>, %arg17: memref<1x4x16x128xf32, #tpu.memory_space<vmem>>, %arg18: memref<1x16x4xf32, #tpu.memory_space<vmem>>, %arg19: memref<4x128x8xbf16, #tpu.memory_space<vmem>>, %arg20: memref<4x128x8xbf16, #tpu.memory_space<vmem>>, %arg21: memref<16x32xf32, #tpu.memory_space<vmem>>, %arg22: memref<16x32xf32, #tpu.memory_space<vmem>>) attributes {dimension_semantics = [#tpu.dimension_semantics<parallel>, #tpu.dimension_semantics<arbitrary>], iteration_bounds = array<i64: 2, 1>, scalar_prefetch = 0 : i64, scratch_operands = 4 : i64, tpu.core_type = #tpu.core_type<tc>, window_params = [{transform_indices = @transform_0, window_bounds = array<i64: 1, 16, 32>}, {transform_indices = @transform_1, window_bounds = array<i64: 1, 128, 32>}, {transform_indices = @transform_2, window_bounds = array<i64: 1, 128, 32>}, {pipeline_mode = #tpu.pipeline_mode<synchronous>, transform_indices = @transform_3, window_bounds = array<i64: 32, 32>}, {pipeline_mode = #tpu.pipeline_mode<synchronous>, transform_indices = @transform_4, window_bounds = array<i64: 1, 32>}, {pipeline_mode = #tpu.pipeline_mode<synchronous>, transform_indices = @transform_5, window_bounds = array<i64: 4, 32, 8>}, {pipeline_mode = #tpu.pipeline_mode<synchronous>, transform_indices = @transform_6, window_bounds = array<i64: 4, 1, 8>}, {pipeline_mode = #tpu.pipeline_mode<synchronous>, transform_indices = @transform_7, window_bounds = array<i64: 4, 32, 8>}, {pipeline_mode = #tpu.pipeline_mode<synchronous>, transform_indices = @transform_8, window_bounds = array<i64: 4, 1, 8>}, {pipeline_mode = #tpu.pipeline_mode<synchronous>, transform_indices = @transform_9, window_bounds = array<i64: 32, 4>}, {pipeline_mode = #tpu.pipeline_mode<synchronous>, transform_indices = @transform_10, window_bounds = array<i64: 1, 4>}, {pipeline_mode = #tpu.pipeline_mode<synchronous>, transform_indices = @transform_11, window_bounds = array<i64: 32, 32>}, {pipeline_mode = #tpu.pipeline_mode<synchronous>, transform_indices = @transform_12, window_bounds = array<i64: 1, 32>}, {transform_indices = @transform_13, window_bounds = array<i64: 1, 16, 32>}, {transform_indices = @transform_14, window_bounds = array<i64: 1, 4, 16, 128>}, {transform_indices = @transform_15, window_bounds = array<i64: 1, 4, 16, 128>}, {transform_indices = @transform_16, window_bounds = array<i64: 1, 16, 4>}]} {
    %c0 = arith.constant 0 : index
    %c0_0 = arith.constant 0 : index
    %c0_1 = arith.constant 0 : index
    %0 = vector.load %arg2[%c0, %c0_0, %c0_1] : memref<1x16x32xbf16, #tpu.memory_space<vmem>>, vector<1x16x32xbf16>
    %1 = vector.shape_cast %0 : vector<1x16x32xbf16> to vector<16x32xbf16>
    %c0_i32 = arith.constant 0 : i32
    %2 = arith.cmpi eq, %arg1, %c0_i32 : i32
    %3 = arith.extui %2 : i1 to i32
    %c0_i32_2 = arith.constant 0 : i32
    %4 = arith.cmpi ne, %3, %c0_i32_2 : i32
    scf.if %4 {
      %c0_147 = arith.constant 0 : index
      %c0_148 = arith.constant 0 : index
      %c0_149 = arith.constant 0 : index
      %229 = vector.load %arg3[%c0_147, %c0_148, %c0_149] : memref<1x128x32xbf16, #tpu.memory_space<vmem>>, vector<1x128x32xbf16>
      %230 = vector.shape_cast %229 : vector<1x128x32xbf16> to vector<128x32xbf16>
      %c0_150 = arith.constant 0 : index
      %c0_151 = arith.constant 0 : index
      %c0_152 = arith.constant 0 : index
      %231 = vector.load %arg4[%c0_150, %c0_151, %c0_152] : memref<1x128x32xbf16, #tpu.memory_space<vmem>>, vector<1x128x32xbf16>
      %232 = vector.shape_cast %231 : vector<1x128x32xbf16> to vector<128x32xbf16>
      %c0_153 = arith.constant 0 : index
      %c0_154 = arith.constant 0 : index
      %c0_155 = arith.constant 0 : index
      %233 = vector.load %arg7[%c0_153, %c0_154, %c0_155] : memref<4x32x8xbf16, #tpu.memory_space<vmem>>, vector<1x32x8xbf16>
      %234 = vector.shape_cast %233 : vector<1x32x8xbf16> to vector<32x8xbf16>
      %cst_156 = arith.constant dense<0.000000e+00> : vector<128x8xf32>
      %235 = tpu.matmul %230, %234, %cst_156 {dimension_numbers = #tpu.dot_dimension_numbers<[1], [0], [0], [1], [0, 0, 1, 1], [], []>} : vector<128x32xbf16>, vector<32x8xbf16>, vector<128x8xf32> -> vector<128x8xf32>
      %c0_157 = arith.constant 0 : index
      %c0_158 = arith.constant 0 : index
      %c0_159 = arith.constant 0 : index
      %236 = vector.load %arg8[%c0_157, %c0_158, %c0_159] : memref<4x1x8xf32, #tpu.memory_space<vmem>>, vector<1x1x8xf32>
      %237 = vector.shape_cast %236 : vector<1x1x8xf32> to vector<1x8xf32>
      %238 = vector.broadcast %237 : vector<1x8xf32> to vector<128x8xf32>
      %239 = arith.addf %235, %238 : vector<128x8xf32>
      %c0_160 = arith.constant 0 : index
      %c0_161 = arith.constant 0 : index
      %c0_162 = arith.constant 0 : index
      %240 = vector.load %arg9[%c0_160, %c0_161, %c0_162] : memref<4x32x8xbf16, #tpu.memory_space<vmem>>, vector<1x32x8xbf16>
      %241 = vector.shape_cast %240 : vector<1x32x8xbf16> to vector<32x8xbf16>
      %cst_163 = arith.constant dense<0.000000e+00> : vector<128x8xf32>
      %242 = tpu.matmul %232, %241, %cst_163 {dimension_numbers = #tpu.dot_dimension_numbers<[1], [0], [0], [1], [0, 0, 1, 1], [], []>} : vector<128x32xbf16>, vector<32x8xbf16>, vector<128x8xf32> -> vector<128x8xf32>
      %c0_164 = arith.constant 0 : index
      %c0_165 = arith.constant 0 : index
      %c0_166 = arith.constant 0 : index
      %243 = vector.load %arg10[%c0_164, %c0_165, %c0_166] : memref<4x1x8xf32, #tpu.memory_space<vmem>>, vector<1x1x8xf32>
      %244 = vector.shape_cast %243 : vector<1x1x8xf32> to vector<1x8xf32>
      %245 = vector.broadcast %244 : vector<1x8xf32> to vector<128x8xf32>
      %246 = arith.addf %242, %245 : vector<128x8xf32>
      %247 = arith.truncf %239 : vector<128x8xf32> to vector<128x8xbf16>
      %c0_167 = arith.constant 0 : index
      %c0_168 = arith.constant 0 : index
      %c0_169 = arith.constant 0 : index
      %248 = vector.load %arg19[%c0_167, %c0_168, %c0_169] : memref<4x128x8xbf16, #tpu.memory_space<vmem>>, vector<1x128x8xbf16>
      %249 = vector.shape_cast %248 : vector<1x128x8xbf16> to vector<128x8xbf16>
      %250 = vector.shape_cast %247 : vector<128x8xbf16> to vector<1x128x8xbf16>
      tpu.vector_store %arg19[%c0_167, %c0_168, %c0_169], %250 {strides = array<i32>} : memref<4x128x8xbf16, #tpu.memory_space<vmem>>, vector<1x128x8xbf16>,
      %251 = arith.truncf %246 : vector<128x8xf32> to vector<128x8xbf16>
      %c0_170 = arith.constant 0 : index
      %c0_171 = arith.constant 0 : index
      %c0_172 = arith.constant 0 : index
      %252 = vector.load %arg20[%c0_170, %c0_171, %c0_172] : memref<4x128x8xbf16, #tpu.memory_space<vmem>>, vector<1x128x8xbf16>
      %253 = vector.shape_cast %252 : vector<1x128x8xbf16> to vector<128x8xbf16>
      %254 = vector.shape_cast %251 : vector<128x8xbf16> to vector<1x128x8xbf16>
      tpu.vector_store %arg20[%c0_170, %c0_171, %c0_172], %254 {strides = array<i32>} : memref<4x128x8xbf16, #tpu.memory_space<vmem>>, vector<1x128x8xbf16>,
      %c1_173 = arith.constant 1 : index
      %c0_174 = arith.constant 0 : index
      %c0_175 = arith.constant 0 : index
      %255 = vector.load %arg7[%c1_173, %c0_174, %c0_175] : memref<4x32x8xbf16, #tpu.memory_space<vmem>>, vector<1x32x8xbf16>
      %256 = vector.shape_cast %255 : vector<1x32x8xbf16> to vector<32x8xbf16>
      %cst_176 = arith.constant dense<0.000000e+00> : vector<128x8xf32>
      %257 = tpu.matmul %230, %256, %cst_176 {dimension_numbers = #tpu.dot_dimension_numbers<[1], [0], [0], [1], [0, 0, 1, 1], [], []>} : vector<128x32xbf16>, vector<32x8xbf16>, vector<128x8xf32> -> vector<128x8xf32>
      %c1_177 = arith.constant 1 : index
      %c0_178 = arith.constant 0 : index
      %c0_179 = arith.constant 0 : index
      %258 = vector.load %arg8[%c1_177, %c0_178, %c0_179] : memref<4x1x8xf32, #tpu.memory_space<vmem>>, vector<1x1x8xf32>
      %259 = vector.shape_cast %258 : vector<1x1x8xf32> to vector<1x8xf32>
      %260 = vector.broadcast %259 : vector<1x8xf32> to vector<128x8xf32>
      %261 = arith.addf %257, %260 : vector<128x8xf32>
      %c1_180 = arith.constant 1 : index
      %c0_181 = arith.constant 0 : index
      %c0_182 = arith.constant 0 : index
      %262 = vector.load %arg9[%c1_180, %c0_181, %c0_182] : memref<4x32x8xbf16, #tpu.memory_space<vmem>>, vector<1x32x8xbf16>
      %263 = vector.shape_cast %262 : vector<1x32x8xbf16> to vector<32x8xbf16>
      %cst_183 = arith.constant dense<0.000000e+00> : vector<128x8xf32>
      %264 = tpu.matmul %232, %263, %cst_183 {dimension_numbers = #tpu.dot_dimension_numbers<[1], [0], [0], [1], [0, 0, 1, 1], [], []>} : vector<128x32xbf16>, vector<32x8xbf16>, vector<128x8xf32> -> vector<128x8xf32>
      %c1_184 = arith.constant 1 : index
      %c0_185 = arith.constant 0 : index
      %c0_186 = arith.constant 0 : index
      %265 = vector.load %arg10[%c1_184, %c0_185, %c0_186] : memref<4x1x8xf32, #tpu.memory_space<vmem>>, vector<1x1x8xf32>
      %266 = vector.shape_cast %265 : vector<1x1x8xf32> to vector<1x8xf32>
      %267 = vector.broadcast %266 : vector<1x8xf32> to vector<128x8xf32>
      %268 = arith.addf %264, %267 : vector<128x8xf32>
      %269 = arith.truncf %261 : vector<128x8xf32> to vector<128x8xbf16>
      %c1_187 = arith.constant 1 : index
      %c0_188 = arith.constant 0 : index
      %c0_189 = arith.constant 0 : index
      %270 = vector.load %arg19[%c1_187, %c0_188, %c0_189] : memref<4x128x8xbf16, #tpu.memory_space<vmem>>, vector<1x128x8xbf16>
      %271 = vector.shape_cast %270 : vector<1x128x8xbf16> to vector<128x8xbf16>
      %272 = vector.shape_cast %269 : vector<128x8xbf16> to vector<1x128x8xbf16>
      tpu.vector_store %arg19[%c1_187, %c0_188, %c0_189], %272 {strides = array<i32>} : memref<4x128x8xbf16, #tpu.memory_space<vmem>>, vector<1x128x8xbf16>,
      %273 = arith.truncf %268 : vector<128x8xf32> to vector<128x8xbf16>
      %c1_190 = arith.constant 1 : index
      %c0_191 = arith.constant 0 : index
      %c0_192 = arith.constant 0 : index
      %274 = vector.load %arg20[%c1_190, %c0_191, %c0_192] : memref<4x128x8xbf16, #tpu.memory_space<vmem>>, vector<1x128x8xbf16>
      %275 = vector.shape_cast %274 : vector<1x128x8xbf16> to vector<128x8xbf16>
      %276 = vector.shape_cast %273 : vector<128x8xbf16> to vector<1x128x8xbf16>
      tpu.vector_store %arg20[%c1_190, %c0_191, %c0_192], %276 {strides = array<i32>} : memref<4x128x8xbf16, #tpu.memory_space<vmem>>, vector<1x128x8xbf16>,
      %c2_193 = arith.constant 2 : index
      %c0_194 = arith.constant 0 : index
      %c0_195 = arith.constant 0 : index
      %277 = vector.load %arg7[%c2_193, %c0_194, %c0_195] : memref<4x32x8xbf16, #tpu.memory_space<vmem>>, vector<1x32x8xbf16>
      %278 = vector.shape_cast %277 : vector<1x32x8xbf16> to vector<32x8xbf16>
      %cst_196 = arith.constant dense<0.000000e+00> : vector<128x8xf32>
      %279 = tpu.matmul %230, %278, %cst_196 {dimension_numbers = #tpu.dot_dimension_numbers<[1], [0], [0], [1], [0, 0, 1, 1], [], []>} : vector<128x32xbf16>, vector<32x8xbf16>, vector<128x8xf32> -> vector<128x8xf32>
      %c2_197 = arith.constant 2 : index
      %c0_198 = arith.constant 0 : index
      %c0_199 = arith.constant 0 : index
      %280 = vector.load %arg8[%c2_197, %c0_198, %c0_199] : memref<4x1x8xf32, #tpu.memory_space<vmem>>, vector<1x1x8xf32>
      %281 = vector.shape_cast %280 : vector<1x1x8xf32> to vector<1x8xf32>
      %282 = vector.broadcast %281 : vector<1x8xf32> to vector<128x8xf32>
      %283 = arith.addf %279, %282 : vector<128x8xf32>
      %c2_200 = arith.constant 2 : index
      %c0_201 = arith.constant 0 : index
      %c0_202 = arith.constant 0 : index
      %284 = vector.load %arg9[%c2_200, %c0_201, %c0_202] : memref<4x32x8xbf16, #tpu.memory_space<vmem>>, vector<1x32x8xbf16>
      %285 = vector.shape_cast %284 : vector<1x32x8xbf16> to vector<32x8xbf16>
      %cst_203 = arith.constant dense<0.000000e+00> : vector<128x8xf32>
      %286 = tpu.matmul %232, %285, %cst_203 {dimension_numbers = #tpu.dot_dimension_numbers<[1], [0], [0], [1], [0, 0, 1, 1], [], []>} : vector<128x32xbf16>, vector<32x8xbf16>, vector<128x8xf32> -> vector<128x8xf32>
      %c2_204 = arith.constant 2 : index
      %c0_205 = arith.constant 0 : index
      %c0_206 = arith.constant 0 : index
      %287 = vector.load %arg10[%c2_204, %c0_205, %c0_206] : memref<4x1x8xf32, #tpu.memory_space<vmem>>, vector<1x1x8xf32>
      %288 = vector.shape_cast %287 : vector<1x1x8xf32> to vector<1x8xf32>
      %289 = vector.broadcast %288 : vector<1x8xf32> to vector<128x8xf32>
      %290 = arith.addf %286, %289 : vector<128x8xf32>
      %291 = arith.truncf %283 : vector<128x8xf32> to vector<128x8xbf16>
      %c2_207 = arith.constant 2 : index
      %c0_208 = arith.constant 0 : index
      %c0_209 = arith.constant 0 : index
      %292 = vector.load %arg19[%c2_207, %c0_208, %c0_209] : memref<4x128x8xbf16, #tpu.memory_space<vmem>>, vector<1x128x8xbf16>
      %293 = vector.shape_cast %292 : vector<1x128x8xbf16> to vector<128x8xbf16>
      %294 = vector.shape_cast %291 : vector<128x8xbf16> to vector<1x128x8xbf16>
      tpu.vector_store %arg19[%c2_207, %c0_208, %c0_209], %294 {strides = array<i32>} : memref<4x128x8xbf16, #tpu.memory_space<vmem>>, vector<1x128x8xbf16>,
      %295 = arith.truncf %290 : vector<128x8xf32> to vector<128x8xbf16>
      %c2_210 = arith.constant 2 : index
      %c0_211 = arith.constant 0 : index
      %c0_212 = arith.constant 0 : index
      %296 = vector.load %arg20[%c2_210, %c0_211, %c0_212] : memref<4x128x8xbf16, #tpu.memory_space<vmem>>, vector<1x128x8xbf16>
      %297 = vector.shape_cast %296 : vector<1x128x8xbf16> to vector<128x8xbf16>
      %298 = vector.shape_cast %295 : vector<128x8xbf16> to vector<1x128x8xbf16>
      tpu.vector_store %arg20[%c2_210, %c0_211, %c0_212], %298 {strides = array<i32>} : memref<4x128x8xbf16, #tpu.memory_space<vmem>>, vector<1x128x8xbf16>,
      %c3_213 = arith.constant 3 : index
      %c0_214 = arith.constant 0 : index
      %c0_215 = arith.constant 0 : index
      %299 = vector.load %arg7[%c3_213, %c0_214, %c0_215] : memref<4x32x8xbf16, #tpu.memory_space<vmem>>, vector<1x32x8xbf16>
      %300 = vector.shape_cast %299 : vector<1x32x8xbf16> to vector<32x8xbf16>
      %cst_216 = arith.constant dense<0.000000e+00> : vector<128x8xf32>
      %301 = tpu.matmul %230, %300, %cst_216 {dimension_numbers = #tpu.dot_dimension_numbers<[1], [0], [0], [1], [0, 0, 1, 1], [], []>} : vector<128x32xbf16>, vector<32x8xbf16>, vector<128x8xf32> -> vector<128x8xf32>
      %c3_217 = arith.constant 3 : index
      %c0_218 = arith.constant 0 : index
      %c0_219 = arith.constant 0 : index
      %302 = vector.load %arg8[%c3_217, %c0_218, %c0_219] : memref<4x1x8xf32, #tpu.memory_space<vmem>>, vector<1x1x8xf32>
      %303 = vector.shape_cast %302 : vector<1x1x8xf32> to vector<1x8xf32>
      %304 = vector.broadcast %303 : vector<1x8xf32> to vector<128x8xf32>
      %305 = arith.addf %301, %304 : vector<128x8xf32>
      %c3_220 = arith.constant 3 : index
      %c0_221 = arith.constant 0 : index
      %c0_222 = arith.constant 0 : index
      %306 = vector.load %arg9[%c3_220, %c0_221, %c0_222] : memref<4x32x8xbf16, #tpu.memory_space<vmem>>, vector<1x32x8xbf16>
      %307 = vector.shape_cast %306 : vector<1x32x8xbf16> to vector<32x8xbf16>
      %cst_223 = arith.constant dense<0.000000e+00> : vector<128x8xf32>
      %308 = tpu.matmul %232, %307, %cst_223 {dimension_numbers = #tpu.dot_dimension_numbers<[1], [0], [0], [1], [0, 0, 1, 1], [], []>} : vector<128x32xbf16>, vector<32x8xbf16>, vector<128x8xf32> -> vector<128x8xf32>
      %c3_224 = arith.constant 3 : index
      %c0_225 = arith.constant 0 : index
      %c0_226 = arith.constant 0 : index
      %309 = vector.load %arg10[%c3_224, %c0_225, %c0_226] : memref<4x1x8xf32, #tpu.memory_space<vmem>>, vector<1x1x8xf32>
      %310 = vector.shape_cast %309 : vector<1x1x8xf32> to vector<1x8xf32>
      %311 = vector.broadcast %310 : vector<1x8xf32> to vector<128x8xf32>
      %312 = arith.addf %308, %311 : vector<128x8xf32>
      %313 = arith.truncf %305 : vector<128x8xf32> to vector<128x8xbf16>
      %c3_227 = arith.constant 3 : index
      %c0_228 = arith.constant 0 : index
      %c0_229 = arith.constant 0 : index
      %314 = vector.load %arg19[%c3_227, %c0_228, %c0_229] : memref<4x128x8xbf16, #tpu.memory_space<vmem>>, vector<1x128x8xbf16>
      %315 = vector.shape_cast %314 : vector<1x128x8xbf16> to vector<128x8xbf16>
      %316 = vector.shape_cast %313 : vector<128x8xbf16> to vector<1x128x8xbf16>
      tpu.vector_store %arg19[%c3_227, %c0_228, %c0_229], %316 {strides = array<i32>} : memref<4x128x8xbf16, #tpu.memory_space<vmem>>, vector<1x128x8xbf16>,
      %317 = arith.truncf %312 : vector<128x8xf32> to vector<128x8xbf16>
      %c3_230 = arith.constant 3 : index
      %c0_231 = arith.constant 0 : index
      %c0_232 = arith.constant 0 : index
      %318 = vector.load %arg20[%c3_230, %c0_231, %c0_232] : memref<4x128x8xbf16, #tpu.memory_space<vmem>>, vector<1x128x8xbf16>
      %319 = vector.shape_cast %318 : vector<1x128x8xbf16> to vector<128x8xbf16>
      %320 = vector.shape_cast %317 : vector<128x8xbf16> to vector<1x128x8xbf16>
      tpu.vector_store %arg20[%c3_230, %c0_231, %c0_232], %320 {strides = array<i32>} : memref<4x128x8xbf16, #tpu.memory_space<vmem>>, vector<1x128x8xbf16>,
    } else {
    }
    %c0_3 = arith.constant 0 : index
    %c0_4 = arith.constant 0 : index
    %5 = vector.load %arg5[%c0_3, %c0_4] : memref<32x32xbf16, #tpu.memory_space<vmem>>, vector<32x32xbf16>
    %cst = arith.constant dense<0.000000e+00> : vector<16x32xf32>
    %6 = tpu.matmul %1, %5, %cst {dimension_numbers = #tpu.dot_dimension_numbers<[1], [0], [0], [1], [0, 0, 1, 1], [], []>} : vector<16x32xbf16>, vector<32x32xbf16>, vector<16x32xf32> -> vector<16x32xf32>
    %c0_5 = arith.constant 0 : index
    %c0_6 = arith.constant 0 : index
    %7 = vector.load %arg6[%c0_5, %c0_6] : memref<1x32xf32, #tpu.memory_space<vmem>>, vector<1x32xf32>
    %8 = vector.broadcast %7 : vector<1x32xf32> to vector<16x32xf32>
    %9 = arith.addf %6, %8 : vector<16x32xf32>
    %c0_7 = arith.constant 0 : index
    %c0_8 = arith.constant 0 : index
    %10 = vector.load %arg21[%c0_7, %c0_8] : memref<16x32xf32, #tpu.memory_space<vmem>>, vector<16x32xf32>
    tpu.vector_store %arg21[%c0_7, %c0_8], %9 {strides = array<i32>} : memref<16x32xf32, #tpu.memory_space<vmem>>, vector<16x32xf32>,
    %c0_9 = arith.constant 0 : index
    %c0_10 = arith.constant 0 : index
    %11 = vector.load %arg11[%c0_9, %c0_10] : memref<32x4xbf16, #tpu.memory_space<vmem>>, vector<32x4xbf16>
    %cst_11 = arith.constant dense<0.000000e+00> : vector<16x4xf32>
    %12 = tpu.matmul %1, %11, %cst_11 {dimension_numbers = #tpu.dot_dimension_numbers<[1], [0], [0], [1], [0, 0, 1, 1], [], []>} : vector<16x32xbf16>, vector<32x4xbf16>, vector<16x4xf32> -> vector<16x4xf32>
    %c0_12 = arith.constant 0 : index
    %c0_13 = arith.constant 0 : index
    %13 = vector.load %arg12[%c0_12, %c0_13] : memref<1x4xf32, #tpu.memory_space<vmem>>, vector<1x4xf32>
    %14 = vector.broadcast %13 : vector<1x4xf32> to vector<16x4xf32>
    %15 = arith.addf %12, %14 : vector<16x4xf32>
    %cst_14 = arith.constant 5.000000e+00 : f32
    %16 = vector.broadcast %cst_14 : f32 to vector<16x4xf32>
    %17 = arith.mulf %15, %16 : vector<16x4xf32>
    %18 = arith.negf %17 : vector<16x4xf32>
    %19 = math.exp %18 : vector<16x4xf32>
    %cst_15 = arith.constant 1.000000e+00 : f32
    %20 = vector.broadcast %cst_15 : f32 to vector<16x4xf32>
    %21 = arith.addf %20, %19 : vector<16x4xf32>
    %22 = arith.divf %20, %21 : vector<16x4xf32>
    %cst_16 = arith.constant 9.99999974E-6 : f32
    %23 = vector.broadcast %cst_16 : f32 to vector<16x4xf32>
    %24 = arith.addf %22, %23 : vector<16x4xf32>
    %cst_17 = arith.constant 1.09861231 : f32
    %25 = vector.broadcast %cst_17 : f32 to vector<16x4xf32>
    %26 = arith.mulf %24, %25 : vector<16x4xf32>
    %27 = math.exp %26 : vector<16x4xf32>
    %cst_18 = arith.constant 1.000000e+00 : f32
    %28 = vector.broadcast %cst_18 : f32 to vector<16x4xf32>
    %29 = arith.subf %27, %28 : vector<16x4xf32>
    %c0_19 = arith.constant 0 : index
    %c0_20 = arith.constant 0 : index
    %c0_21 = arith.constant 0 : index
    %30 = vector.load %arg18[%c0_19, %c0_20, %c0_21] : memref<1x16x4xf32, #tpu.memory_space<vmem>>, vector<1x16x4xf32>
    %31 = vector.shape_cast %30 : vector<1x16x4xf32> to vector<16x4xf32>
    %32 = vector.shape_cast %29 : vector<16x4xf32> to vector<1x16x4xf32>
    tpu.vector_store %arg18[%c0_19, %c0_20, %c0_21], %32 {strides = array<i32>} : memref<1x16x4xf32, #tpu.memory_space<vmem>>, vector<1x16x4xf32>,
    %33 = tpu.iota {dimensions = array<i32: 0>} : vector<16x128xi32>
    %c16_i32 = arith.constant 16 : i32
    %34 = arith.muli %arg1, %c16_i32 : i32
    %35 = vector.broadcast %34 : i32 to vector<16x128xi32>
    %36 = arith.addi %33, %35 : vector<16x128xi32>
    %37 = tpu.iota {dimensions = array<i32: 1>} : vector<16x128xi32>
    %38 = arith.subi %36, %37 : vector<16x128xi32>
    %39 = arith.sitofp %38 : vector<16x128xi32> to vector<16x128xf32>
    %40 = arith.mulf %39, %39 : vector<16x128xf32>
    %c16_i32_22 = arith.constant 16 : i32
    %41 = vector.broadcast %c16_i32_22 : i32 to vector<16x128xi32>
    %42 = arith.cmpi sge, %37, %41 : vector<16x128xi32>
    %c0_23 = arith.constant 0 : index
    %c0_24 = arith.constant 0 : index
    %43 = vector.load %arg21[%c0_23, %c0_24] : memref<16x32xf32, #tpu.memory_space<vmem>>, vector<16x8xf32>
    %44 = arith.truncf %43 : vector<16x8xf32> to vector<16x8xbf16>
    %c0_25 = arith.constant 0 : index
    %c0_26 = arith.constant 0 : index
    %c0_27 = arith.constant 0 : index
    %45 = vector.load %arg19[%c0_25, %c0_26, %c0_27] : memref<4x128x8xbf16, #tpu.memory_space<vmem>>, vector<1x128x8xbf16>
    %46 = vector.shape_cast %45 : vector<1x128x8xbf16> to vector<128x8xbf16>
    %c0_28 = arith.constant 0 : index
    %c0_29 = arith.constant 0 : index
    %c0_30 = arith.constant 0 : index
    %47 = vector.load %arg20[%c0_28, %c0_29, %c0_30] : memref<4x128x8xbf16, #tpu.memory_space<vmem>>, vector<1x128x8xbf16>
    %48 = vector.shape_cast %47 : vector<1x128x8xbf16> to vector<128x8xbf16>
    %cst_31 = arith.constant dense<0.000000e+00> : vector<16x128xf32>
    %49 = tpu.matmul %44, %46, %cst_31 {dimension_numbers = #tpu.dot_dimension_numbers<[1], [1], [0], [0], [0, 0, 1, 0], [], []>} : vector<16x8xbf16>, vector<128x8xbf16>, vector<16x128xf32> -> vector<16x128xf32>
    %cst_32 = arith.constant 0.353553385 : f32
    %50 = vector.broadcast %cst_32 : f32 to vector<16x128xf32>
    %51 = arith.mulf %49, %50 : vector<16x128xf32>
    %cst_33 = arith.constant -1.000000e+30 : f32
    %52 = vector.broadcast %cst_33 : f32 to vector<16x128xf32>
    %53 = arith.select %42, %52, %51 : vector<16x128xi1>, vector<16x128xf32>
    %cst_34 = arith.constant dense<0xFF800000> : vector<16xf32>
    %54 = vector.multi_reduction <maximumf>, %53, %cst_34 [1] : vector<16x128xf32> to vector<16xf32>
    %55 = vector.shape_cast %54 : vector<16xf32> to vector<16x1xf32>
    %56 = vector.broadcast %55 : vector<16x1xf32> to vector<16x128xf32>
    %57 = arith.subf %53, %56 : vector<16x128xf32>
    %58 = math.exp %57 : vector<16x128xf32>
    %cst_35 = arith.constant dense<0.000000e+00> : vector<16xf32>
    %59 = vector.multi_reduction <add>, %58, %cst_35 [1] : vector<16x128xf32> to vector<16xf32>
    %60 = vector.shape_cast %59 : vector<16xf32> to vector<16x1xf32>
    %61 = tpu.reciprocal %60 {approx = true} : vector<16x1xf32> -> vector<16x1xf32>
    %62 = vector.broadcast %61 : vector<16x1xf32> to vector<16x128xf32>
    %63 = arith.mulf %58, %62 : vector<16x128xf32>
    %c0_36 = arith.constant 0 : index
    %c0_37 = arith.constant 0 : index
    %c0_38 = arith.constant 0 : index
    %c0_39 = arith.constant 0 : index
    %64 = vector.load %arg16[%c0_36, %c0_37, %c0_38, %c0_39] : memref<1x4x16x128xf32, #tpu.memory_space<vmem>>, vector<1x1x16x128xf32>
    %65 = vector.shape_cast %64 : vector<1x1x16x128xf32> to vector<16x128xf32>
    %66 = vector.shape_cast %63 : vector<16x128xf32> to vector<1x1x16x128xf32>
    tpu.vector_store %arg16[%c0_36, %c0_37, %c0_38, %c0_39], %66 {strides = array<i32>} : memref<1x4x16x128xf32, #tpu.memory_space<vmem>>, vector<1x1x16x128xf32>,
    %c0_40 = arith.constant 0 : index
    %c0_41 = arith.constant 0 : index
    %c0_42 = arith.constant 0 : index
    %67 = vector.load %arg18[%c0_40, %c0_41, %c0_42] : memref<1x16x4xf32, #tpu.memory_space<vmem>>, vector<1x16x1xf32>
    %68 = vector.shape_cast %67 : vector<1x16x1xf32> to vector<16x1xf32>
    %cst_43 = arith.constant 1.000000e+00 : f32
    %69 = vector.broadcast %cst_43 : f32 to vector<16x1xf32>
    %70 = arith.divf %69, %68 : vector<16x1xf32>
    %cst_44 = arith.constant 0.398942292 : f32
    %71 = vector.broadcast %cst_44 : f32 to vector<16x1xf32>
    %72 = arith.mulf %70, %71 : vector<16x1xf32>
    %cst_45 = arith.constant -5.000000e-01 : f32
    %73 = vector.broadcast %cst_45 : f32 to vector<16x1xf32>
    %74 = arith.mulf %73, %70 : vector<16x1xf32>
    %75 = arith.mulf %74, %70 : vector<16x1xf32>
    %76 = vector.broadcast %75 : vector<16x1xf32> to vector<16x128xf32>
    %77 = arith.mulf %40, %76 : vector<16x128xf32>
    %78 = math.exp %77 : vector<16x128xf32>
    %79 = vector.broadcast %72 : vector<16x1xf32> to vector<16x128xf32>
    %80 = arith.mulf %79, %78 : vector<16x128xf32>
    %c0_46 = arith.constant 0 : index
    %c0_47 = arith.constant 0 : index
    %c0_48 = arith.constant 0 : index
    %c0_49 = arith.constant 0 : index
    %81 = vector.load %arg17[%c0_46, %c0_47, %c0_48, %c0_49] : memref<1x4x16x128xf32, #tpu.memory_space<vmem>>, vector<1x1x16x128xf32>
    %82 = vector.shape_cast %81 : vector<1x1x16x128xf32> to vector<16x128xf32>
    %83 = vector.shape_cast %80 : vector<16x128xf32> to vector<1x1x16x128xf32>
    tpu.vector_store %arg17[%c0_46, %c0_47, %c0_48, %c0_49], %83 {strides = array<i32>} : memref<1x4x16x128xf32, #tpu.memory_space<vmem>>, vector<1x1x16x128xf32>,
    %84 = arith.truncf %63 : vector<16x128xf32> to vector<16x128xbf16>
    %cst_50 = arith.constant dense<0.000000e+00> : vector<16x8xf32>
    %85 = tpu.matmul %84, %48, %cst_50 {dimension_numbers = #tpu.dot_dimension_numbers<[1], [0], [0], [1], [0, 0, 1, 1], [], []>} : vector<16x128xbf16>, vector<128x8xbf16>, vector<16x8xf32> -> vector<16x8xf32>
    %c0_51 = arith.constant 0 : index
    %c0_52 = arith.constant 0 : index
    %86 = vector.load %arg22[%c0_51, %c0_52] : memref<16x32xf32, #tpu.memory_space<vmem>>, vector<16x8xf32>
    tpu.vector_store %arg22[%c0_51, %c0_52], %85 {strides = array<i32>} : memref<16x32xf32, #tpu.memory_space<vmem>>, vector<16x8xf32>,
    %c0_53 = arith.constant 0 : index
    %c8 = arith.constant 8 : index
    %87 = vector.load %arg21[%c0_53, %c8] : memref<16x32xf32, #tpu.memory_space<vmem>>, vector<16x8xf32>
    %88 = arith.truncf %87 : vector<16x8xf32> to vector<16x8xbf16>
    %c1 = arith.constant 1 : index
    %c0_54 = arith.constant 0 : index
    %c0_55 = arith.constant 0 : index
    %89 = vector.load %arg19[%c1, %c0_54, %c0_55] : memref<4x128x8xbf16, #tpu.memory_space<vmem>>, vector<1x128x8xbf16>
    %90 = vector.shape_cast %89 : vector<1x128x8xbf16> to vector<128x8xbf16>
    %c1_56 = arith.constant 1 : index
    %c0_57 = arith.constant 0 : index
    %c0_58 = arith.constant 0 : index
    %91 = vector.load %arg20[%c1_56, %c0_57, %c0_58] : memref<4x128x8xbf16, #tpu.memory_space<vmem>>, vector<1x128x8xbf16>
    %92 = vector.shape_cast %91 : vector<1x128x8xbf16> to vector<128x8xbf16>
    %cst_59 = arith.constant dense<0.000000e+00> : vector<16x128xf32>
    %93 = tpu.matmul %88, %90, %cst_59 {dimension_numbers = #tpu.dot_dimension_numbers<[1], [1], [0], [0], [0, 0, 1, 0], [], []>} : vector<16x8xbf16>, vector<128x8xbf16>, vector<16x128xf32> -> vector<16x128xf32>
    %cst_60 = arith.constant 0.353553385 : f32
    %94 = vector.broadcast %cst_60 : f32 to vector<16x128xf32>
    %95 = arith.mulf %93, %94 : vector<16x128xf32>
    %cst_61 = arith.constant -1.000000e+30 : f32
    %96 = vector.broadcast %cst_61 : f32 to vector<16x128xf32>
    %97 = arith.select %42, %96, %95 : vector<16x128xi1>, vector<16x128xf32>
    %cst_62 = arith.constant dense<0xFF800000> : vector<16xf32>
    %98 = vector.multi_reduction <maximumf>, %97, %cst_62 [1] : vector<16x128xf32> to vector<16xf32>
    %99 = vector.shape_cast %98 : vector<16xf32> to vector<16x1xf32>
    %100 = vector.broadcast %99 : vector<16x1xf32> to vector<16x128xf32>
    %101 = arith.subf %97, %100 : vector<16x128xf32>
    %102 = math.exp %101 : vector<16x128xf32>
    %cst_63 = arith.constant dense<0.000000e+00> : vector<16xf32>
    %103 = vector.multi_reduction <add>, %102, %cst_63 [1] : vector<16x128xf32> to vector<16xf32>
    %104 = vector.shape_cast %103 : vector<16xf32> to vector<16x1xf32>
    %105 = tpu.reciprocal %104 {approx = true} : vector<16x1xf32> -> vector<16x1xf32>
    %106 = vector.broadcast %105 : vector<16x1xf32> to vector<16x128xf32>
    %107 = arith.mulf %102, %106 : vector<16x128xf32>
    %c0_64 = arith.constant 0 : index
    %c1_65 = arith.constant 1 : index
    %c0_66 = arith.constant 0 : index
    %c0_67 = arith.constant 0 : index
    %108 = vector.load %arg16[%c0_64, %c1_65, %c0_66, %c0_67] : memref<1x4x16x128xf32, #tpu.memory_space<vmem>>, vector<1x1x16x128xf32>
    %109 = vector.shape_cast %108 : vector<1x1x16x128xf32> to vector<16x128xf32>
    %110 = vector.shape_cast %107 : vector<16x128xf32> to vector<1x1x16x128xf32>
    tpu.vector_store %arg16[%c0_64, %c1_65, %c0_66, %c0_67], %110 {strides = array<i32>} : memref<1x4x16x128xf32, #tpu.memory_space<vmem>>, vector<1x1x16x128xf32>,
    %c0_68 = arith.constant 0 : index
    %c0_69 = arith.constant 0 : index
    %c1_70 = arith.constant 1 : index
    %111 = vector.load %arg18[%c0_68, %c0_69, %c1_70] : memref<1x16x4xf32, #tpu.memory_space<vmem>>, vector<1x16x1xf32>
    %112 = vector.shape_cast %111 : vector<1x16x1xf32> to vector<16x1xf32>
    %cst_71 = arith.constant 1.000000e+00 : f32
    %113 = vector.broadcast %cst_71 : f32 to vector<16x1xf32>
    %114 = arith.divf %113, %112 : vector<16x1xf32>
    %cst_72 = arith.constant 0.398942292 : f32
    %115 = vector.broadcast %cst_72 : f32 to vector<16x1xf32>
    %116 = arith.mulf %114, %115 : vector<16x1xf32>
    %cst_73 = arith.constant -5.000000e-01 : f32
    %117 = vector.broadcast %cst_73 : f32 to vector<16x1xf32>
    %118 = arith.mulf %117, %114 : vector<16x1xf32>
    %119 = arith.mulf %118, %114 : vector<16x1xf32>
    %120 = vector.broadcast %119 : vector<16x1xf32> to vector<16x128xf32>
    %121 = arith.mulf %40, %120 : vector<16x128xf32>
    %122 = math.exp %121 : vector<16x128xf32>
    %123 = vector.broadcast %116 : vector<16x1xf32> to vector<16x128xf32>
    %124 = arith.mulf %123, %122 : vector<16x128xf32>
    %c0_74 = arith.constant 0 : index
    %c1_75 = arith.constant 1 : index
    %c0_76 = arith.constant 0 : index
    %c0_77 = arith.constant 0 : index
    %125 = vector.load %arg17[%c0_74, %c1_75, %c0_76, %c0_77] : memref<1x4x16x128xf32, #tpu.memory_space<vmem>>, vector<1x1x16x128xf32>
    %126 = vector.shape_cast %125 : vector<1x1x16x128xf32> to vector<16x128xf32>
    %127 = vector.shape_cast %124 : vector<16x128xf32> to vector<1x1x16x128xf32>
    tpu.vector_store %arg17[%c0_74, %c1_75, %c0_76, %c0_77], %127 {strides = array<i32>} : memref<1x4x16x128xf32, #tpu.memory_space<vmem>>, vector<1x1x16x128xf32>,
    %128 = arith.truncf %107 : vector<16x128xf32> to vector<16x128xbf16>
    %cst_78 = arith.constant dense<0.000000e+00> : vector<16x8xf32>
    %129 = tpu.matmul %128, %92, %cst_78 {dimension_numbers = #tpu.dot_dimension_numbers<[1], [0], [0], [1], [0, 0, 1, 1], [], []>} : vector<16x128xbf16>, vector<128x8xbf16>, vector<16x8xf32> -> vector<16x8xf32>
    %c0_79 = arith.constant 0 : index
    %c8_80 = arith.constant 8 : index
    %130 = vector.load %arg22[%c0_79, %c8_80] : memref<16x32xf32, #tpu.memory_space<vmem>>, vector<16x8xf32>
    tpu.vector_store %arg22[%c0_79, %c8_80], %129 {strides = array<i32>} : memref<16x32xf32, #tpu.memory_space<vmem>>, vector<16x8xf32>,
    %c0_81 = arith.constant 0 : index
    %c16 = arith.constant 16 : index
    %131 = vector.load %arg21[%c0_81, %c16] : memref<16x32xf32, #tpu.memory_space<vmem>>, vector<16x8xf32>
    %132 = arith.truncf %131 : vector<16x8xf32> to vector<16x8xbf16>
    %c2 = arith.constant 2 : index
    %c0_82 = arith.constant 0 : index
    %c0_83 = arith.constant 0 : index
    %133 = vector.load %arg19[%c2, %c0_82, %c0_83] : memref<4x128x8xbf16, #tpu.memory_space<vmem>>, vector<1x128x8xbf16>
    %134 = vector.shape_cast %133 : vector<1x128x8xbf16> to vector<128x8xbf16>
    %c2_84 = arith.constant 2 : index
    %c0_85 = arith.constant 0 : index
    %c0_86 = arith.constant 0 : index
    %135 = vector.load %arg20[%c2_84, %c0_85, %c0_86] : memref<4x128x8xbf16, #tpu.memory_space<vmem>>, vector<1x128x8xbf16>
    %136 = vector.shape_cast %135 : vector<1x128x8xbf16> to vector<128x8xbf16>
    %cst_87 = arith.constant dense<0.000000e+00> : vector<16x128xf32>
    %137 = tpu.matmul %132, %134, %cst_87 {dimension_numbers = #tpu.dot_dimension_numbers<[1], [1], [0], [0], [0, 0, 1, 0], [], []>} : vector<16x8xbf16>, vector<128x8xbf16>, vector<16x128xf32> -> vector<16x128xf32>
    %cst_88 = arith.constant 0.353553385 : f32
    %138 = vector.broadcast %cst_88 : f32 to vector<16x128xf32>
    %139 = arith.mulf %137, %138 : vector<16x128xf32>
    %cst_89 = arith.constant -1.000000e+30 : f32
    %140 = vector.broadcast %cst_89 : f32 to vector<16x128xf32>
    %141 = arith.select %42, %140, %139 : vector<16x128xi1>, vector<16x128xf32>
    %cst_90 = arith.constant dense<0xFF800000> : vector<16xf32>
    %142 = vector.multi_reduction <maximumf>, %141, %cst_90 [1] : vector<16x128xf32> to vector<16xf32>
    %143 = vector.shape_cast %142 : vector<16xf32> to vector<16x1xf32>
    %144 = vector.broadcast %143 : vector<16x1xf32> to vector<16x128xf32>
    %145 = arith.subf %141, %144 : vector<16x128xf32>
    %146 = math.exp %145 : vector<16x128xf32>
    %cst_91 = arith.constant dense<0.000000e+00> : vector<16xf32>
    %147 = vector.multi_reduction <add>, %146, %cst_91 [1] : vector<16x128xf32> to vector<16xf32>
    %148 = vector.shape_cast %147 : vector<16xf32> to vector<16x1xf32>
    %149 = tpu.reciprocal %148 {approx = true} : vector<16x1xf32> -> vector<16x1xf32>
    %150 = vector.broadcast %149 : vector<16x1xf32> to vector<16x128xf32>
    %151 = arith.mulf %146, %150 : vector<16x128xf32>
    %c0_92 = arith.constant 0 : index
    %c2_93 = arith.constant 2 : index
    %c0_94 = arith.constant 0 : index
    %c0_95 = arith.constant 0 : index
    %152 = vector.load %arg16[%c0_92, %c2_93, %c0_94, %c0_95] : memref<1x4x16x128xf32, #tpu.memory_space<vmem>>, vector<1x1x16x128xf32>
    %153 = vector.shape_cast %152 : vector<1x1x16x128xf32> to vector<16x128xf32>
    %154 = vector.shape_cast %151 : vector<16x128xf32> to vector<1x1x16x128xf32>
    tpu.vector_store %arg16[%c0_92, %c2_93, %c0_94, %c0_95], %154 {strides = array<i32>} : memref<1x4x16x128xf32, #tpu.memory_space<vmem>>, vector<1x1x16x128xf32>,
    %c0_96 = arith.constant 0 : index
    %c0_97 = arith.constant 0 : index
    %c2_98 = arith.constant 2 : index
    %155 = vector.load %arg18[%c0_96, %c0_97, %c2_98] : memref<1x16x4xf32, #tpu.memory_space<vmem>>, vector<1x16x1xf32>
    %156 = vector.shape_cast %155 : vector<1x16x1xf32> to vector<16x1xf32>
    %cst_99 = arith.constant 1.000000e+00 : f32
    %157 = vector.broadcast %cst_99 : f32 to vector<16x1xf32>
    %158 = arith.divf %157, %156 : vector<16x1xf32>
    %cst_100 = arith.constant 0.398942292 : f32
    %159 = vector.broadcast %cst_100 : f32 to vector<16x1xf32>
    %160 = arith.mulf %158, %159 : vector<16x1xf32>
    %cst_101 = arith.constant -5.000000e-01 : f32
    %161 = vector.broadcast %cst_101 : f32 to vector<16x1xf32>
    %162 = arith.mulf %161, %158 : vector<16x1xf32>
    %163 = arith.mulf %162, %158 : vector<16x1xf32>
    %164 = vector.broadcast %163 : vector<16x1xf32> to vector<16x128xf32>
    %165 = arith.mulf %40, %164 : vector<16x128xf32>
    %166 = math.exp %165 : vector<16x128xf32>
    %167 = vector.broadcast %160 : vector<16x1xf32> to vector<16x128xf32>
    %168 = arith.mulf %167, %166 : vector<16x128xf32>
    %c0_102 = arith.constant 0 : index
    %c2_103 = arith.constant 2 : index
    %c0_104 = arith.constant 0 : index
    %c0_105 = arith.constant 0 : index
    %169 = vector.load %arg17[%c0_102, %c2_103, %c0_104, %c0_105] : memref<1x4x16x128xf32, #tpu.memory_space<vmem>>, vector<1x1x16x128xf32>
    %170 = vector.shape_cast %169 : vector<1x1x16x128xf32> to vector<16x128xf32>
    %171 = vector.shape_cast %168 : vector<16x128xf32> to vector<1x1x16x128xf32>
    tpu.vector_store %arg17[%c0_102, %c2_103, %c0_104, %c0_105], %171 {strides = array<i32>} : memref<1x4x16x128xf32, #tpu.memory_space<vmem>>, vector<1x1x16x128xf32>,
    %172 = arith.truncf %151 : vector<16x128xf32> to vector<16x128xbf16>
    %cst_106 = arith.constant dense<0.000000e+00> : vector<16x8xf32>
    %173 = tpu.matmul %172, %136, %cst_106 {dimension_numbers = #tpu.dot_dimension_numbers<[1], [0], [0], [1], [0, 0, 1, 1], [], []>} : vector<16x128xbf16>, vector<128x8xbf16>, vector<16x8xf32> -> vector<16x8xf32>
    %c0_107 = arith.constant 0 : index
    %c16_108 = arith.constant 16 : index
    %174 = vector.load %arg22[%c0_107, %c16_108] : memref<16x32xf32, #tpu.memory_space<vmem>>, vector<16x8xf32>
    tpu.vector_store %arg22[%c0_107, %c16_108], %173 {strides = array<i32>} : memref<16x32xf32, #tpu.memory_space<vmem>>, vector<16x8xf32>,
    %c0_109 = arith.constant 0 : index
    %c24 = arith.constant 24 : index
    %175 = vector.load %arg21[%c0_109, %c24] : memref<16x32xf32, #tpu.memory_space<vmem>>, vector<16x8xf32>
    %176 = arith.truncf %175 : vector<16x8xf32> to vector<16x8xbf16>
    %c3 = arith.constant 3 : index
    %c0_110 = arith.constant 0 : index
    %c0_111 = arith.constant 0 : index
    %177 = vector.load %arg19[%c3, %c0_110, %c0_111] : memref<4x128x8xbf16, #tpu.memory_space<vmem>>, vector<1x128x8xbf16>
    %178 = vector.shape_cast %177 : vector<1x128x8xbf16> to vector<128x8xbf16>
    %c3_112 = arith.constant 3 : index
    %c0_113 = arith.constant 0 : index
    %c0_114 = arith.constant 0 : index
    %179 = vector.load %arg20[%c3_112, %c0_113, %c0_114] : memref<4x128x8xbf16, #tpu.memory_space<vmem>>, vector<1x128x8xbf16>
    %180 = vector.shape_cast %179 : vector<1x128x8xbf16> to vector<128x8xbf16>
    %cst_115 = arith.constant dense<0.000000e+00> : vector<16x128xf32>
    %181 = tpu.matmul %176, %178, %cst_115 {dimension_numbers = #tpu.dot_dimension_numbers<[1], [1], [0], [0], [0, 0, 1, 0], [], []>} : vector<16x8xbf16>, vector<128x8xbf16>, vector<16x128xf32> -> vector<16x128xf32>
    %cst_116 = arith.constant 0.353553385 : f32
    %182 = vector.broadcast %cst_116 : f32 to vector<16x128xf32>
    %183 = arith.mulf %181, %182 : vector<16x128xf32>
    %cst_117 = arith.constant -1.000000e+30 : f32
    %184 = vector.broadcast %cst_117 : f32 to vector<16x128xf32>
    %185 = arith.select %42, %184, %183 : vector<16x128xi1>, vector<16x128xf32>
    %cst_118 = arith.constant dense<0xFF800000> : vector<16xf32>
    %186 = vector.multi_reduction <maximumf>, %185, %cst_118 [1] : vector<16x128xf32> to vector<16xf32>
    %187 = vector.shape_cast %186 : vector<16xf32> to vector<16x1xf32>
    %188 = vector.broadcast %187 : vector<16x1xf32> to vector<16x128xf32>
    %189 = arith.subf %185, %188 : vector<16x128xf32>
    %190 = math.exp %189 : vector<16x128xf32>
    %cst_119 = arith.constant dense<0.000000e+00> : vector<16xf32>
    %191 = vector.multi_reduction <add>, %190, %cst_119 [1] : vector<16x128xf32> to vector<16xf32>
    %192 = vector.shape_cast %191 : vector<16xf32> to vector<16x1xf32>
    %193 = tpu.reciprocal %192 {approx = true} : vector<16x1xf32> -> vector<16x1xf32>
    %194 = vector.broadcast %193 : vector<16x1xf32> to vector<16x128xf32>
    %195 = arith.mulf %190, %194 : vector<16x128xf32>
    %c0_120 = arith.constant 0 : index
    %c3_121 = arith.constant 3 : index
    %c0_122 = arith.constant 0 : index
    %c0_123 = arith.constant 0 : index
    %196 = vector.load %arg16[%c0_120, %c3_121, %c0_122, %c0_123] : memref<1x4x16x128xf32, #tpu.memory_space<vmem>>, vector<1x1x16x128xf32>
    %197 = vector.shape_cast %196 : vector<1x1x16x128xf32> to vector<16x128xf32>
    %198 = vector.shape_cast %195 : vector<16x128xf32> to vector<1x1x16x128xf32>
    tpu.vector_store %arg16[%c0_120, %c3_121, %c0_122, %c0_123], %198 {strides = array<i32>} : memref<1x4x16x128xf32, #tpu.memory_space<vmem>>, vector<1x1x16x128xf32>,
    %c0_124 = arith.constant 0 : index
    %c0_125 = arith.constant 0 : index
    %c3_126 = arith.constant 3 : index
    %199 = vector.load %arg18[%c0_124, %c0_125, %c3_126] : memref<1x16x4xf32, #tpu.memory_space<vmem>>, vector<1x16x1xf32>
    %200 = vector.shape_cast %199 : vector<1x16x1xf32> to vector<16x1xf32>
    %cst_127 = arith.constant 1.000000e+00 : f32
    %201 = vector.broadcast %cst_127 : f32 to vector<16x1xf32>
    %202 = arith.divf %201, %200 : vector<16x1xf32>
    %cst_128 = arith.constant 0.398942292 : f32
    %203 = vector.broadcast %cst_128 : f32 to vector<16x1xf32>
    %204 = arith.mulf %202, %203 : vector<16x1xf32>
    %cst_129 = arith.constant -5.000000e-01 : f32
    %205 = vector.broadcast %cst_129 : f32 to vector<16x1xf32>
    %206 = arith.mulf %205, %202 : vector<16x1xf32>
    %207 = arith.mulf %206, %202 : vector<16x1xf32>
    %208 = vector.broadcast %207 : vector<16x1xf32> to vector<16x128xf32>
    %209 = arith.mulf %40, %208 : vector<16x128xf32>
    %210 = math.exp %209 : vector<16x128xf32>
    %211 = vector.broadcast %204 : vector<16x1xf32> to vector<16x128xf32>
    %212 = arith.mulf %211, %210 : vector<16x128xf32>
    %c0_130 = arith.constant 0 : index
    %c3_131 = arith.constant 3 : index
    %c0_132 = arith.constant 0 : index
    %c0_133 = arith.constant 0 : index
    %213 = vector.load %arg17[%c0_130, %c3_131, %c0_132, %c0_133] : memref<1x4x16x128xf32, #tpu.memory_space<vmem>>, vector<1x1x16x128xf32>
    %214 = vector.shape_cast %213 : vector<1x1x16x128xf32> to vector<16x128xf32>
    %215 = vector.shape_cast %212 : vector<16x128xf32> to vector<1x1x16x128xf32>
    tpu.vector_store %arg17[%c0_130, %c3_131, %c0_132, %c0_133], %215 {strides = array<i32>} : memref<1x4x16x128xf32, #tpu.memory_space<vmem>>, vector<1x1x16x128xf32>,
    %216 = arith.truncf %195 : vector<16x128xf32> to vector<16x128xbf16>
    %cst_134 = arith.constant dense<0.000000e+00> : vector<16x8xf32>
    %217 = tpu.matmul %216, %180, %cst_134 {dimension_numbers = #tpu.dot_dimension_numbers<[1], [0], [0], [1], [0, 0, 1, 1], [], []>} : vector<16x128xbf16>, vector<128x8xbf16>, vector<16x8xf32> -> vector<16x8xf32>
    %c0_135 = arith.constant 0 : index
    %c24_136 = arith.constant 24 : index
    %218 = vector.load %arg22[%c0_135, %c24_136] : memref<16x32xf32, #tpu.memory_space<vmem>>, vector<16x8xf32>
    tpu.vector_store %arg22[%c0_135, %c24_136], %217 {strides = array<i32>} : memref<16x32xf32, #tpu.memory_space<vmem>>, vector<16x8xf32>,
    %c0_137 = arith.constant 0 : index
    %c0_138 = arith.constant 0 : index
    %219 = vector.load %arg22[%c0_137, %c0_138] : memref<16x32xf32, #tpu.memory_space<vmem>>, vector<16x32xf32>
    %220 = arith.truncf %219 : vector<16x32xf32> to vector<16x32xbf16>
    %c0_139 = arith.constant 0 : index
    %c0_140 = arith.constant 0 : index
    %221 = vector.load %arg13[%c0_139, %c0_140] : memref<32x32xbf16, #tpu.memory_space<vmem>>, vector<32x32xbf16>
    %cst_141 = arith.constant dense<0.000000e+00> : vector<16x32xf32>
    %222 = tpu.matmul %220, %221, %cst_141 {dimension_numbers = #tpu.dot_dimension_numbers<[1], [0], [0], [1], [0, 0, 1, 1], [], []>} : vector<16x32xbf16>, vector<32x32xbf16>, vector<16x32xf32> -> vector<16x32xf32>
    %c0_142 = arith.constant 0 : index
    %c0_143 = arith.constant 0 : index
    %223 = vector.load %arg14[%c0_142, %c0_143] : memref<1x32xf32, #tpu.memory_space<vmem>>, vector<1x32xf32>
    %224 = vector.broadcast %223 : vector<1x32xf32> to vector<16x32xf32>
    %225 = arith.addf %222, %224 : vector<16x32xf32>
    %c0_144 = arith.constant 0 : index
    %c0_145 = arith.constant 0 : index
    %c0_146 = arith.constant 0 : index
    %226 = vector.load %arg15[%c0_144, %c0_145, %c0_146] : memref<1x16x32xf32, #tpu.memory_space<vmem>>, vector<1x16x32xf32>
    %227 = vector.shape_cast %226 : vector<1x16x32xf32> to vector<16x32xf32>
    %228 = vector.shape_cast %225 : vector<16x32xf32> to vector<1x16x32xf32>
    tpu.vector_store %arg15[%c0_144, %c0_145, %c0_146], %228 {strides = array<i32>} : memref<1x16x32xf32, #tpu.memory_space<vmem>>, vector<1x16x32xf32>,
    return
  }
  func.func @transform_0(%arg0: i32, %arg1: i32) -> (i32, i32, i32) {
    %c0_i32 = arith.constant 0 : i32
    %c0_i32_0 = arith.constant 0 : i32
    return %arg0, %arg1, %c0_i32 : i32, i32, i32
  }
  func.func @transform_1(%arg0: i32, %arg1: i32) -> (i32, i32, i32) {
    %c0_i32 = arith.constant 0 : i32
    %c0_i32_0 = arith.constant 0 : i32
    %c0_i32_1 = arith.constant 0 : i32
    return %arg0, %c0_i32, %c0_i32_0 : i32, i32, i32
  }
  func.func @transform_2(%arg0: i32, %arg1: i32) -> (i32, i32, i32) {
    %c0_i32 = arith.constant 0 : i32
    %c0_i32_0 = arith.constant 0 : i32
    %c0_i32_1 = arith.constant 0 : i32
    return %arg0, %c0_i32, %c0_i32_0 : i32, i32, i32
  }
  func.func @transform_3(%arg0: i32, %arg1: i32) -> (i32, i32) {
    %c0_i32 = arith.constant 0 : i32
    %c0_i32_0 = arith.constant 0 : i32
    %c0_i32_1 = arith.constant 0 : i32
    return %c0_i32, %c0_i32_0 : i32, i32
  }
  func.func @transform_4(%arg0: i32, %arg1: i32) -> (i32, i32) {
    %c0_i32 = arith.constant 0 : i32
    %c0_i32_0 = arith.constant 0 : i32
    %c0_i32_1 = arith.constant 0 : i32
    return %c0_i32, %c0_i32_0 : i32, i32
  }
  func.func @transform_5(%arg0: i32, %arg1: i32) -> (i32, i32, i32) {
    %c0_i32 = arith.constant 0 : i32
    %c0_i32_0 = arith.constant 0 : i32
    %c0_i32_1 = arith.constant 0 : i32
    %c0_i32_2 = arith.constant 0 : i32
    return %c0_i32, %c0_i32_0, %c0_i32_1 : i32, i32, i32
  }
  func.func @transform_6(%arg0: i32, %arg1: i32) -> (i32, i32, i32) {
    %c0_i32 = arith.constant 0 : i32
    %c0_i32_0 = arith.constant 0 : i32
    %c0_i32_1 = arith.constant 0 : i32
    %c0_i32_2 = arith.constant 0 : i32
    return %c0_i32, %c0_i32_0, %c0_i32_1 : i32, i32, i32
  }
  func.func @transform_7(%arg0: i32, %arg1: i32) -> (i32, i32, i32) {
    %c0_i32 = arith.constant 0 : i32
    %c0_i32_0 = arith.constant 0 : i32
    %c0_i32_1 = arith.constant 0 : i32
    %c0_i32_2 = arith.constant 0 : i32
    return %c0_i32, %c0_i32_0, %c0_i32_1 : i32, i32, i32
  }
  func.func @transform_8(%arg0: i32, %arg1: i32) -> (i32, i32, i32) {
    %c0_i32 = arith.constant 0 : i32
    %c0_i32_0 = arith.constant 0 : i32
    %c0_i32_1 = arith.constant 0 : i32
    %c0_i32_2 = arith.constant 0 : i32
    return %c0_i32, %c0_i32_0, %c0_i32_1 : i32, i32, i32
  }
  func.func @transform_9(%arg0: i32, %arg1: i32) -> (i32, i32) {
    %c0_i32 = arith.constant 0 : i32
    %c0_i32_0 = arith.constant 0 : i32
    %c0_i32_1 = arith.constant 0 : i32
    return %c0_i32, %c0_i32_0 : i32, i32
  }
  func.func @transform_10(%arg0: i32, %arg1: i32) -> (i32, i32) {
    %c0_i32 = arith.constant 0 : i32
    %c0_i32_0 = arith.constant 0 : i32
    %c0_i32_1 = arith.constant 0 : i32
    return %c0_i32, %c0_i32_0 : i32, i32
  }
  func.func @transform_11(%arg0: i32, %arg1: i32) -> (i32, i32) {
    %c0_i32 = arith.constant 0 : i32
    %c0_i32_0 = arith.constant 0 : i32
    %c0_i32_1 = arith.constant 0 : i32
    return %c0_i32, %c0_i32_0 : i32, i32
  }
  func.func @transform_12(%arg0: i32, %arg1: i32) -> (i32, i32) {
    %c0_i32 = arith.constant 0 : i32
    %c0_i32_0 = arith.constant 0 : i32
    %c0_i32_1 = arith.constant 0 : i32
    return %c0_i32, %c0_i32_0 : i32, i32
  }
  func.func @transform_13(%arg0: i32, %arg1: i32) -> (i32, i32, i32) {
    %c0_i32 = arith.constant 0 : i32
    %c0_i32_0 = arith.constant 0 : i32
    return %arg0, %arg1, %c0_i32 : i32, i32, i32
  }
  func.func @transform_14(%arg0: i32, %arg1: i32) -> (i32, i32, i32, i32) {
    %c0_i32 = arith.constant 0 : i32
    %c0_i32_0 = arith.constant 0 : i32
    %c0_i32_1 = arith.constant 0 : i32
    return %arg0, %c0_i32, %arg1, %c0_i32_0 : i32, i32, i32, i32
  }
  func.func @transform_15(%arg0: i32, %arg1: i32) -> (i32, i32, i32, i32) {
    %c0_i32 = arith.constant 0 : i32
    %c0_i32_0 = arith.constant 0 : i32
    %c0_i32_1 = arith.constant 0 : i32
    return %arg0, %c0_i32, %arg1, %c0_i32_0 : i32, i32, i32, i32
  }
  func.func @transform_16(%arg0: i32, %arg1: i32) -> (i32, i32, i32) {
    %c0_i32 = arith.constant 0 : i32
    %c0_i32_0 = arith.constant 0 : i32
    return %arg0, %arg1, %c0_i32 : i32, i32, i32
  }
}

</mosaic_0001>

<llo_original>
// kernel: tpu_custom_call.1
$region0: #{tpu_custom_call.1}
  #allocation0 [shape = 'u32[]', space=smem, size = 0x4, offset = 0x4, fixed_abs, tag = 'smem constant byte address 0x4 - core index']
  #allocation1 [shape = 'u32[72,128]{1,0:T(1,128)}', space=vmem, size = 0x9000, scoped, tag = 'internal scratch']
  #allocation2 [shape = 'bf16[4,128,8]{2,1,0:T(8,128)(2,1)}', space=vmem, size = 0x20000, scoped, tag = 'scratch operand']
  #allocation3 [shape = 'bf16[4,128,8]{2,1,0:T(8,128)(2,1)}', space=vmem, size = 0x20000, scoped, tag = 'scratch operand']
  #allocation4 [shape = 'f32[16,32]{1,0:T(8,128)}', space=vmem, size = 0x2000, scoped, tag = 'scratch operand']
  #allocation5 [shape = 'f32[16,32]{1,0:T(8,128)}', space=vmem, size = 0x2000, scoped, tag = 'scratch operand']
  %s0 = inlined_call_operand.vmem [shape: bf16[2,16,32], index: 0, kind: input, shape index: {}]
  %s1 = inlined_call_operand.vmem [shape: bf16[2,128,32], index: 1, kind: input, shape index: {}]
  %s2 = inlined_call_operand.vmem [shape: bf16[2,128,32], index: 2, kind: input, shape index: {}]
  %s3 = inlined_call_operand.vmem [shape: bf16[32,32], index: 3, kind: input, shape index: {}]
  %s4 = inlined_call_operand.vmem [shape: f32[1,32], index: 4, kind: input, shape index: {}]
  %s5 = inlined_call_operand.vmem [shape: bf16[4,32,8], index: 5, kind: input, shape index: {}]
  %s6 = inlined_call_operand.vmem [shape: f32[4,1,8], index: 6, kind: input, shape index: {}]
  %s7 = inlined_call_operand.vmem [shape: bf16[4,32,8], index: 7, kind: input, shape index: {}]
  %s8 = inlined_call_operand.vmem [shape: f32[4,1,8], index: 8, kind: input, shape index: {}]
  %s9 = inlined_call_operand.vmem [shape: bf16[32,4], index: 9, kind: input, shape index: {}]
  %s10 = inlined_call_operand.vmem [shape: f32[1,4], index: 10, kind: input, shape index: {}]
  %s11 = inlined_call_operand.vmem [shape: bf16[32,32], index: 11, kind: input, shape index: {}]
  %s12 = inlined_call_operand.vmem [shape: f32[1,32], index: 12, kind: input, shape index: {}]
  %s13 = inlined_call_operand.hbm [shape: f32[2,16,32], index: 13, kind: output, shape index: {0}]
  %s14 = inlined_call_operand.hbm [shape: f32[2,4,16,128], index: 14, kind: output, shape index: {1}]
  %s15 = inlined_call_operand.hbm [shape: f32[2,4,16,128], index: 15, kind: output, shape index: {2}]
  %s16 = inlined_call_operand.vmem [shape: f32[2,16,4], index: 16, kind: output, shape index: {3}]
  %17 = xla_tuple %s13, %s14, %s15, %s16
  %s18 = sld [smem:[#allocation0]]
  $region113: #{tpu_custom_call.1} parent=0
    _
  %s20 = ssub.s32 1, %s18
  %s21 = scalar_select 0, %s20, %s18
  $region1: #{tpu_custom_call.1} parent=0
    #allocation6 [shape = 'u8[16384]{0}', space=vmem, size = 0x4000, scoped, tag = 'output window, operand 0']
    #allocation7 [shape = 's32[2]{0}', space=sflag, size = 0x8, scoped, tag = 'scoped memory for tpu_custom_call.1']
    #allocation8 [shape = 'u8[65536]{0}', space=vmem, size = 0x10000, scoped, tag = 'output window, operand 1']
    #allocation9 [shape = 's32[2]{0}', space=sflag, size = 0x8, scoped, tag = 'scoped memory for tpu_custom_call.1']
    #allocation10 [shape = 'u8[65536]{0}', space=vmem, size = 0x10000, scoped, tag = 'output window, operand 2']
    %22 = vsyncpa [#allocation7], 0
    %s23 = scalar_lea.sflag [#allocation7], 1
    %24 = vsyncpa %s23, 0
    %25 = vsyncpa [#allocation9], 0
    %s26 = scalar_lea.sflag [#allocation9], 1
    %27 = vsyncpa %s26, 0
    loop: start=0, step=1, limit=4
    $region2: #{tpu_custom_call.1} parent=1 // loop_pre_header
      _
    $region3: #{tpu_custom_call.1} parent=1 // loop_header
      %s29 = sphi 0, %s33
      %p30 = scmp.ge.s32.totalorder %s29, 4
      %s36 = sphi 0, %s48
      %s37 = sphi 0, %s44
      %s38 = sphi 0, %s36
      %s39 = sphi 0, %s37
      %s40 = sphi 0, %s38
      %s41 = sphi 0, %s39
      %s53 = sphi 0, %s55
      %s56 = sphi 0, %s53
      %s57 = sphi 0, %s56
      %s73 = sphi 0, %s57
      %s79 = sphi 0, %s81
      %s82 = sphi 0, %s79
      %s83 = sphi 0, %s82
      %s99 = sphi 0, %s83
      %s105 = sphi 0, %s107
      %s108 = sphi 0, %s105
      %s109 = sphi 0, %s108
      %s125 = sphi 0, %s109
      %s129 = sphi 0, %s129
      %s131 = sphi 0, %s129
      %s132 = sphi 0, %s131
      %s146 = sphi 0, %s132
      %s150 = sphi 0, %s150
      %s152 = sphi 0, %s150
      %s153 = sphi 0, %s152
      %s167 = sphi 0, %s153
      %s171 = sphi 0, %s171
      %s173 = sphi 0, %s171
      %s174 = sphi 0, %s173
      %s188 = sphi 0, %s174
      %s192 = sphi 0, %s192
      %s194 = sphi 0, %s192
      %s195 = sphi 0, %s194
      %s209 = sphi 0, %s195
      %s213 = sphi 0, %s213
      %s215 = sphi 0, %s213
      %s216 = sphi 0, %s215
      %s230 = sphi 0, %s216
      %s234 = sphi 0, %s234
      %s236 = sphi 0, %s234
      %s237 = sphi 0, %s236
      %s251 = sphi 0, %s237
      %s255 = sphi 0, %s255
      %s257 = sphi 0, %s255
      %s258 = sphi 0, %s257
      %s272 = sphi 0, %s258
      %s276 = sphi 0, %s276
      %s278 = sphi 0, %s276
      %s279 = sphi 0, %s278
      %s293 = sphi 0, %s279
      %s297 = sphi 0, %s297
      %s299 = sphi 0, %s297
      %s300 = sphi 0, %s299
      %s314 = sphi 0, %s300
      %s318 = sphi 0, %s318
      %s320 = sphi 0, %s318
      %s321 = sphi 0, %s320
      %s335 = sphi 0, %s321
      %s343 = sphi 0, %s345
      %s346 = sphi 0, %s343
      %s347 = sphi 0, %s346
      %s363 = sphi 0, %s347
      %s371 = sphi 0, %s373
      %s374 = sphi 0, %s371
      %s375 = sphi 0, %s374
      %s391 = sphi 0, %s375
      %s399 = sphi 0, %s401
      %s402 = sphi 0, %s399
      %s403 = sphi 0, %s402
      %s419 = sphi 0, %s403
      %s427 = sphi 0, %s429
      %s430 = sphi 0, %s427
      %s431 = sphi 0, %s430
      %s447 = sphi 0, %s431
    $region4: #{tpu_custom_call.1} parent=1 // loop_header_branch
      %32 = sbr.rel (%p30) target = $region8
    $region5: #{tpu_custom_call.1} parent=1 // loop_body
      %s34 = ssub.s32 %s29, 1
      %s35 = ssub.s32 %s29, 2
      %s42 = sadd.s32 1, %s37
      %p43 = scmp.ge.s32.totalorder %s42, 1
      %s44 = scalar_select %p43, 0, %s42
      %s45 = sadd.s32 1, %s36
      %s46 = scalar_select %p43, %s45, %s36
      %p47 = scmp.ge.s32.totalorder %s46, 2
      %s48 = scalar_select %p47, 0, %s46
      %s49 = ssub.s32 %s36, %s48
      %s50 = ssub.s32 %s37, %s44
      %s51 = sor.u32 %s49, %s50
      %p52 = scmp.eq.s32.totalorder %s51, 0
      %s54 = sadd.s32 %s53, 1
      %s55 = scalar_select %p52, %s53, %s54
      %p58 = pneg %p52
      %p59 = scmp.eq.s32.totalorder %s29, 1
      %p60 = por %p58, %p59
      %p61 = scmp.ne.s32.totalorder %s53, %s56
      %p62 = scmp.eq.s32.totalorder %s29, 0
      %p63 = por %p61, %p62
      %p64 = scmp.ne.s32.totalorder %s53, %s56
      %p65 = scmp.eq.s32.totalorder %s34, 1
      %p66 = por %p64, %p65
      %p67 = scmp.ne.s32.totalorder %s56, %s57
      %p68 = scmp.eq.s32.totalorder %s34, 0
      %p69 = por %p67, %p68
      %p70 = scmp.ne.s32.totalorder %s56, %s57
      %p71 = scmp.eq.s32.totalorder %s35, 1
      %p72 = por %p70, %p71
      %p74 = scmp.ne.s32.totalorder %s57, %s73
      %p75 = scmp.eq.s32.totalorder %s35, 0
      %p76 = por %p74, %p75
      %s77 = ssub.s32 %s36, %s48
      %p78 = scmp.eq.s32.totalorder %s77, 0
      %s80 = sadd.s32 %s79, 1
      %s81 = scalar_select %p78, %s79, %s80
      %p84 = pneg %p78
      %p85 = scmp.eq.s32.totalorder %s29, 1
      %p86 = por %p84, %p85
      %p87 = scmp.ne.s32.totalorder %s79, %s82
      %p88 = scmp.eq.s32.totalorder %s29, 0
      %p89 = por %p87, %p88
      %p90 = scmp.ne.s32.totalorder %s79, %s82
      %p91 = scmp.eq.s32.totalorder %s34, 1
      %p92 = por %p90, %p91
      %p93 = scmp.ne.s32.totalorder %s82, %s83
      %p94 = scmp.eq.s32.totalorder %s34, 0
      %p95 = por %p93, %p94
      %p96 = scmp.ne.s32.totalorder %s82, %s83
      %p97 = scmp.eq.s32.totalorder %s35, 1
      %p98 = por %p96, %p97
      %p100 = scmp.ne.s32.totalorder %s83, %s99
      %p101 = scmp.eq.s32.totalorder %s35, 0
      %p102 = por %p100, %p101
      %s103 = ssub.s32 %s36, %s48
      %p104 = scmp.eq.s32.totalorder %s103, 0
      %s106 = sadd.s32 %s105, 1
      %s107 = scalar_select %p104, %s105, %s106
      %p110 = pneg %p104
      %p111 = scmp.eq.s32.totalorder %s29, 1
      %p112 = por %p110, %p111
      %p113 = scmp.ne.s32.totalorder %s105, %s108
      %p114 = scmp.eq.s32.totalorder %s29, 0
      %p115 = por %p113, %p114
      %p116 = scmp.ne.s32.totalorder %s105, %s108
      %p117 = scmp.eq.s32.totalorder %s34, 1
      %p118 = por %p116, %p117
      %p119 = scmp.ne.s32.totalorder %s108, %s109
      %p120 = scmp.eq.s32.totalorder %s34, 0
      %p121 = por %p119, %p120
      %p122 = scmp.ne.s32.totalorder %s108, %s109
      %p123 = scmp.eq.s32.totalorder %s35, 1
      %p124 = por %p122, %p123
      %p126 = scmp.ne.s32.totalorder %s109, %s125
      %p127 = scmp.eq.s32.totalorder %s35, 0
      %p128 = por %p126, %p127
      %s130 = sadd.s32 %s129, 1
      %p133 = scmp.eq.s32.totalorder %s29, 1
      %p134 = scmp.ne.s32.totalorder %s129, %s131
      %p135 = scmp.eq.s32.totalorder %s29, 0
      %p136 = por %p134, %p135
      %p137 = scmp.ne.s32.totalorder %s129, %s131
      %p138 = scmp.eq.s32.totalorder %s34, 1
      %p139 = por %p137, %p138
      %p140 = scmp.ne.s32.totalorder %s131, %s132
      %p141 = scmp.eq.s32.totalorder %s34, 0
      %p142 = por %p140, %p141
      %p143 = scmp.ne.s32.totalorder %s131, %s132
      %p144 = scmp.eq.s32.totalorder %s35, 1
      %p145 = por %p143, %p144
      %p147 = scmp.ne.s32.totalorder %s132, %s146
      %p148 = scmp.eq.s32.totalorder %s35, 0
      %p149 = por %p147, %p148
      %s151 = sadd.s32 %s150, 1
      %p154 = scmp.eq.s32.totalorder %s29, 1
      %p155 = scmp.ne.s32.totalorder %s150, %s152
      %p156 = scmp.eq.s32.totalorder %s29, 0
      %p157 = por %p155, %p156
      %p158 = scmp.ne.s32.totalorder %s150, %s152
      %p159 = scmp.eq.s32.totalorder %s34, 1
      %p160 = por %p158, %p159
      %p161 = scmp.ne.s32.totalorder %s152, %s153
      %p162 = scmp.eq.s32.totalorder %s34, 0
      %p163 = por %p161, %p162
      %p164 = scmp.ne.s32.totalorder %s152, %s153
      %p165 = scmp.eq.s32.totalorder %s35, 1
      %p166 = por %p164, %p165
      %p168 = scmp.ne.s32.totalorder %s153, %s167
      %p169 = scmp.eq.s32.totalorder %s35, 0
      %p170 = por %p168, %p169
      %s172 = sadd.s32 %s171, 1
      %p175 = scmp.eq.s32.totalorder %s29, 1
      %p176 = scmp.ne.s32.totalorder %s171, %s173
      %p177 = scmp.eq.s32.totalorder %s29, 0
      %p178 = por %p176, %p177
      %p179 = scmp.ne.s32.totalorder %s171, %s173
      %p180 = scmp.eq.s32.totalorder %s34, 1
      %p181 = por %p179, %p180
      %p182 = scmp.ne.s32.totalorder %s173, %s174
      %p183 = scmp.eq.s32.totalorder %s34, 0
      %p184 = por %p182, %p183
      %p185 = scmp.ne.s32.totalorder %s173, %s174
      %p186 = scmp.eq.s32.totalorder %s35, 1
      %p187 = por %p185, %p186
      %p189 = scmp.ne.s32.totalorder %s174, %s188
      %p190 = scmp.eq.s32.totalorder %s35, 0
      %p191 = por %p189, %p190
      %s193 = sadd.s32 %s192, 1
      %p196 = scmp.eq.s32.totalorder %s29, 1
      %p197 = scmp.ne.s32.totalorder %s192, %s194
      %p198 = scmp.eq.s32.totalorder %s29, 0
      %p199 = por %p197, %p198
      %p200 = scmp.ne.s32.totalorder %s192, %s194
      %p201 = scmp.eq.s32.totalorder %s34, 1
      %p202 = por %p200, %p201
      %p203 = scmp.ne.s32.totalorder %s194, %s195
      %p204 = scmp.eq.s32.totalorder %s34, 0
      %p205 = por %p203, %p204
      %p206 = scmp.ne.s32.totalorder %s194, %s195
      %p207 = scmp.eq.s32.totalorder %s35, 1
      %p208 = por %p206, %p207
      %p210 = scmp.ne.s32.totalorder %s195, %s209
      %p211 = scmp.eq.s32.totalorder %s35, 0
      %p212 = por %p210, %p211
      %s214 = sadd.s32 %s213, 1
      %p217 = scmp.eq.s32.totalorder %s29, 1
      %p218 = scmp.ne.s32.totalorder %s213, %s215
      %p219 = scmp.eq.s32.totalorder %s29, 0
      %p220 = por %p218, %p219
      %p221 = scmp.ne.s32.totalorder %s213, %s215
      %p222 = scmp.eq.s32.totalorder %s34, 1
      %p223 = por %p221, %p222
      %p224 = scmp.ne.s32.totalorder %s215, %s216
      %p225 = scmp.eq.s32.totalorder %s34, 0
      %p226 = por %p224, %p225
      %p227 = scmp.ne.s32.totalorder %s215, %s216
      %p228 = scmp.eq.s32.totalorder %s35, 1
      %p229 = por %p227, %p228
      %p231 = scmp.ne.s32.totalorder %s216, %s230
      %p232 = scmp.eq.s32.totalorder %s35, 0
      %p233 = por %p231, %p232
      %s235 = sadd.s32 %s234, 1
      %p238 = scmp.eq.s32.totalorder %s29, 1
      %p239 = scmp.ne.s32.totalorder %s234, %s236
      %p240 = scmp.eq.s32.totalorder %s29, 0
      %p241 = por %p239, %p240
      %p242 = scmp.ne.s32.totalorder %s234, %s236
      %p243 = scmp.eq.s32.totalorder %s34, 1
      %p244 = por %p242, %p243
      %p245 = scmp.ne.s32.totalorder %s236, %s237
      %p246 = scmp.eq.s32.totalorder %s34, 0
      %p247 = por %p245, %p246
      %p248 = scmp.ne.s32.totalorder %s236, %s237
      %p249 = scmp.eq.s32.totalorder %s35, 1
      %p250 = por %p248, %p249
      %p252 = scmp.ne.s32.totalorder %s237, %s251
      %p253 = scmp.eq.s32.totalorder %s35, 0
      %p254 = por %p252, %p253
      %s256 = sadd.s32 %s255, 1
      %p259 = scmp.eq.s32.totalorder %s29, 1
      %p260 = scmp.ne.s32.totalorder %s255, %s257
      %p261 = scmp.eq.s32.totalorder %s29, 0
      %p262 = por %p260, %p261
      %p263 = scmp.ne.s32.totalorder %s255, %s257
      %p264 = scmp.eq.s32.totalorder %s34, 1
      %p265 = por %p263, %p264
      %p266 = scmp.ne.s32.totalorder %s257, %s258
      %p267 = scmp.eq.s32.totalorder %s34, 0
      %p268 = por %p266, %p267
      %p269 = scmp.ne.s32.totalorder %s257, %s258
      %p270 = scmp.eq.s32.totalorder %s35, 1
      %p271 = por %p269, %p270
      %p273 = scmp.ne.s32.totalorder %s258, %s272
      %p274 = scmp.eq.s32.totalorder %s35, 0
      %p275 = por %p273, %p274
      %s277 = sadd.s32 %s276, 1
      %p280 = scmp.eq.s32.totalorder %s29, 1
      %p281 = scmp.ne.s32.totalorder %s276, %s278
      %p282 = scmp.eq.s32.totalorder %s29, 0
      %p283 = por %p281, %p282
      %p284 = scmp.ne.s32.totalorder %s276, %s278
      %p285 = scmp.eq.s32.totalorder %s34, 1
      %p286 = por %p284, %p285
      %p287 = scmp.ne.s32.totalorder %s278, %s279
      %p288 = scmp.eq.s32.totalorder %s34, 0
      %p289 = por %p287, %p288
      %p290 = scmp.ne.s32.totalorder %s278, %s279
      %p291 = scmp.eq.s32.totalorder %s35, 1
      %p292 = por %p290, %p291
      %p294 = scmp.ne.s32.totalorder %s279, %s293
      %p295 = scmp.eq.s32.totalorder %s35, 0
      %p296 = por %p294, %p295
      %s298 = sadd.s32 %s297, 1
      %p301 = scmp.eq.s32.totalorder %s29, 1
      %p302 = scmp.ne.s32.totalorder %s297, %s299
      %p303 = scmp.eq.s32.totalorder %s29, 0
      %p304 = por %p302, %p303
      %p305 = scmp.ne.s32.totalorder %s297, %s299
      %p306 = scmp.eq.s32.totalorder %s34, 1
      %p307 = por %p305, %p306
      %p308 = scmp.ne.s32.totalorder %s299, %s300
      %p309 = scmp.eq.s32.totalorder %s34, 0
      %p310 = por %p308, %p309
      %p311 = scmp.ne.s32.totalorder %s299, %s300
      %p312 = scmp.eq.s32.totalorder %s35, 1
      %p313 = por %p311, %p312
      %p315 = scmp.ne.s32.totalorder %s300, %s314
      %p316 = scmp.eq.s32.totalorder %s35, 0
      %p317 = por %p315, %p316
      %s319 = sadd.s32 %s318, 1
      %p322 = scmp.eq.s32.totalorder %s29, 1
      %p323 = scmp.ne.s32.totalorder %s318, %s320
      %p324 = scmp.eq.s32.totalorder %s29, 0
      %p325 = por %p323, %p324
      %p326 = scmp.ne.s32.totalorder %s318, %s320
      %p327 = scmp.eq.s32.totalorder %s34, 1
      %p328 = por %p326, %p327
      %p329 = scmp.ne.s32.totalorder %s320, %s321
      %p330 = scmp.eq.s32.totalorder %s34, 0
      %p331 = por %p329, %p330
      %p332 = scmp.ne.s32.totalorder %s320, %s321
      %p333 = scmp.eq.s32.totalorder %s35, 1
      %p334 = por %p332, %p333
      %p336 = scmp.ne.s32.totalorder %s321, %s335
      %p337 = scmp.eq.s32.totalorder %s35, 0
      %p338 = por %p336, %p337
      %s339 = ssub.s32 %s36, %s48
      %s340 = ssub.s32 %s37, %s44
      %s341 = sor.u32 %s339, %s340
      %p342 = scmp.eq.s32.totalorder %s341, 0
      %s344 = sadd.s32 %s343, 1
      %s345 = scalar_select %p342, %s343, %s344
      %p348 = pneg %p342
      %p349 = scmp.eq.s32.totalorder %s29, 1
      %p350 = por %p348, %p349
      %p351 = scmp.ne.s32.totalorder %s343, %s346
      %p352 = scmp.eq.s32.totalorder %s29, 0
      %p353 = por %p351, %p352
      %p354 = scmp.ne.s32.totalorder %s343, %s346
      %p355 = scmp.eq.s32.totalorder %s34, 1
      %p356 = por %p354, %p355
      %p357 = scmp.ne.s32.totalorder %s346, %s347
      %p358 = scmp.eq.s32.totalorder %s34, 0
      %p359 = por %p357, %p358
      %p360 = scmp.ne.s32.totalorder %s346, %s347
      %p361 = scmp.eq.s32.totalorder %s35, 1
      %p362 = por %p360, %p361
      %p364 = scmp.ne.s32.totalorder %s347, %s363
      %p365 = scmp.eq.s32.totalorder %s35, 0
      %p366 = por %p364, %p365
      %s367 = ssub.s32 %s36, %s48
      %s368 = ssub.s32 %s37, %s44
      %s369 = sor.u32 %s367, %s368
      %p370 = scmp.eq.s32.totalorder %s369, 0
      %s372 = sadd.s32 %s371, 1
      %s373 = scalar_select %p370, %s371, %s372
      %p376 = pneg %p370
      %p377 = scmp.eq.s32.totalorder %s29, 1
      %p378 = por %p376, %p377
      %p379 = scmp.ne.s32.totalorder %s371, %s374
      %p380 = scmp.eq.s32.totalorder %s29, 0
      %p381 = por %p379, %p380
      %p382 = scmp.ne.s32.totalorder %s371, %s374
      %p383 = scmp.eq.s32.totalorder %s34, 1
      %p384 = por %p382, %p383
      %p385 = scmp.ne.s32.totalorder %s374, %s375
      %p386 = scmp.eq.s32.totalorder %s34, 0
      %p387 = por %p385, %p386
      %p388 = scmp.ne.s32.totalorder %s374, %s375
      %p389 = scmp.eq.s32.totalorder %s35, 1
      %p390 = por %p388, %p389
      %p392 = scmp.ne.s32.totalorder %s375, %s391
      %p393 = scmp.eq.s32.totalorder %s35, 0
      %p394 = por %p392, %p393
      %s395 = ssub.s32 %s36, %s48
      %s396 = ssub.s32 %s37, %s44
      %s397 = sor.u32 %s395, %s396
      %p398 = scmp.eq.s32.totalorder %s397, 0
      %s400 = sadd.s32 %s399, 1
      %s401 = scalar_select %p398, %s399, %s400
      %p404 = pneg %p398
      %p405 = scmp.eq.s32.totalorder %s29, 1
      %p406 = por %p404, %p405
      %p407 = scmp.ne.s32.totalorder %s399, %s402
      %p408 = scmp.eq.s32.totalorder %s29, 0
      %p409 = por %p407, %p408
      %p410 = scmp.ne.s32.totalorder %s399, %s402
      %p411 = scmp.eq.s32.totalorder %s34, 1
      %p412 = por %p410, %p411
      %p413 = scmp.ne.s32.totalorder %s402, %s403
      %p414 = scmp.eq.s32.totalorder %s34, 0
      %p415 = por %p413, %p414
      %p416 = scmp.ne.s32.totalorder %s402, %s403
      %p417 = scmp.eq.s32.totalorder %s35, 1
      %p418 = por %p416, %p417
      %p420 = scmp.ne.s32.totalorder %s403, %s419
      %p421 = scmp.eq.s32.totalorder %s35, 0
      %p422 = por %p420, %p421
      %s423 = ssub.s32 %s36, %s48
      %s424 = ssub.s32 %s37, %s44
      %s425 = sor.u32 %s423, %s424
      %p426 = scmp.eq.s32.totalorder %s425, 0
      %s428 = sadd.s32 %s427, 1
      %s429 = scalar_select %p426, %s427, %s428
      %p432 = pneg %p426
      %p433 = scmp.eq.s32.totalorder %s29, 1
      %p434 = por %p432, %p433
      %p435 = scmp.ne.s32.totalorder %s427, %s430
      %p436 = scmp.eq.s32.totalorder %s29, 0
      %p437 = por %p435, %p436
      %p438 = scmp.ne.s32.totalorder %s427, %s430
      %p439 = scmp.eq.s32.totalorder %s34, 1
      %p440 = por %p438, %p439
      %p441 = scmp.ne.s32.totalorder %s430, %s431
      %p442 = scmp.eq.s32.totalorder %s34, 0
      %p443 = por %p441, %p442
      %p444 = scmp.ne.s32.totalorder %s430, %s431
      %p445 = scmp.eq.s32.totalorder %s35, 1
      %p446 = por %p444, %p445
      %p448 = scmp.ne.s32.totalorder %s431, %s447
      %p449 = scmp.eq.s32.totalorder %s35, 0
      %p450 = por %p448, %p449
      %p451 = scmp.le.s32.totalorder 1, %s29
      %p452 = scmp.lt.s32.totalorder %s29, 3
      %p453 = pnand %p451, %p452
      %p454 = pneg %p453
      // Predicated region
      $region9: #{tpu_custom_call.1} parent=5 // pred_check
        _
      $region10: #{tpu_custom_call.1} parent=5 // pred_check_branch
        %456 = sbr.rel (%p453) target = $region12
      $region11: #{tpu_custom_call.1} parent=5 // pred_region
        %s457 = ssub.s32 %s29, 1
        // Predicated region
        $region13: #{tpu_custom_call.1} parent=11 // pred_check
          %p458 = pneg %p142
        $region14: #{tpu_custom_call.1} parent=11 // pred_check_branch
          %460 = sbr.rel (%p458) target = $region16
        $region15: #{tpu_custom_call.1} parent=11 // pred_region
          _
        $region16: #{tpu_custom_call.1} parent=11 // pred_fallthru
          _
        // Predicated region
        $region17: #{tpu_custom_call.1} parent=11 // pred_check
          %p461 = pneg %p163
        $region18: #{tpu_custom_call.1} parent=11 // pred_check_branch
          %463 = sbr.rel (%p461) target = $region20
        $region19: #{tpu_custom_call.1} parent=11 // pred_region
          _
        $region20: #{tpu_custom_call.1} parent=11 // pred_fallthru
          _
        // Predicated region
        $region21: #{tpu_custom_call.1} parent=11 // pred_check
          %p464 = pneg %p184
        $region22: #{tpu_custom_call.1} parent=11 // pred_check_branch
          %466 = sbr.rel (%p464) target = $region24
        $region23: #{tpu_custom_call.1} parent=11 // pred_region
          _
        $region24: #{tpu_custom_call.1} parent=11 // pred_fallthru
          _
        // Predicated region
        $region25: #{tpu_custom_call.1} parent=11 // pred_check
          %p467 = pneg %p205
        $region26: #{tpu_custom_call.1} parent=11 // pred_check_branch
          %469 = sbr.rel (%p467) target = $region28
        $region27: #{tpu_custom_call.1} parent=11 // pred_region
          _
        $region28: #{tpu_custom_call.1} parent=11 // pred_fallthru
          _
        // Predicated region
        $region29: #{tpu_custom_call.1} parent=11 // pred_check
          %p470 = pneg %p226
        $region30: #{tpu_custom_call.1} parent=11 // pred_check_branch
          %472 = sbr.rel (%p470) target = $region32
        $region31: #{tpu_custom_call.1} parent=11 // pred_region
          _
        $region32: #{tpu_custom_call.1} parent=11 // pred_fallthru
          _
        // Predicated region
        $region33: #{tpu_custom_call.1} parent=11 // pred_check
          %p473 = pneg %p247
        $region34: #{tpu_custom_call.1} parent=11 // pred_check_branch
          %475 = sbr.rel (%p473) target = $region36
        $region35: #{tpu_custom_call.1} parent=11 // pred_region
          _
        $region36: #{tpu_custom_call.1} parent=11 // pred_fallthru
          _
        // Predicated region
        $region37: #{tpu_custom_call.1} parent=11 // pred_check
          %p476 = pneg %p268
        $region38: #{tpu_custom_call.1} parent=11 // pred_check_branch
          %478 = sbr.rel (%p476) target = $region40
        $region39: #{tpu_custom_call.1} parent=11 // pred_region
          _
        $region40: #{tpu_custom_call.1} parent=11 // pred_fallthru
          _
        // Predicated region
        $region41: #{tpu_custom_call.1} parent=11 // pred_check
          %p479 = pneg %p289
        $region42: #{tpu_custom_call.1} parent=11 // pred_check_branch
          %481 = sbr.rel (%p479) target = $region44
        $region43: #{tpu_custom_call.1} parent=11 // pred_region
          _
        $region44: #{tpu_custom_call.1} parent=11 // pred_fallthru
          _
        // Predicated region
        $region45: #{tpu_custom_call.1} parent=11 // pred_check
          %p482 = pneg %p310
        $region46: #{tpu_custom_call.1} parent=11 // pred_check_branch
          %484 = sbr.rel (%p482) target = $region48
        $region47: #{tpu_custom_call.1} parent=11 // pred_region
          _
        $region48: #{tpu_custom_call.1} parent=11 // pred_fallthru
          _
        // Predicated region
        $region49: #{tpu_custom_call.1} parent=11 // pred_check
          %p485 = pneg %p331
        $region50: #{tpu_custom_call.1} parent=11 // pred_check_branch
          %487 = sbr.rel (%p485) target = $region52
        $region51: #{tpu_custom_call.1} parent=11 // pred_region
          _
        $region52: #{tpu_custom_call.1} parent=11 // pred_fallthru
          _
      $region12: #{tpu_custom_call.1} parent=5 // pred_fallthru
        _
      %p488 = scmp.lt.s32.totalorder %s29, 2
      // Predicated region
      $region53: #{tpu_custom_call.1} parent=5 // pred_check
        %p489 = pneg %p488
      $region54: #{tpu_custom_call.1} parent=5 // pred_check_branch
        %491 = sbr.rel (%p489) target = $region56
      $region55: #{tpu_custom_call.1} parent=5 // pred_region
        // Predicated region
        $region57: #{tpu_custom_call.1} parent=55 // pred_check
          %p492 = pneg %p63
        $region58: #{tpu_custom_call.1} parent=55 // pred_check_branch
          %494 = sbr.rel (%p492) target = $region60
        $region59: #{tpu_custom_call.1} parent=55 // pred_region
          %s495 = smul.u32 2, %s37
          %p496 = scmp.lt.s32.totalorder %s36, 1
          %s497 = scalar_select %p496, %s36, 1
          %p498 = scmp.lt.s32.totalorder %s495, 1
          %s499 = scalar_select %p498, %s495, 1
          %s500 = smul.addr %s497, 2
          %s501 = sadd.s32 %s499, %s500
          %s502 = smul.addr %s501, 4
          %s503 = scalar_lea.vmem %s0, %s502
          %s504 = smul.u32 2, %s37
        $region60: #{tpu_custom_call.1} parent=55 // pred_fallthru
          _
        // Predicated region
        $region61: #{tpu_custom_call.1} parent=55 // pred_check
          %p505 = pneg %p89
        $region62: #{tpu_custom_call.1} parent=55 // pred_check_branch
          %507 = sbr.rel (%p505) target = $region64
        $region63: #{tpu_custom_call.1} parent=55 // pred_region
          %p508 = scmp.lt.s32.totalorder %s36, 1
          %s509 = scalar_select %p508, %s36, 1
          %s510 = smul.addr %s509, 16
          %s511 = smul.addr %s510, 4
          %s512 = scalar_lea.vmem %s1, %s511
        $region64: #{tpu_custom_call.1} parent=55 // pred_fallthru
          _
        // Predicated region
        $region65: #{tpu_custom_call.1} parent=55 // pred_check
          %p513 = pneg %p115
        $region66: #{tpu_custom_call.1} parent=55 // pred_check_branch
          %515 = sbr.rel (%p513) target = $region68
        $region67: #{tpu_custom_call.1} parent=55 // pred_region
          %p516 = scmp.lt.s32.totalorder %s36, 1
          %s517 = scalar_select %p516, %s36, 1
          %s518 = smul.addr %s517, 16
          %s519 = smul.addr %s518, 4
          %s520 = scalar_lea.vmem %s2, %s519
        $region68: #{tpu_custom_call.1} parent=55 // pred_fallthru
          _
      $region56: #{tpu_custom_call.1} parent=5 // pred_fallthru
        _
      %p521 = scmp.le.s32.totalorder 1, %s29
      %p522 = scmp.lt.s32.totalorder %s29, 3
      %p523 = pnand %p521, %p522
      %p524 = pneg %p523
      // Predicated region
      $region69: #{tpu_custom_call.1} parent=5 // pred_check
        _
      $region70: #{tpu_custom_call.1} parent=5 // pred_check_branch
        %526 = sbr.rel (%p523) target = $region72
      $region71: #{tpu_custom_call.1} parent=5 // pred_region
        %s527 = ssub.s32 %s29, 1
        %s528 = smul.u32 2, %s39
        %p529 = scmp.lt.s32.totalorder %s38, 1
        %s530 = scalar_select %p529, %s38, 1
        %p531 = scmp.lt.s32.totalorder %s528, 1
        %s532 = scalar_select %p531, %s528, 1
        %s533 = smul.addr %s530, 2
        %s534 = sadd.s32 %s532, %s533
        %s535 = smul.addr %s534, 4
        %s536 = scalar_lea.vmem %s0, %s535
        %p537 = pneg %p69
        %p538 = pneg %p66
        %p539 = scmp.lt.s32.totalorder %s38, 1
        %s540 = scalar_select %p539, %s38, 1
        %s541 = smul.addr %s540, 16
        %s542 = smul.addr %s541, 4
        %s543 = scalar_lea.vmem %s1, %s542
        %p544 = pneg %p95
        %p545 = pneg %p92
        %p546 = scmp.lt.s32.totalorder %s38, 1
        %s547 = scalar_select %p546, %s38, 1
        %s548 = smul.addr %s547, 16
        %s549 = smul.addr %s548, 4
        %s550 = scalar_lea.vmem %s2, %s549
        %p551 = pneg %p121
        %p552 = pneg %p118
        %p553 = pneg %p142
        %p554 = pneg %p139
        %p555 = pneg %p163
        %p556 = pneg %p160
        %p557 = pneg %p184
        %p558 = pneg %p181
        %p559 = pneg %p205
        %p560 = pneg %p202
        %p561 = pneg %p226
        %p562 = pneg %p223
        %p563 = pneg %p247
        %p564 = pneg %p244
        %p565 = pneg %p268
        %p566 = pneg %p265
        %p567 = pneg %p289
        %p568 = pneg %p286
        %p569 = pneg %p310
        %p570 = pneg %p307
        %p571 = pneg %p331
        %p572 = pneg %p328
        %p573 = pneg %p359
        %p574 = pneg %p356
        %s575 = sand.u32 %s346, 1
        %s576 = scalar_lea.sflag [#allocation7], %s575
        %s577 = sand.u32 %s346, 1
        %s578 = smul.addr %s577, 16
        %s579 = scalar_lea.vmem [#allocation6], %s578
        %p580 = pneg %p387
        %p581 = pneg %p384
        %s582 = sand.u32 %s34, 1
        %s583 = scalar_lea.sflag [#allocation9], %s582
        %s584 = sand.u32 %s374, 1
        %s585 = smul.addr %s584, 64
        %s586 = scalar_lea.vmem [#allocation8], %s585
        %p587 = pneg %p415
        %p588 = pneg %p412
        %s589 = sand.u32 %s34, 1
        %s590 = scalar_lea.sflag [#allocation9], %s589
        %s591 = sand.u32 %s402, 1
        %s592 = smul.addr %s591, 64
        %s593 = scalar_lea.vmem [#allocation10], %s592
        %p594 = pneg %p443
        %p595 = pneg %p440
        %s596 = smul.u32 2, %s39
        %p597 = scmp.lt.s32.totalorder %s38, 1
        %s598 = scalar_select %p597, %s38, 1
        %p599 = scmp.lt.s32.totalorder %s596, 1
        %s600 = scalar_select %p599, %s596, 1
        %s601 = smul.addr %s598, 2
        %s602 = sadd.s32 %s600, %s601
        %s603 = smul.addr %s602, 8
        %s604 = scalar_lea.vmem %s16, %s603
        %s605 = smul.u32 2, %s39
        %p606 = scmp.lt.s32.totalorder %s38, 1
        %s607 = scalar_select %p606, %s38, 1
        %p608 = scmp.lt.s32.totalorder %s605, 1
        %s609 = scalar_select %p608, %s605, 1
        %s610 = smul.addr %s607, 2
        %s611 = sadd.s32 %s609, %s610
        %s612 = smul.addr %s611, 4
        %s613 = scalar_lea.vmem %s0, %s612
        %s614 = smul.u32 2, %s39
        %p615 = scmp.lt.s32.totalorder %s38, 1
        %s616 = scalar_select %p615, %s38, 1
        %s617 = smul.addr %s616, 16
        %s618 = smul.addr %s617, 4
        %s619 = scalar_lea.vmem %s1, %s618
        %p620 = scmp.lt.s32.totalorder %s38, 1
        %s621 = scalar_select %p620, %s38, 1
        %s622 = smul.addr %s621, 16
        %s623 = smul.addr %s622, 4
        %s624 = scalar_lea.vmem %s2, %s623
        %s625 = smul.u32 2, %s39
        %s626 = smul.u32 2, %s39
        %s627 = smul.u32 2, %s39
        %s628 = smul.u32 2, %s39
        %p629 = scmp.lt.s32.totalorder %s38, 1
        %s630 = scalar_select %p629, %s38, 1
        %p631 = scmp.lt.s32.totalorder %s628, 1
        %s632 = scalar_select %p631, %s628, 1
        %s633 = smul.addr %s630, 2
        %s634 = sadd.s32 %s632, %s633
        %s635 = smul.addr %s634, 8
        %s636 = scalar_lea.vmem %s16, %s635
        %s637 = smul.u32 2, %s39
        %v639 = vld [vmem:[%s613] sm:$0xf]
        %v640 = vld [vmem:[%s613 + $0x4] sm:$0xf]
        %p641 = scmp.eq.s32.totalorder %s39, 0
        // Predicated region
        $region73: #{tpu_custom_call.1} parent=71 // pred_check
          %p642 = pneg %p641
        $region74: #{tpu_custom_call.1} parent=71 // pred_check_branch
          %644 = sbr.rel (%p642) target = $region76
        $region75: #{tpu_custom_call.1} parent=71 // pred_region
          %v645 = vld [vmem:[%s619] sm:$0xf]
          %v646 = vld [vmem:[%s619 + $0x4] sm:$0xf]
          %v647 = vld [vmem:[%s619 + $0x8] sm:$0xf]
          %v648 = vld [vmem:[%s619 + $0xc] sm:$0xf]
          %v649 = vld [vmem:[%s619 + $0x10] sm:$0xf]
          %v650 = vld [vmem:[%s619 + $0x14] sm:$0xf]
          %v651 = vld [vmem:[%s619 + $0x18] sm:$0xf]
          %v652 = vld [vmem:[%s619 + $0x1c] sm:$0xf]
          %v653 = vld [vmem:[%s619 + $0x20] sm:$0xf]
          %v654 = vld [vmem:[%s619 + $0x24] sm:$0xf]
          %v655 = vld [vmem:[%s619 + $0x28] sm:$0xf]
          %v656 = vld [vmem:[%s619 + $0x2c] sm:$0xf]
          %v657 = vld [vmem:[%s619 + $0x30] sm:$0xf]
          %v658 = vld [vmem:[%s619 + $0x34] sm:$0xf]
          %v659 = vld [vmem:[%s619 + $0x38] sm:$0xf]
          %v660 = vld [vmem:[%s619 + $0x3c] sm:$0xf]
          %v661 = vld [vmem:[%s624] sm:$0xf]
          %v662 = vld [vmem:[%s624 + $0x4] sm:$0xf]
          %v663 = vld [vmem:[%s624 + $0x8] sm:$0xf]
          %v664 = vld [vmem:[%s624 + $0xc] sm:$0xf]
          %v665 = vld [vmem:[%s624 + $0x10] sm:$0xf]
          %v666 = vld [vmem:[%s624 + $0x14] sm:$0xf]
          %v667 = vld [vmem:[%s624 + $0x18] sm:$0xf]
          %v668 = vld [vmem:[%s624 + $0x1c] sm:$0xf]
          %v669 = vld [vmem:[%s624 + $0x20] sm:$0xf]
          %v670 = vld [vmem:[%s624 + $0x24] sm:$0xf]
          %v671 = vld [vmem:[%s624 + $0x28] sm:$0xf]
          %v672 = vld [vmem:[%s624 + $0x2c] sm:$0xf]
          %v673 = vld [vmem:[%s624 + $0x30] sm:$0xf]
          %v674 = vld [vmem:[%s624 + $0x34] sm:$0xf]
          %v675 = vld [vmem:[%s624 + $0x38] sm:$0xf]
          %v676 = vld [vmem:[%s624 + $0x3c] sm:$0xf]
          %v677 = vld [vmem:[%s5] sm:$0xf]
          %v678 = vld [vmem:[%s5 + $0x4] sm:$0xf]
          %v679 = vld [vmem:[%s5 + $0x8] sm:$0xf]
          %v680 = vld [vmem:[%s5 + $0xc] sm:$0xf]
          %v681 = vld [vmem:[%s6] sm:$0x1]
          %v683 = vperm.slane %v681, 0
          %v701 = vunpack.c.l.b16 %v645
          %v702 = vunpack.c.l.b16 %v646
          %v703 = vunpack.c.l.b16 %v647
          %v704 = vunpack.c.l.b16 %v648
          %v705 = vunpack.c.l.b16 %v649
          %v706 = vunpack.c.l.b16 %v650
          %v707 = vunpack.c.l.b16 %v651
          %v708 = vunpack.c.l.b16 %v652
          %v709 = vunpack.c.l.b16 %v653
          %v710 = vunpack.c.l.b16 %v654
          %v711 = vunpack.c.l.b16 %v655
          %v712 = vunpack.c.l.b16 %v656
          %v713 = vunpack.c.l.b16 %v657
          %v714 = vunpack.c.l.b16 %v658
          %v715 = vunpack.c.l.b16 %v659
          %v716 = vunpack.c.l.b16 %v660
          %v717 = vpack.c.b16 %v702, %v701
          %v718 = vpack.c.b16 %v704, %v703
          %v719 = vpack.c.b16 %v706, %v705
          %v720 = vpack.c.b16 %v708, %v707
          %v721 = vpack.c.b16 %v710, %v709
          %v722 = vpack.c.b16 %v712, %v711
          %v723 = vpack.c.b16 %v714, %v713
          %v724 = vpack.c.b16 %v716, %v715
          %v729 = vunpack.c.l.b16 %v677
          %v730 = vunpack.c.l.b16 %v678
          %v731 = vunpack.c.l.b16 %v679
          %v732 = vunpack.c.l.b16 %v680
          %v733 = vpack.c.b16 %v730, %v729
          %v734 = vpack.c.b16 %v732, %v731
          %vm737 = vcmask 261120
          %v739 = vsel %vm737, %v717, 0
          %v742 = vsel %vm737, %v718, 0
          %v745 = vsel %vm737, %v719, 0
          %v748 = vsel %vm737, %v720, 0
          %v751 = vsel %vm737, %v721, 0
          %v754 = vsel %vm737, %v722, 0
          %v757 = vsel %vm737, %v723, 0
          %v760 = vsel %vm737, %v724, 0
          %762 = vmatpush.bf16.msra.mxu0 0
          %763 = vmatpush.bf16.msra.mxu0 0
          %764 = vmatpush.bf16.msra.mxu0 0
          %765 = vmatpush.bf16.msra.mxu0 0
          %766 = vmatpush.bf16.msra.mxu0 0
          %767 = vmatpush.bf16.msra.mxu0 0
          %768 = vmatpush.bf16.msra.mxu0 %v734
          %769 = vmatpush.bf16.msra.mxu0 %v733
          %770 = vmatmul.bf16.gmra.mxu0 %v739
          %v771 = vpop.f32.mrf.mxu0
          %v772 = vadd.f32 %v683, %v771
          %v773 = vpop.f32.mrf.mxu0
          %v774 = vadd.f32 %v683, %v773
          %775 = vmatmul.bf16.gmra.mxu0 %v742
          %v776 = vpop.f32.mrf.mxu0
          %v777 = vadd.f32 %v683, %v776
          %v778 = vpop.f32.mrf.mxu0
          %v779 = vadd.f32 %v683, %v778
          %780 = vmatmul.bf16.gmra.mxu0 %v745
          %v781 = vpop.f32.mrf.mxu0
          %v782 = vadd.f32 %v683, %v781
          %v783 = vpop.f32.mrf.mxu0
          %v784 = vadd.f32 %v683, %v783
          %785 = vmatmul.bf16.gmra.mxu0 %v748
          %v786 = vpop.f32.mrf.mxu0
          %v787 = vadd.f32 %v683, %v786
          %v788 = vpop.f32.mrf.mxu0
          %v789 = vadd.f32 %v683, %v788
          %790 = vmatmul.bf16.gmra.mxu0 %v751
          %v791 = vpop.f32.mrf.mxu0
          %v792 = vadd.f32 %v683, %v791
          %v793 = vpop.f32.mrf.mxu0
          %v794 = vadd.f32 %v683, %v793
          %795 = vmatmul.bf16.gmra.mxu0 %v754
          %v796 = vpop.f32.mrf.mxu0
          %v797 = vadd.f32 %v683, %v796
          %v798 = vpop.f32.mrf.mxu0
          %v799 = vadd.f32 %v683, %v798
          %800 = vmatmul.bf16.gmra.mxu0 %v757
          %v801 = vpop.f32.mrf.mxu0
          %v802 = vadd.f32 %v683, %v801
          %v803 = vpop.f32.mrf.mxu0
          %v804 = vadd.f32 %v683, %v803
          %805 = vmatmul.bf16.gmra.mxu0 %v760
          %v806 = vpop.f32.mrf.mxu0
          %v807 = vadd.f32 %v683, %v806
          %v808 = vpop.f32.mrf.mxu0
          %v809 = vadd.f32 %v683, %v808
          %810 = vdwg.mxu0
          %v811 = vld [vmem:[%s7] sm:$0xf]
          %v812 = vld [vmem:[%s7 + $0x4] sm:$0xf]
          %v813 = vld [vmem:[%s7 + $0x8] sm:$0xf]
          %v814 = vld [vmem:[%s7 + $0xc] sm:$0xf]
          %v815 = vld [vmem:[%s8] sm:$0x1]
          %v817 = vperm.slane %v815, 0
          %v835 = vunpack.c.l.b16 %v661
          %v836 = vunpack.c.l.b16 %v662
          %v837 = vunpack.c.l.b16 %v663
          %v838 = vunpack.c.l.b16 %v664
          %v839 = vunpack.c.l.b16 %v665
          %v840 = vunpack.c.l.b16 %v666
          %v841 = vunpack.c.l.b16 %v667
          %v842 = vunpack.c.l.b16 %v668
          %v843 = vunpack.c.l.b16 %v669
          %v844 = vunpack.c.l.b16 %v670
          %v845 = vunpack.c.l.b16 %v671
          %v846 = vunpack.c.l.b16 %v672
          %v847 = vunpack.c.l.b16 %v673
          %v848 = vunpack.c.l.b16 %v674
          %v849 = vunpack.c.l.b16 %v675
          %v850 = vunpack.c.l.b16 %v676
          %v851 = vpack.c.b16 %v836, %v835
          %v852 = vpack.c.b16 %v838, %v837
          %v853 = vpack.c.b16 %v840, %v839
          %v854 = vpack.c.b16 %v842, %v841
          %v855 = vpack.c.b16 %v844, %v843
          %v856 = vpack.c.b16 %v846, %v845
          %v857 = vpack.c.b16 %v848, %v847
          %v858 = vpack.c.b16 %v850, %v849
          %v863 = vunpack.c.l.b16 %v811
          %v864 = vunpack.c.l.b16 %v812
          %v865 = vunpack.c.l.b16 %v813
          %v866 = vunpack.c.l.b16 %v814
          %v867 = vpack.c.b16 %v864, %v863
          %v868 = vpack.c.b16 %v866, %v865
          %v872 = vsel %vm737, %v851, 0
          %v875 = vsel %vm737, %v852, 0
          %v878 = vsel %vm737, %v853, 0
          %v881 = vsel %vm737, %v854, 0
          %v884 = vsel %vm737, %v855, 0
          %v887 = vsel %vm737, %v856, 0
          %v890 = vsel %vm737, %v857, 0
          %v893 = vsel %vm737, %v858, 0
          %895 = vmatpush.bf16.msra.mxu0 0
          %896 = vmatpush.bf16.msra.mxu0 0
          %897 = vmatpush.bf16.msra.mxu0 0
          %898 = vmatpush.bf16.msra.mxu0 0
          %899 = vmatpush.bf16.msra.mxu0 0
          %900 = vmatpush.bf16.msra.mxu0 0
          %901 = vmatpush.bf16.msra.mxu0 %v868
          %902 = vmatpush.bf16.msra.mxu0 %v867
          %903 = vmatmul.bf16.gmra.mxu0 %v872
          %v904 = vpop.f32.mrf.mxu0
          %v905 = vadd.f32 %v817, %v904
          %v906 = vpop.f32.mrf.mxu0
          %v907 = vadd.f32 %v817, %v906
          %908 = vmatmul.bf16.gmra.mxu0 %v875
          %v909 = vpop.f32.mrf.mxu0
          %v910 = vadd.f32 %v817, %v909
          %v911 = vpop.f32.mrf.mxu0
          %v912 = vadd.f32 %v817, %v911
          %913 = vmatmul.bf16.gmra.mxu0 %v878
          %v914 = vpop.f32.mrf.mxu0
          %v915 = vadd.f32 %v817, %v914
          %v916 = vpop.f32.mrf.mxu0
          %v917 = vadd.f32 %v817, %v916
          %918 = vmatmul.bf16.gmra.mxu0 %v881
          %v919 = vpop.f32.mrf.mxu0
          %v920 = vadd.f32 %v817, %v919
          %v921 = vpop.f32.mrf.mxu0
          %v922 = vadd.f32 %v817, %v921
          %923 = vmatmul.bf16.gmra.mxu0 %v884
          %v924 = vpop.f32.mrf.mxu0
          %v925 = vadd.f32 %v817, %v924
          %v926 = vpop.f32.mrf.mxu0
          %v927 = vadd.f32 %v817, %v926
          %928 = vmatmul.bf16.gmra.mxu0 %v887
          %v929 = vpop.f32.mrf.mxu0
          %v930 = vadd.f32 %v817, %v929
          %v931 = vpop.f32.mrf.mxu0
          %v932 = vadd.f32 %v817, %v931
          %933 = vmatmul.bf16.gmra.mxu0 %v890
          %v934 = vpop.f32.mrf.mxu0
          %v935 = vadd.f32 %v817, %v934
          %v936 = vpop.f32.mrf.mxu0
          %v937 = vadd.f32 %v817, %v936
          %938 = vmatmul.bf16.gmra.mxu0 %v893
          %v939 = vpop.f32.mrf.mxu0
          %v940 = vadd.f32 %v817, %v939
          %v941 = vpop.f32.mrf.mxu0
          %v942 = vadd.f32 %v817, %v941
          %943 = vdwg.mxu0
          %v944 = vpack.c.bf16 %v772, %v772
          %v945 = vpack.c.bf16 %v774, %v774
          %v946 = vpack.c.bf16 %v777, %v777
          %v947 = vpack.c.bf16 %v779, %v779
          %v948 = vpack.c.bf16 %v782, %v782
          %v949 = vpack.c.bf16 %v784, %v784
          %v950 = vpack.c.bf16 %v787, %v787
          %v951 = vpack.c.bf16 %v789, %v789
          %v952 = vpack.c.bf16 %v792, %v792
          %v953 = vpack.c.bf16 %v794, %v794
          %v954 = vpack.c.bf16 %v797, %v797
          %v955 = vpack.c.bf16 %v799, %v799
          %v956 = vpack.c.bf16 %v802, %v802
          %v957 = vpack.c.bf16 %v804, %v804
          %v958 = vpack.c.bf16 %v807, %v807
          %v959 = vpack.c.bf16 %v809, %v809
          %vm960 = vcmask 60416
          %961 = vst.msk [vmem:[#allocation2] sm:$0xf] %vm960, %v944
          %962 = vst.msk [vmem:[#allocation2 + $0x4] sm:$0xf] %vm960, %v945
          %963 = vst.msk [vmem:[#allocation2 + $0x8] sm:$0xf] %vm960, %v946
          %964 = vst.msk [vmem:[#allocation2 + $0xc] sm:$0xf] %vm960, %v947
          %965 = vst.msk [vmem:[#allocation2 + $0x10] sm:$0xf] %vm960, %v948
          %966 = vst.msk [vmem:[#allocation2 + $0x14] sm:$0xf] %vm960, %v949
          %967 = vst.msk [vmem:[#allocation2 + $0x18] sm:$0xf] %vm960, %v950
          %968 = vst.msk [vmem:[#allocation2 + $0x1c] sm:$0xf] %vm960, %v951
          %969 = vst.msk [vmem:[#allocation2 + $0x20] sm:$0xf] %vm960, %v952
          %970 = vst.msk [vmem:[#allocation2 + $0x24] sm:$0xf] %vm960, %v953
          %971 = vst.msk [vmem:[#allocation2 + $0x28] sm:$0xf] %vm960, %v954
          %972 = vst.msk [vmem:[#allocation2 + $0x2c] sm:$0xf] %vm960, %v955
          %973 = vst.msk [vmem:[#allocation2 + $0x30] sm:$0xf] %vm960, %v956
          %974 = vst.msk [vmem:[#allocation2 + $0x34] sm:$0xf] %vm960, %v957
          %975 = vst.msk [vmem:[#allocation2 + $0x38] sm:$0xf] %vm960, %v958
          %976 = vst.msk [vmem:[#allocation2 + $0x3c] sm:$0xf] %vm960, %v959
          %v977 = vpack.c.bf16 %v905, %v905
          %v978 = vpack.c.bf16 %v907, %v907
          %v979 = vpack.c.bf16 %v910, %v910
          %v980 = vpack.c.bf16 %v912, %v912
          %v981 = vpack.c.bf16 %v915, %v915
          %v982 = vpack.c.bf16 %v917, %v917
          %v983 = vpack.c.bf16 %v920, %v920
          %v984 = vpack.c.bf16 %v922, %v922
          %v985 = vpack.c.bf16 %v925, %v925
          %v986 = vpack.c.bf16 %v927, %v927
          %v987 = vpack.c.bf16 %v930, %v930
          %v988 = vpack.c.bf16 %v932, %v932
          %v989 = vpack.c.bf16 %v935, %v935
          %v990 = vpack.c.bf16 %v937, %v937
          %v991 = vpack.c.bf16 %v940, %v940
          %v992 = vpack.c.bf16 %v942, %v942
          %993 = vst.msk [vmem:[#allocation3] sm:$0xf] %vm960, %v977
          %994 = vst.msk [vmem:[#allocation3 + $0x4] sm:$0xf] %vm960, %v978
          %995 = vst.msk [vmem:[#allocation3 + $0x8] sm:$0xf] %vm960, %v979
          %996 = vst.msk [vmem:[#allocation3 + $0xc] sm:$0xf] %vm960, %v980
          %997 = vst.msk [vmem:[#allocation3 + $0x10] sm:$0xf] %vm960, %v981
          %998 = vst.msk [vmem:[#allocation3 + $0x14] sm:$0xf] %vm960, %v982
          %999 = vst.msk [vmem:[#allocation3 + $0x18] sm:$0xf] %vm960, %v983
          %1000 = vst.msk [vmem:[#allocation3 + $0x1c] sm:$0xf] %vm960, %v984
          %1001 = vst.msk [vmem:[#allocation3 + $0x20] sm:$0xf] %vm960, %v985
          %1002 = vst.msk [vmem:[#allocation3 + $0x24] sm:$0xf] %vm960, %v986
          %1003 = vst.msk [vmem:[#allocation3 + $0x28] sm:$0xf] %vm960, %v987
          %1004 = vst.msk [vmem:[#allocation3 + $0x2c] sm:$0xf] %vm960, %v988
          %1005 = vst.msk [vmem:[#allocation3 + $0x30] sm:$0xf] %vm960, %v989
          %1006 = vst.msk [vmem:[#allocation3 + $0x34] sm:$0xf] %vm960, %v990
          %1007 = vst.msk [vmem:[#allocation3 + $0x38] sm:$0xf] %vm960, %v991
          %1008 = vst.msk [vmem:[#allocation3 + $0x3c] sm:$0xf] %vm960, %v992
          %s1009 = scalar_lea.vmem %s5, 16
          %v1010 = vld [vmem:[%s1009] sm:$0xf]
          %v1011 = vld [vmem:[%s1009 + $0x4] sm:$0xf]
          %v1012 = vld [vmem:[%s1009 + $0x8] sm:$0xf]
          %v1013 = vld [vmem:[%s1009 + $0xc] sm:$0xf]
          %s1014 = scalar_lea.vmem %s6, 1
          %v1015 = vld [vmem:[%s1014] sm:$0x1]
          %v1017 = vperm.slane %v1015, 0
          %v1023 = vunpack.c.l.b16 %v1010
          %v1024 = vunpack.c.l.b16 %v1011
          %v1025 = vunpack.c.l.b16 %v1012
          %v1026 = vunpack.c.l.b16 %v1013
          %v1027 = vpack.c.b16 %v1024, %v1023
          %v1028 = vpack.c.b16 %v1026, %v1025
          %1031 = vmatpush.bf16.msra.mxu0 0
          %1032 = vmatpush.bf16.msra.mxu0 0
          %1033 = vmatpush.bf16.msra.mxu0 0
          %1034 = vmatpush.bf16.msra.mxu0 0
          %1035 = vmatpush.bf16.msra.mxu0 0
          %1036 = vmatpush.bf16.msra.mxu0 0
          %1037 = vmatpush.bf16.msra.mxu0 %v1028
          %1038 = vmatpush.bf16.msra.mxu0 %v1027
          %1039 = vmatmul.bf16.gmra.mxu0 %v739
          %v1040 = vpop.f32.mrf.mxu0
          %v1041 = vadd.f32 %v1017, %v1040
          %v1042 = vpop.f32.mrf.mxu0
          %v1043 = vadd.f32 %v1017, %v1042
          %1044 = vmatmul.bf16.gmra.mxu0 %v742
          %v1045 = vpop.f32.mrf.mxu0
          %v1046 = vadd.f32 %v1017, %v1045
          %v1047 = vpop.f32.mrf.mxu0
          %v1048 = vadd.f32 %v1017, %v1047
          %1049 = vmatmul.bf16.gmra.mxu0 %v745
          %v1050 = vpop.f32.mrf.mxu0
          %v1051 = vadd.f32 %v1017, %v1050
          %v1052 = vpop.f32.mrf.mxu0
          %v1053 = vadd.f32 %v1017, %v1052
          %1054 = vmatmul.bf16.gmra.mxu0 %v748
          %v1055 = vpop.f32.mrf.mxu0
          %v1056 = vadd.f32 %v1017, %v1055
          %v1057 = vpop.f32.mrf.mxu0
          %v1058 = vadd.f32 %v1017, %v1057
          %1059 = vmatmul.bf16.gmra.mxu0 %v751
          %v1060 = vpop.f32.mrf.mxu0
          %v1061 = vadd.f32 %v1017, %v1060
          %v1062 = vpop.f32.mrf.mxu0
          %v1063 = vadd.f32 %v1017, %v1062
          %1064 = vmatmul.bf16.gmra.mxu0 %v754
          %v1065 = vpop.f32.mrf.mxu0
          %v1066 = vadd.f32 %v1017, %v1065
          %v1067 = vpop.f32.mrf.mxu0
          %v1068 = vadd.f32 %v1017, %v1067
          %1069 = vmatmul.bf16.gmra.mxu0 %v757
          %v1070 = vpop.f32.mrf.mxu0
          %v1071 = vadd.f32 %v1017, %v1070
          %v1072 = vpop.f32.mrf.mxu0
          %v1073 = vadd.f32 %v1017, %v1072
          %1074 = vmatmul.bf16.gmra.mxu0 %v760
          %v1075 = vpop.f32.mrf.mxu0
          %v1076 = vadd.f32 %v1017, %v1075
          %v1077 = vpop.f32.mrf.mxu0
          %v1078 = vadd.f32 %v1017, %v1077
          %1079 = vdwg.mxu0
          %s1080 = scalar_lea.vmem %s7, 16
          %v1081 = vld [vmem:[%s1080] sm:$0xf]
          %v1082 = vld [vmem:[%s1080 + $0x4] sm:$0xf]
          %v1083 = vld [vmem:[%s1080 + $0x8] sm:$0xf]
          %v1084 = vld [vmem:[%s1080 + $0xc] sm:$0xf]
          %s1085 = scalar_lea.vmem %s8, 1
          %v1086 = vld [vmem:[%s1085] sm:$0x1]
          %v1088 = vperm.slane %v1086, 0
          %v1094 = vunpack.c.l.b16 %v1081
          %v1095 = vunpack.c.l.b16 %v1082
          %v1096 = vunpack.c.l.b16 %v1083
          %v1097 = vunpack.c.l.b16 %v1084
          %v1098 = vpack.c.b16 %v1095, %v1094
          %v1099 = vpack.c.b16 %v1097, %v1096
          %1102 = vmatpush.bf16.msra.mxu0 0
          %1103 = vmatpush.bf16.msra.mxu0 0
          %1104 = vmatpush.bf16.msra.mxu0 0
          %1105 = vmatpush.bf16.msra.mxu0 0
          %1106 = vmatpush.bf16.msra.mxu0 0
          %1107 = vmatpush.bf16.msra.mxu0 0
          %1108 = vmatpush.bf16.msra.mxu0 %v1099
          %1109 = vmatpush.bf16.msra.mxu0 %v1098
          %1110 = vmatmul.bf16.gmra.mxu0 %v872
          %v1111 = vpop.f32.mrf.mxu0
          %v1112 = vadd.f32 %v1088, %v1111
          %v1113 = vpop.f32.mrf.mxu0
          %v1114 = vadd.f32 %v1088, %v1113
          %1115 = vmatmul.bf16.gmra.mxu0 %v875
          %v1116 = vpop.f32.mrf.mxu0
          %v1117 = vadd.f32 %v1088, %v1116
          %v1118 = vpop.f32.mrf.mxu0
          %v1119 = vadd.f32 %v1088, %v1118
          %1120 = vmatmul.bf16.gmra.mxu0 %v878
          %v1121 = vpop.f32.mrf.mxu0
          %v1122 = vadd.f32 %v1088, %v1121
          %v1123 = vpop.f32.mrf.mxu0
          %v1124 = vadd.f32 %v1088, %v1123
          %1125 = vmatmul.bf16.gmra.mxu0 %v881
          %v1126 = vpop.f32.mrf.mxu0
          %v1127 = vadd.f32 %v1088, %v1126
          %v1128 = vpop.f32.mrf.mxu0
          %v1129 = vadd.f32 %v1088, %v1128
          %1130 = vmatmul.bf16.gmra.mxu0 %v884
          %v1131 = vpop.f32.mrf.mxu0
          %v1132 = vadd.f32 %v1088, %v1131
          %v1133 = vpop.f32.mrf.mxu0
          %v1134 = vadd.f32 %v1088, %v1133
          %1135 = vmatmul.bf16.gmra.mxu0 %v887
          %v1136 = vpop.f32.mrf.mxu0
          %v1137 = vadd.f32 %v1088, %v1136
          %v1138 = vpop.f32.mrf.mxu0
          %v1139 = vadd.f32 %v1088, %v1138
          %1140 = vmatmul.bf16.gmra.mxu0 %v890
          %v1141 = vpop.f32.mrf.mxu0
          %v1142 = vadd.f32 %v1088, %v1141
          %v1143 = vpop.f32.mrf.mxu0
          %v1144 = vadd.f32 %v1088, %v1143
          %1145 = vmatmul.bf16.gmra.mxu0 %v893
          %v1146 = vpop.f32.mrf.mxu0
          %v1147 = vadd.f32 %v1088, %v1146
          %v1148 = vpop.f32.mrf.mxu0
          %v1149 = vadd.f32 %v1088, %v1148
          %1150 = vdwg.mxu0
          %v1151 = vpack.c.bf16 %v1041, %v1041
          %v1152 = vpack.c.bf16 %v1043, %v1043
          %v1153 = vpack.c.bf16 %v1046, %v1046
          %v1154 = vpack.c.bf16 %v1048, %v1048
          %v1155 = vpack.c.bf16 %v1051, %v1051
          %v1156 = vpack.c.bf16 %v1053, %v1053
          %v1157 = vpack.c.bf16 %v1056, %v1056
          %v1158 = vpack.c.bf16 %v1058, %v1058
          %v1159 = vpack.c.bf16 %v1061, %v1061
          %v1160 = vpack.c.bf16 %v1063, %v1063
          %v1161 = vpack.c.bf16 %v1066, %v1066
          %v1162 = vpack.c.bf16 %v1068, %v1068
          %v1163 = vpack.c.bf16 %v1071, %v1071
          %v1164 = vpack.c.bf16 %v1073, %v1073
          %v1165 = vpack.c.bf16 %v1076, %v1076
          %v1166 = vpack.c.bf16 %v1078, %v1078
          %s1167 = scalar_lea.vmem [#allocation2], 64
          %1168 = vst.msk [vmem:[%s1167] sm:$0xf] %vm960, %v1151
          %1169 = vst.msk [vmem:[%s1167 + $0x4] sm:$0xf] %vm960, %v1152
          %1170 = vst.msk [vmem:[%s1167 + $0x8] sm:$0xf] %vm960, %v1153
          %1171 = vst.msk [vmem:[%s1167 + $0xc] sm:$0xf] %vm960, %v1154
          %1172 = vst.msk [vmem:[%s1167 + $0x10] sm:$0xf] %vm960, %v1155
          %1173 = vst.msk [vmem:[%s1167 + $0x14] sm:$0xf] %vm960, %v1156
          %1174 = vst.msk [vmem:[%s1167 + $0x18] sm:$0xf] %vm960, %v1157
          %1175 = vst.msk [vmem:[%s1167 + $0x1c] sm:$0xf] %vm960, %v1158
          %1176 = vst.msk [vmem:[%s1167 + $0x20] sm:$0xf] %vm960, %v1159
          %1177 = vst.msk [vmem:[%s1167 + $0x24] sm:$0xf] %vm960, %v1160
          %1178 = vst.msk [vmem:[%s1167 + $0x28] sm:$0xf] %vm960, %v1161
          %1179 = vst.msk [vmem:[%s1167 + $0x2c] sm:$0xf] %vm960, %v1162
          %1180 = vst.msk [vmem:[%s1167 + $0x30] sm:$0xf] %vm960, %v1163
          %1181 = vst.msk [vmem:[%s1167 + $0x34] sm:$0xf] %vm960, %v1164
          %1182 = vst.msk [vmem:[%s1167 + $0x38] sm:$0xf] %vm960, %v1165
          %1183 = vst.msk [vmem:[%s1167 + $0x3c] sm:$0xf] %vm960, %v1166
          %v1184 = vpack.c.bf16 %v1112, %v1112
          %v1185 = vpack.c.bf16 %v1114, %v1114
          %v1186 = vpack.c.bf16 %v1117, %v1117
          %v1187 = vpack.c.bf16 %v1119, %v1119
          %v1188 = vpack.c.bf16 %v1122, %v1122
          %v1189 = vpack.c.bf16 %v1124, %v1124
          %v1190 = vpack.c.bf16 %v1127, %v1127
          %v1191 = vpack.c.bf16 %v1129, %v1129
          %v1192 = vpack.c.bf16 %v1132, %v1132
          %v1193 = vpack.c.bf16 %v1134, %v1134
          %v1194 = vpack.c.bf16 %v1137, %v1137
          %v1195 = vpack.c.bf16 %v1139, %v1139
          %v1196 = vpack.c.bf16 %v1142, %v1142
          %v1197 = vpack.c.bf16 %v1144, %v1144
          %v1198 = vpack.c.bf16 %v1147, %v1147
          %v1199 = vpack.c.bf16 %v1149, %v1149
          %s1200 = scalar_lea.vmem [#allocation3], 64
          %1201 = vst.msk [vmem:[%s1200] sm:$0xf] %vm960, %v1184
          %1202 = vst.msk [vmem:[%s1200 + $0x4] sm:$0xf] %vm960, %v1185
          %1203 = vst.msk [vmem:[%s1200 + $0x8] sm:$0xf] %vm960, %v1186
          %1204 = vst.msk [vmem:[%s1200 + $0xc] sm:$0xf] %vm960, %v1187
          %1205 = vst.msk [vmem:[%s1200 + $0x10] sm:$0xf] %vm960, %v1188
          %1206 = vst.msk [vmem:[%s1200 + $0x14] sm:$0xf] %vm960, %v1189
          %1207 = vst.msk [vmem:[%s1200 + $0x18] sm:$0xf] %vm960, %v1190
          %1208 = vst.msk [vmem:[%s1200 + $0x1c] sm:$0xf] %vm960, %v1191
          %1209 = vst.msk [vmem:[%s1200 + $0x20] sm:$0xf] %vm960, %v1192
          %1210 = vst.msk [vmem:[%s1200 + $0x24] sm:$0xf] %vm960, %v1193
          %1211 = vst.msk [vmem:[%s1200 + $0x28] sm:$0xf] %vm960, %v1194
          %1212 = vst.msk [vmem:[%s1200 + $0x2c] sm:$0xf] %vm960, %v1195
          %1213 = vst.msk [vmem:[%s1200 + $0x30] sm:$0xf] %vm960, %v1196
          %1214 = vst.msk [vmem:[%s1200 + $0x34] sm:$0xf] %vm960, %v1197
          %1215 = vst.msk [vmem:[%s1200 + $0x38] sm:$0xf] %vm960, %v1198
          %1216 = vst.msk [vmem:[%s1200 + $0x3c] sm:$0xf] %vm960, %v1199
          %s1217 = scalar_lea.vmem %s5, 32
          %v1218 = vld [vmem:[%s1217] sm:$0xf]
          %v1219 = vld [vmem:[%s1217 + $0x4] sm:$0xf]
          %v1220 = vld [vmem:[%s1217 + $0x8] sm:$0xf]
          %v1221 = vld [vmem:[%s1217 + $0xc] sm:$0xf]
          %s1222 = scalar_lea.vmem %s6, 2
          %v1223 = vld [vmem:[%s1222] sm:$0x1]
          %v1225 = vperm.slane %v1223, 0
          %v1231 = vunpack.c.l.b16 %v1218
          %v1232 = vunpack.c.l.b16 %v1219
          %v1233 = vunpack.c.l.b16 %v1220
          %v1234 = vunpack.c.l.b16 %v1221
          %v1235 = vpack.c.b16 %v1232, %v1231
          %v1236 = vpack.c.b16 %v1234, %v1233
          %1239 = vmatpush.bf16.msra.mxu0 0
          %1240 = vmatpush.bf16.msra.mxu0 0
          %1241 = vmatpush.bf16.msra.mxu0 0
          %1242 = vmatpush.bf16.msra.mxu0 0
          %1243 = vmatpush.bf16.msra.mxu0 0
          %1244 = vmatpush.bf16.msra.mxu0 0
          %1245 = vmatpush.bf16.msra.mxu0 %v1236
          %1246 = vmatpush.bf16.msra.mxu0 %v1235
          %1247 = vmatmul.bf16.gmra.mxu0 %v739
          %v1248 = vpop.f32.mrf.mxu0
          %v1249 = vadd.f32 %v1225, %v1248
          %v1250 = vpop.f32.mrf.mxu0
          %v1251 = vadd.f32 %v1225, %v1250
          %1252 = vmatmul.bf16.gmra.mxu0 %v742
          %v1253 = vpop.f32.mrf.mxu0
          %v1254 = vadd.f32 %v1225, %v1253
          %v1255 = vpop.f32.mrf.mxu0
          %v1256 = vadd.f32 %v1225, %v1255
          %1257 = vmatmul.bf16.gmra.mxu0 %v745
          %v1258 = vpop.f32.mrf.mxu0
          %v1259 = vadd.f32 %v1225, %v1258
          %v1260 = vpop.f32.mrf.mxu0
          %v1261 = vadd.f32 %v1225, %v1260
          %1262 = vmatmul.bf16.gmra.mxu0 %v748
          %v1263 = vpop.f32.mrf.mxu0
          %v1264 = vadd.f32 %v1225, %v1263
          %v1265 = vpop.f32.mrf.mxu0
          %v1266 = vadd.f32 %v1225, %v1265
          %1267 = vmatmul.bf16.gmra.mxu0 %v751
          %v1268 = vpop.f32.mrf.mxu0
          %v1269 = vadd.f32 %v1225, %v1268
          %v1270 = vpop.f32.mrf.mxu0
          %v1271 = vadd.f32 %v1225, %v1270
          %1272 = vmatmul.bf16.gmra.mxu0 %v754
          %v1273 = vpop.f32.mrf.mxu0
          %v1274 = vadd.f32 %v1225, %v1273
          %v1275 = vpop.f32.mrf.mxu0
          %v1276 = vadd.f32 %v1225, %v1275
          %1277 = vmatmul.bf16.gmra.mxu0 %v757
          %v1278 = vpop.f32.mrf.mxu0
          %v1279 = vadd.f32 %v1225, %v1278
          %v1280 = vpop.f32.mrf.mxu0
          %v1281 = vadd.f32 %v1225, %v1280
          %1282 = vmatmul.bf16.gmra.mxu0 %v760
          %v1283 = vpop.f32.mrf.mxu0
          %v1284 = vadd.f32 %v1225, %v1283
          %v1285 = vpop.f32.mrf.mxu0
          %v1286 = vadd.f32 %v1225, %v1285
          %1287 = vdwg.mxu0
          %s1288 = scalar_lea.vmem %s7, 32
          %v1289 = vld [vmem:[%s1288] sm:$0xf]
          %v1290 = vld [vmem:[%s1288 + $0x4] sm:$0xf]
          %v1291 = vld [vmem:[%s1288 + $0x8] sm:$0xf]
          %v1292 = vld [vmem:[%s1288 + $0xc] sm:$0xf]
          %s1293 = scalar_lea.vmem %s8, 2
          %v1294 = vld [vmem:[%s1293] sm:$0x1]
          %v1296 = vperm.slane %v1294, 0
          %v1302 = vunpack.c.l.b16 %v1289
          %v1303 = vunpack.c.l.b16 %v1290
          %v1304 = vunpack.c.l.b16 %v1291
          %v1305 = vunpack.c.l.b16 %v1292
          %v1306 = vpack.c.b16 %v1303, %v1302
          %v1307 = vpack.c.b16 %v1305, %v1304
          %1310 = vmatpush.bf16.msra.mxu0 0
          %1311 = vmatpush.bf16.msra.mxu0 0
          %1312 = vmatpush.bf16.msra.mxu0 0
          %1313 = vmatpush.bf16.msra.mxu0 0
          %1314 = vmatpush.bf16.msra.mxu0 0
          %1315 = vmatpush.bf16.msra.mxu0 0
          %1316 = vmatpush.bf16.msra.mxu0 %v1307
          %1317 = vmatpush.bf16.msra.mxu0 %v1306
          %1318 = vmatmul.bf16.gmra.mxu0 %v872
          %v1319 = vpop.f32.mrf.mxu0
          %v1320 = vadd.f32 %v1296, %v1319
          %v1321 = vpop.f32.mrf.mxu0
          %v1322 = vadd.f32 %v1296, %v1321
          %1323 = vmatmul.bf16.gmra.mxu0 %v875
          %v1324 = vpop.f32.mrf.mxu0
          %v1325 = vadd.f32 %v1296, %v1324
          %v1326 = vpop.f32.mrf.mxu0
          %v1327 = vadd.f32 %v1296, %v1326
          %1328 = vmatmul.bf16.gmra.mxu0 %v878
          %v1329 = vpop.f32.mrf.mxu0
          %v1330 = vadd.f32 %v1296, %v1329
          %v1331 = vpop.f32.mrf.mxu0
          %v1332 = vadd.f32 %v1296, %v1331
          %1333 = vmatmul.bf16.gmra.mxu0 %v881
          %v1334 = vpop.f32.mrf.mxu0
          %v1335 = vadd.f32 %v1296, %v1334
          %v1336 = vpop.f32.mrf.mxu0
          %v1337 = vadd.f32 %v1296, %v1336
          %1338 = vmatmul.bf16.gmra.mxu0 %v884
          %v1339 = vpop.f32.mrf.mxu0
          %v1340 = vadd.f32 %v1296, %v1339
          %v1341 = vpop.f32.mrf.mxu0
          %v1342 = vadd.f32 %v1296, %v1341
          %1343 = vmatmul.bf16.gmra.mxu0 %v887
          %v1344 = vpop.f32.mrf.mxu0
          %v1345 = vadd.f32 %v1296, %v1344
          %v1346 = vpop.f32.mrf.mxu0
          %v1347 = vadd.f32 %v1296, %v1346
          %1348 = vmatmul.bf16.gmra.mxu0 %v890
          %v1349 = vpop.f32.mrf.mxu0
          %v1350 = vadd.f32 %v1296, %v1349
          %v1351 = vpop.f32.mrf.mxu0
          %v1352 = vadd.f32 %v1296, %v1351
          %1353 = vmatmul.bf16.gmra.mxu0 %v893
          %v1354 = vpop.f32.mrf.mxu0
          %v1355 = vadd.f32 %v1296, %v1354
          %v1356 = vpop.f32.mrf.mxu0
          %v1357 = vadd.f32 %v1296, %v1356
          %1358 = vdwg.mxu0
          %v1359 = vpack.c.bf16 %v1249, %v1249
          %v1360 = vpack.c.bf16 %v1251, %v1251
          %v1361 = vpack.c.bf16 %v1254, %v1254
          %v1362 = vpack.c.bf16 %v1256, %v1256
          %v1363 = vpack.c.bf16 %v1259, %v1259
          %v1364 = vpack.c.bf16 %v1261, %v1261
          %v1365 = vpack.c.bf16 %v1264, %v1264
          %v1366 = vpack.c.bf16 %v1266, %v1266
          %v1367 = vpack.c.bf16 %v1269, %v1269
          %v1368 = vpack.c.bf16 %v1271, %v1271
          %v1369 = vpack.c.bf16 %v1274, %v1274
          %v1370 = vpack.c.bf16 %v1276, %v1276
          %v1371 = vpack.c.bf16 %v1279, %v1279
          %v1372 = vpack.c.bf16 %v1281, %v1281
          %v1373 = vpack.c.bf16 %v1284, %v1284
          %v1374 = vpack.c.bf16 %v1286, %v1286
          %s1375 = scalar_lea.vmem [#allocation2], 128
          %1376 = vst.msk [vmem:[%s1375] sm:$0xf] %vm960, %v1359
          %1377 = vst.msk [vmem:[%s1375 + $0x4] sm:$0xf] %vm960, %v1360
          %1378 = vst.msk [vmem:[%s1375 + $0x8] sm:$0xf] %vm960, %v1361
          %1379 = vst.msk [vmem:[%s1375 + $0xc] sm:$0xf] %vm960, %v1362
          %1380 = vst.msk [vmem:[%s1375 + $0x10] sm:$0xf] %vm960, %v1363
          %1381 = vst.msk [vmem:[%s1375 + $0x14] sm:$0xf] %vm960, %v1364
          %1382 = vst.msk [vmem:[%s1375 + $0x18] sm:$0xf] %vm960, %v1365
          %1383 = vst.msk [vmem:[%s1375 + $0x1c] sm:$0xf] %vm960, %v1366
          %1384 = vst.msk [vmem:[%s1375 + $0x20] sm:$0xf] %vm960, %v1367
          %1385 = vst.msk [vmem:[%s1375 + $0x24] sm:$0xf] %vm960, %v1368
          %1386 = vst.msk [vmem:[%s1375 + $0x28] sm:$0xf] %vm960, %v1369
          %1387 = vst.msk [vmem:[%s1375 + $0x2c] sm:$0xf] %vm960, %v1370
          %1388 = vst.msk [vmem:[%s1375 + $0x30] sm:$0xf] %vm960, %v1371
          %1389 = vst.msk [vmem:[%s1375 + $0x34] sm:$0xf] %vm960, %v1372
          %1390 = vst.msk [vmem:[%s1375 + $0x38] sm:$0xf] %vm960, %v1373
          %1391 = vst.msk [vmem:[%s1375 + $0x3c] sm:$0xf] %vm960, %v1374
          %v1392 = vpack.c.bf16 %v1320, %v1320
          %v1393 = vpack.c.bf16 %v1322, %v1322
          %v1394 = vpack.c.bf16 %v1325, %v1325
          %v1395 = vpack.c.bf16 %v1327, %v1327
          %v1396 = vpack.c.bf16 %v1330, %v1330
          %v1397 = vpack.c.bf16 %v1332, %v1332
          %v1398 = vpack.c.bf16 %v1335, %v1335
          %v1399 = vpack.c.bf16 %v1337, %v1337
          %v1400 = vpack.c.bf16 %v1340, %v1340
          %v1401 = vpack.c.bf16 %v1342, %v1342
          %v1402 = vpack.c.bf16 %v1345, %v1345
          %v1403 = vpack.c.bf16 %v1347, %v1347
          %v1404 = vpack.c.bf16 %v1350, %v1350
          %v1405 = vpack.c.bf16 %v1352, %v1352
          %v1406 = vpack.c.bf16 %v1355, %v1355
          %v1407 = vpack.c.bf16 %v1357, %v1357
          %s1408 = scalar_lea.vmem [#allocation3], 128
          %1409 = vst.msk [vmem:[%s1408] sm:$0xf] %vm960, %v1392
          %1410 = vst.msk [vmem:[%s1408 + $0x4] sm:$0xf] %vm960, %v1393
          %1411 = vst.msk [vmem:[%s1408 + $0x8] sm:$0xf] %vm960, %v1394
          %1412 = vst.msk [vmem:[%s1408 + $0xc] sm:$0xf] %vm960, %v1395
          %1413 = vst.msk [vmem:[%s1408 + $0x10] sm:$0xf] %vm960, %v1396
          %1414 = vst.msk [vmem:[%s1408 + $0x14] sm:$0xf] %vm960, %v1397
          %1415 = vst.msk [vmem:[%s1408 + $0x18] sm:$0xf] %vm960, %v1398
          %1416 = vst.msk [vmem:[%s1408 + $0x1c] sm:$0xf] %vm960, %v1399
          %1417 = vst.msk [vmem:[%s1408 + $0x20] sm:$0xf] %vm960, %v1400
          %1418 = vst.msk [vmem:[%s1408 + $0x24] sm:$0xf] %vm960, %v1401
          %1419 = vst.msk [vmem:[%s1408 + $0x28] sm:$0xf] %vm960, %v1402
          %1420 = vst.msk [vmem:[%s1408 + $0x2c] sm:$0xf] %vm960, %v1403
          %1421 = vst.msk [vmem:[%s1408 + $0x30] sm:$0xf] %vm960, %v1404
          %1422 = vst.msk [vmem:[%s1408 + $0x34] sm:$0xf] %vm960, %v1405
          %1423 = vst.msk [vmem:[%s1408 + $0x38] sm:$0xf] %vm960, %v1406
          %1424 = vst.msk [vmem:[%s1408 + $0x3c] sm:$0xf] %vm960, %v1407
          %s1425 = scalar_lea.vmem %s5, 48
          %v1426 = vld [vmem:[%s1425] sm:$0xf]
          %v1427 = vld [vmem:[%s1425 + $0x4] sm:$0xf]
          %v1428 = vld [vmem:[%s1425 + $0x8] sm:$0xf]
          %v1429 = vld [vmem:[%s1425 + $0xc] sm:$0xf]
          %s1430 = scalar_lea.vmem %s6, 3
          %v1431 = vld [vmem:[%s1430] sm:$0x1]
          %v1433 = vperm.slane %v1431, 0
          %v1439 = vunpack.c.l.b16 %v1426
          %v1440 = vunpack.c.l.b16 %v1427
          %v1441 = vunpack.c.l.b16 %v1428
          %v1442 = vunpack.c.l.b16 %v1429
          %v1443 = vpack.c.b16 %v1440, %v1439
          %v1444 = vpack.c.b16 %v1442, %v1441
          %1447 = vmatpush.bf16.msra.mxu0 0
          %1448 = vmatpush.bf16.msra.mxu0 0
          %1449 = vmatpush.bf16.msra.mxu0 0
          %1450 = vmatpush.bf16.msra.mxu0 0
          %1451 = vmatpush.bf16.msra.mxu0 0
          %1452 = vmatpush.bf16.msra.mxu0 0
          %1453 = vmatpush.bf16.msra.mxu0 %v1444
          %1454 = vmatpush.bf16.msra.mxu0 %v1443
          %1455 = vmatmul.bf16.gmra.mxu0 %v739
          %v1456 = vpop.f32.mrf.mxu0
          %v1457 = vadd.f32 %v1433, %v1456
          %v1458 = vpop.f32.mrf.mxu0
          %v1459 = vadd.f32 %v1433, %v1458
          %1460 = vmatmul.bf16.gmra.mxu0 %v742
          %v1461 = vpop.f32.mrf.mxu0
          %v1462 = vadd.f32 %v1433, %v1461
          %v1463 = vpop.f32.mrf.mxu0
          %v1464 = vadd.f32 %v1433, %v1463
          %1465 = vmatmul.bf16.gmra.mxu0 %v745
          %v1466 = vpop.f32.mrf.mxu0
          %v1467 = vadd.f32 %v1433, %v1466
          %v1468 = vpop.f32.mrf.mxu0
          %v1469 = vadd.f32 %v1433, %v1468
          %1470 = vmatmul.bf16.gmra.mxu0 %v748
          %v1471 = vpop.f32.mrf.mxu0
          %v1472 = vadd.f32 %v1433, %v1471
          %v1473 = vpop.f32.mrf.mxu0
          %v1474 = vadd.f32 %v1433, %v1473
          %1475 = vmatmul.bf16.gmra.mxu0 %v751
          %v1476 = vpop.f32.mrf.mxu0
          %v1477 = vadd.f32 %v1433, %v1476
          %v1478 = vpop.f32.mrf.mxu0
          %v1479 = vadd.f32 %v1433, %v1478
          %1480 = vmatmul.bf16.gmra.mxu0 %v754
          %v1481 = vpop.f32.mrf.mxu0
          %v1482 = vadd.f32 %v1433, %v1481
          %v1483 = vpop.f32.mrf.mxu0
          %v1484 = vadd.f32 %v1433, %v1483
          %1485 = vmatmul.bf16.gmra.mxu0 %v757
          %v1486 = vpop.f32.mrf.mxu0
          %v1487 = vadd.f32 %v1433, %v1486
          %v1488 = vpop.f32.mrf.mxu0
          %v1489 = vadd.f32 %v1433, %v1488
          %1490 = vmatmul.bf16.gmra.mxu0 %v760
          %v1491 = vpop.f32.mrf.mxu0
          %v1492 = vadd.f32 %v1433, %v1491
          %v1493 = vpop.f32.mrf.mxu0
          %v1494 = vadd.f32 %v1433, %v1493
          %1495 = vdwg.mxu0
          %s1496 = scalar_lea.vmem %s7, 48
          %v1497 = vld [vmem:[%s1496] sm:$0xf]
          %v1498 = vld [vmem:[%s1496 + $0x4] sm:$0xf]
          %v1499 = vld [vmem:[%s1496 + $0x8] sm:$0xf]
          %v1500 = vld [vmem:[%s1496 + $0xc] sm:$0xf]
          %s1501 = scalar_lea.vmem %s8, 3
          %v1502 = vld [vmem:[%s1501] sm:$0x1]
          %v1504 = vperm.slane %v1502, 0
          %v1510 = vunpack.c.l.b16 %v1497
          %v1511 = vunpack.c.l.b16 %v1498
          %v1512 = vunpack.c.l.b16 %v1499
          %v1513 = vunpack.c.l.b16 %v1500
          %v1514 = vpack.c.b16 %v1511, %v1510
          %v1515 = vpack.c.b16 %v1513, %v1512
          %1518 = vmatpush.bf16.msra.mxu0 0
          %1519 = vmatpush.bf16.msra.mxu0 0
          %1520 = vmatpush.bf16.msra.mxu0 0
          %1521 = vmatpush.bf16.msra.mxu0 0
          %1522 = vmatpush.bf16.msra.mxu0 0
          %1523 = vmatpush.bf16.msra.mxu0 0
          %1524 = vmatpush.bf16.msra.mxu0 %v1515
          %1525 = vmatpush.bf16.msra.mxu0 %v1514
          %1526 = vmatmul.bf16.gmra.mxu0 %v872
          %v1527 = vpop.f32.mrf.mxu0
          %v1528 = vadd.f32 %v1504, %v1527
          %v1529 = vpop.f32.mrf.mxu0
          %v1530 = vadd.f32 %v1504, %v1529
          %1531 = vmatmul.bf16.gmra.mxu0 %v875
          %v1532 = vpop.f32.mrf.mxu0
          %v1533 = vadd.f32 %v1504, %v1532
          %v1534 = vpop.f32.mrf.mxu0
          %v1535 = vadd.f32 %v1504, %v1534
          %1536 = vmatmul.bf16.gmra.mxu0 %v878
          %v1537 = vpop.f32.mrf.mxu0
          %v1538 = vadd.f32 %v1504, %v1537
          %v1539 = vpop.f32.mrf.mxu0
          %v1540 = vadd.f32 %v1504, %v1539
          %1541 = vmatmul.bf16.gmra.mxu0 %v881
          %v1542 = vpop.f32.mrf.mxu0
          %v1543 = vadd.f32 %v1504, %v1542
          %v1544 = vpop.f32.mrf.mxu0
          %v1545 = vadd.f32 %v1504, %v1544
          %1546 = vmatmul.bf16.gmra.mxu0 %v884
          %v1547 = vpop.f32.mrf.mxu0
          %v1548 = vadd.f32 %v1504, %v1547
          %v1549 = vpop.f32.mrf.mxu0
          %v1550 = vadd.f32 %v1504, %v1549
          %1551 = vmatmul.bf16.gmra.mxu0 %v887
          %v1552 = vpop.f32.mrf.mxu0
          %v1553 = vadd.f32 %v1504, %v1552
          %v1554 = vpop.f32.mrf.mxu0
          %v1555 = vadd.f32 %v1504, %v1554
          %1556 = vmatmul.bf16.gmra.mxu0 %v890
          %v1557 = vpop.f32.mrf.mxu0
          %v1558 = vadd.f32 %v1504, %v1557
          %v1559 = vpop.f32.mrf.mxu0
          %v1560 = vadd.f32 %v1504, %v1559
          %1561 = vmatmul.bf16.gmra.mxu0 %v893
          %v1562 = vpop.f32.mrf.mxu0
          %v1563 = vadd.f32 %v1504, %v1562
          %v1564 = vpop.f32.mrf.mxu0
          %v1565 = vadd.f32 %v1504, %v1564
          %1566 = vdwg.mxu0
          %v1567 = vpack.c.bf16 %v1457, %v1457
          %v1568 = vpack.c.bf16 %v1459, %v1459
          %v1569 = vpack.c.bf16 %v1462, %v1462
          %v1570 = vpack.c.bf16 %v1464, %v1464
          %v1571 = vpack.c.bf16 %v1467, %v1467
          %v1572 = vpack.c.bf16 %v1469, %v1469
          %v1573 = vpack.c.bf16 %v1472, %v1472
          %v1574 = vpack.c.bf16 %v1474, %v1474
          %v1575 = vpack.c.bf16 %v1477, %v1477
          %v1576 = vpack.c.bf16 %v1479, %v1479
          %v1577 = vpack.c.bf16 %v1482, %v1482
          %v1578 = vpack.c.bf16 %v1484, %v1484
          %v1579 = vpack.c.bf16 %v1487, %v1487
          %v1580 = vpack.c.bf16 %v1489, %v1489
          %v1581 = vpack.c.bf16 %v1492, %v1492
          %v1582 = vpack.c.bf16 %v1494, %v1494
          %s1583 = scalar_lea.vmem [#allocation2], 192
          %1584 = vst.msk [vmem:[%s1583] sm:$0xf] %vm960, %v1567
          %1585 = vst.msk [vmem:[%s1583 + $0x4] sm:$0xf] %vm960, %v1568
          %1586 = vst.msk [vmem:[%s1583 + $0x8] sm:$0xf] %vm960, %v1569
          %1587 = vst.msk [vmem:[%s1583 + $0xc] sm:$0xf] %vm960, %v1570
          %1588 = vst.msk [vmem:[%s1583 + $0x10] sm:$0xf] %vm960, %v1571
          %1589 = vst.msk [vmem:[%s1583 + $0x14] sm:$0xf] %vm960, %v1572
          %1590 = vst.msk [vmem:[%s1583 + $0x18] sm:$0xf] %vm960, %v1573
          %1591 = vst.msk [vmem:[%s1583 + $0x1c] sm:$0xf] %vm960, %v1574
          %1592 = vst.msk [vmem:[%s1583 + $0x20] sm:$0xf] %vm960, %v1575
          %1593 = vst.msk [vmem:[%s1583 + $0x24] sm:$0xf] %vm960, %v1576
          %1594 = vst.msk [vmem:[%s1583 + $0x28] sm:$0xf] %vm960, %v1577
          %1595 = vst.msk [vmem:[%s1583 + $0x2c] sm:$0xf] %vm960, %v1578
          %1596 = vst.msk [vmem:[%s1583 + $0x30] sm:$0xf] %vm960, %v1579
          %1597 = vst.msk [vmem:[%s1583 + $0x34] sm:$0xf] %vm960, %v1580
          %1598 = vst.msk [vmem:[%s1583 + $0x38] sm:$0xf] %vm960, %v1581
          %1599 = vst.msk [vmem:[%s1583 + $0x3c] sm:$0xf] %vm960, %v1582
          %v1600 = vpack.c.bf16 %v1528, %v1528
          %v1601 = vpack.c.bf16 %v1530, %v1530
          %v1602 = vpack.c.bf16 %v1533, %v1533
          %v1603 = vpack.c.bf16 %v1535, %v1535
          %v1604 = vpack.c.bf16 %v1538, %v1538
          %v1605 = vpack.c.bf16 %v1540, %v1540
          %v1606 = vpack.c.bf16 %v1543, %v1543
          %v1607 = vpack.c.bf16 %v1545, %v1545
          %v1608 = vpack.c.bf16 %v1548, %v1548
          %v1609 = vpack.c.bf16 %v1550, %v1550
          %v1610 = vpack.c.bf16 %v1553, %v1553
          %v1611 = vpack.c.bf16 %v1555, %v1555
          %v1612 = vpack.c.bf16 %v1558, %v1558
          %v1613 = vpack.c.bf16 %v1560, %v1560
          %v1614 = vpack.c.bf16 %v1563, %v1563
          %v1615 = vpack.c.bf16 %v1565, %v1565
          %s1616 = scalar_lea.vmem [#allocation3], 192
          %1617 = vst.msk [vmem:[%s1616] sm:$0xf] %vm960, %v1600
          %1618 = vst.msk [vmem:[%s1616 + $0x4] sm:$0xf] %vm960, %v1601
          %1619 = vst.msk [vmem:[%s1616 + $0x8] sm:$0xf] %vm960, %v1602
          %1620 = vst.msk [vmem:[%s1616 + $0xc] sm:$0xf] %vm960, %v1603
          %1621 = vst.msk [vmem:[%s1616 + $0x10] sm:$0xf] %vm960, %v1604
          %1622 = vst.msk [vmem:[%s1616 + $0x14] sm:$0xf] %vm960, %v1605
          %1623 = vst.msk [vmem:[%s1616 + $0x18] sm:$0xf] %vm960, %v1606
          %1624 = vst.msk [vmem:[%s1616 + $0x1c] sm:$0xf] %vm960, %v1607
          %1625 = vst.msk [vmem:[%s1616 + $0x20] sm:$0xf] %vm960, %v1608
          %1626 = vst.msk [vmem:[%s1616 + $0x24] sm:$0xf] %vm960, %v1609
          %1627 = vst.msk [vmem:[%s1616 + $0x28] sm:$0xf] %vm960, %v1610
          %1628 = vst.msk [vmem:[%s1616 + $0x2c] sm:$0xf] %vm960, %v1611
          %1629 = vst.msk [vmem:[%s1616 + $0x30] sm:$0xf] %vm960, %v1612
          %1630 = vst.msk [vmem:[%s1616 + $0x34] sm:$0xf] %vm960, %v1613
          %1631 = vst.msk [vmem:[%s1616 + $0x38] sm:$0xf] %vm960, %v1614
          %1632 = vst.msk [vmem:[%s1616 + $0x3c] sm:$0xf] %vm960, %v1615
        $region76: #{tpu_custom_call.1} parent=71 // pred_fallthru
          _
        %v1633 = vld [vmem:[%s3] sm:$0xf]
        %v1634 = vld [vmem:[%s3 + $0x4] sm:$0xf]
        %v1635 = vld [vmem:[%s3 + $0x8] sm:$0xf]
        %v1636 = vld [vmem:[%s3 + $0xc] sm:$0xf]
        %v1637 = vld [vmem:[%s4] sm:$0x1]
        %v1639 = vperm.slane %v1637, 0
        %v1643 = vunpack.c.l.b16 %v639
        %v1644 = vunpack.c.l.b16 %v640
        %v1645 = vpack.c.b16 %v1644, %v1643
        %v1650 = vunpack.c.l.b16 %v1633
        %v1651 = vunpack.c.l.b16 %v1634
        %v1652 = vunpack.c.l.b16 %v1635
        %v1653 = vunpack.c.l.b16 %v1636
        %v1654 = vpack.c.b16 %v1651, %v1650
        %v1655 = vpack.c.b16 %v1653, %v1652
        %vm1658 = vcmask 261120
        %v1660 = vsel %vm1658, %v1645, 0
        %1662 = vmatpush.bf16.msra.mxu0 0
        %1663 = vmatpush.bf16.msra.mxu0 0
        %1664 = vmatpush.bf16.msra.mxu0 0
        %1665 = vmatpush.bf16.msra.mxu0 0
        %1666 = vmatpush.bf16.msra.mxu0 0
        %1667 = vmatpush.bf16.msra.mxu0 0
        %1668 = vmatpush.bf16.msra.mxu0 %v1655
        %1669 = vmatpush.bf16.msra.mxu0 %v1654
        %1670 = vmatmul.bf16.gmra.mxu0 %v1660
        %v1671 = vpop.f32.mrf.mxu0
        %v1672 = vadd.f32 %v1639, %v1671
        %v1673 = vpop.f32.mrf.mxu0
        %v1674 = vadd.f32 %v1639, %v1673
        %1675 = vdwg.mxu0
        %1676 = vst.msk [vmem:[#allocation4] sm:$0xff] %vm1658, %v1672
        %1677 = vst.msk [vmem:[#allocation4 + $0x8] sm:$0xff] %vm1658, %v1674
        %v1678 = vld [vmem:[%s9] sm:$0xf]
        %v1679 = vld [vmem:[%s9 + $0x4] sm:$0xf]
        %v1680 = vld [vmem:[%s9 + $0x8] sm:$0xf]
        %v1681 = vld [vmem:[%s9 + $0xc] sm:$0xf]
        %v1682 = vld [vmem:[%s10] sm:$0x1]
        %v1684 = vperm.slane %v1682, 0
        %v1690 = vunpack.c.l.b16 %v1678
        %v1691 = vunpack.c.l.b16 %v1679
        %v1692 = vunpack.c.l.b16 %v1680
        %v1693 = vunpack.c.l.b16 %v1681
        %v1694 = vpack.c.b16 %v1691, %v1690
        %v1695 = vpack.c.b16 %v1693, %v1692
        %1698 = vmatpush.bf16.msra.mxu0 0
        %1699 = vmatpush.bf16.msra.mxu0 0
        %1700 = vmatpush.bf16.msra.mxu0 0
        %1701 = vmatpush.bf16.msra.mxu0 0
        %1702 = vmatpush.bf16.msra.mxu0 0
        %1703 = vmatpush.bf16.msra.mxu0 0
        %1704 = vmatpush.bf16.msra.mxu0 %v1695
        %1705 = vmatpush.bf16.msra.mxu0 %v1694
        %1706 = vmatmul.bf16.gmra.mxu0 %v1660
        %v1707 = vpop.f32.mrf.mxu0
        %v1708 = vadd.f32 %v1684, %v1707
        %v1709 = vpop.f32.mrf.mxu0
        %v1710 = vadd.f32 %v1684, %v1709
        %1711 = vdwg.mxu0
        %v1712 = vmul.f32 %v1708, 5.0
        %v1713 = vmul.f32 %v1710, 5.0
        %v1714 = vxor.u32 %v1712, 2147483648
        %v1715 = vxor.u32 %v1713, 2147483648
        %v1716 = vmul.f32 %v1714, 1.442695
        %v1717 = vpow.pop %v1716
        %v1718 = vmul.f32 %v1715, 1.442695
        %v1719 = vpow.pop %v1718
        %v1720 = vadd.f32 %v1717, 1.0
        %v1721 = vadd.f32 %v1719, 1.0
        %v1722 = vrcp.pop %v1720
        %v1723 = vmul.f32 %v1720, %v1722
        %v1724 = vsub.f32 1.0, %v1723
        %v1725 = vmul.f32 %v1722, %v1724
        %v1726 = vadd.f32 %v1722, %v1725
        %vm1727 = vweird.f32 %v1720
        %vm1728 = vweird.f32 %v1722
        %vm1729 = vmor %vm1727, %vm1728
        %v1730 = vsel %vm1729, %v1722, %v1726
        %v1731 = vand.u32 2147483647, %v1720
        %vm1732 = vcmp.eq.f32.partialorder %v1731, 8.507059e+37
        %v1733 = vand.u32 %v1720, 2147483648
        %v1734 = vor.u32 1.1754944e-38, %v1733
        %v1735 = vsel %vm1732, %v1734, %v1730
        %v1736 = vmul.f32 1.0, %v1735
        %v1737 = vrcp.pop %v1721
        %v1738 = vmul.f32 %v1721, %v1737
        %v1739 = vsub.f32 1.0, %v1738
        %v1740 = vmul.f32 %v1737, %v1739
        %v1741 = vadd.f32 %v1737, %v1740
        %vm1742 = vweird.f32 %v1721
        %vm1743 = vweird.f32 %v1737
        %vm1744 = vmor %vm1742, %vm1743
        %v1745 = vsel %vm1744, %v1737, %v1741
        %v1746 = vand.u32 2147483647, %v1721
        %vm1747 = vcmp.eq.f32.partialorder %v1746, 8.507059e+37
        %v1748 = vand.u32 %v1721, 2147483648
        %v1749 = vor.u32 1.1754944e-38, %v1748
        %v1750 = vsel %vm1747, %v1749, %v1745
        %v1751 = vmul.f32 1.0, %v1750
        %v1752 = vadd.f32 %v1736, 1e-05
        %v1753 = vadd.f32 %v1751, 1e-05
        %v1754 = vmul.f32 %v1752, 1.0986123
        %v1755 = vmul.f32 %v1753, 1.0986123
        %v1756 = vmul.f32 %v1754, 1.442695
        %v1757 = vpow.pop %v1756
        %v1758 = vmul.f32 %v1755, 1.442695
        %v1759 = vpow.pop %v1758
        %v1760 = vsub.f32 %v1757, 1.0
        %v1761 = vsub.f32 %v1759, 1.0
        %vm1762 = vcmask 31744
        %1763 = vst.msk [vmem:[%s636] sm:$0xff] %vm1762, %v1760
        %1764 = vst.msk [vmem:[%s636 + $0x8] sm:$0xff] %vm1762, %v1761
        %v1765 = vlaneseq
        %v1766 = vshrl.u32 %v1765, 7
        %v1767 = vadd.s32 %v1766, 8
        %s1768 = smul.u32 %s39, 16
        %v1769 = vstv %s1768
        %v1770 = vadd.s32 %v1766, %v1769
        %v1771 = vadd.s32 %v1767, %v1769
        %v1772 = vlaneseq
        %v1773 = vand.u32 %v1772, 127
        %v1774 = vsub.s32 %v1770, %v1773
        %v1775 = vsub.s32 %v1771, %v1773
        %v1776 = vcvt.s32.f32 %v1774
        %v1777 = vcvt.s32.f32 %v1775
        %v1778 = vmul.f32 %v1776, %v1776
        %v1779 = vmul.f32 %v1777, %v1777
        %vm1780 = vcmp.ge.s32.totalorder %v1773, 16
        %v1781 = vld [vmem:[#allocation4] sm:$0xff]
        %v1782 = vld [vmem:[#allocation4 + $0x8] sm:$0xff]
        %v1783 = vpack.c.bf16 %v1782, %v1781
        %v1784 = vld [vmem:[#allocation2] sm:$0xf]
        %v1785 = vld [vmem:[#allocation2 + $0x4] sm:$0xf]
        %v1786 = vld [vmem:[#allocation2 + $0x8] sm:$0xf]
        %v1787 = vld [vmem:[#allocation2 + $0xc] sm:$0xf]
        %v1788 = vld [vmem:[#allocation2 + $0x10] sm:$0xf]
        %v1789 = vld [vmem:[#allocation2 + $0x14] sm:$0xf]
        %v1790 = vld [vmem:[#allocation2 + $0x18] sm:$0xf]
        %v1791 = vld [vmem:[#allocation2 + $0x1c] sm:$0xf]
        %v1792 = vld [vmem:[#allocation2 + $0x20] sm:$0xf]
        %v1793 = vld [vmem:[#allocation2 + $0x24] sm:$0xf]
        %v1794 = vld [vmem:[#allocation2 + $0x28] sm:$0xf]
        %v1795 = vld [vmem:[#allocation2 + $0x2c] sm:$0xf]
        %v1796 = vld [vmem:[#allocation2 + $0x30] sm:$0xf]
        %v1797 = vld [vmem:[#allocation2 + $0x34] sm:$0xf]
        %v1798 = vld [vmem:[#allocation2 + $0x38] sm:$0xf]
        %v1799 = vld [vmem:[#allocation2 + $0x3c] sm:$0xf]
        %v1800 = vld [vmem:[#allocation3] sm:$0xf]
        %v1801 = vld [vmem:[#allocation3 + $0x4] sm:$0xf]
        %v1802 = vld [vmem:[#allocation3 + $0x8] sm:$0xf]
        %v1803 = vld [vmem:[#allocation3 + $0xc] sm:$0xf]
        %v1804 = vld [vmem:[#allocation3 + $0x10] sm:$0xf]
        %v1805 = vld [vmem:[#allocation3 + $0x14] sm:$0xf]
        %v1806 = vld [vmem:[#allocation3 + $0x18] sm:$0xf]
        %v1807 = vld [vmem:[#allocation3 + $0x1c] sm:$0xf]
        %v1808 = vld [vmem:[#allocation3 + $0x20] sm:$0xf]
        %v1809 = vld [vmem:[#allocation3 + $0x24] sm:$0xf]
        %v1810 = vld [vmem:[#allocation3 + $0x28] sm:$0xf]
        %v1811 = vld [vmem:[#allocation3 + $0x2c] sm:$0xf]
        %v1812 = vld [vmem:[#allocation3 + $0x30] sm:$0xf]
        %v1813 = vld [vmem:[#allocation3 + $0x34] sm:$0xf]
        %v1814 = vld [vmem:[#allocation3 + $0x38] sm:$0xf]
        %v1815 = vld [vmem:[#allocation3 + $0x3c] sm:$0xf]
        %v1832 = vunpack.c.l.b16 %v1784
        %v1833 = vunpack.c.l.b16 %v1785
        %v1834 = vunpack.c.l.b16 %v1786
        %v1835 = vunpack.c.l.b16 %v1787
        %v1836 = vunpack.c.l.b16 %v1788
        %v1837 = vunpack.c.l.b16 %v1789
        %v1838 = vunpack.c.l.b16 %v1790
        %v1839 = vunpack.c.l.b16 %v1791
        %v1840 = vunpack.c.l.b16 %v1792
        %v1841 = vunpack.c.l.b16 %v1793
        %v1842 = vunpack.c.l.b16 %v1794
        %v1843 = vunpack.c.l.b16 %v1795
        %v1844 = vunpack.c.l.b16 %v1796
        %v1845 = vunpack.c.l.b16 %v1797
        %v1846 = vunpack.c.l.b16 %v1798
        %v1847 = vunpack.c.l.b16 %v1799
        %v1848 = vpack.c.b16 %v1833, %v1832
        %v1849 = vpack.c.b16 %v1835, %v1834
        %v1850 = vpack.c.b16 %v1837, %v1836
        %v1851 = vpack.c.b16 %v1839, %v1838
        %v1852 = vpack.c.b16 %v1841, %v1840
        %v1853 = vpack.c.b16 %v1843, %v1842
        %v1854 = vpack.c.b16 %v1845, %v1844
        %v1855 = vpack.c.b16 %v1847, %v1846
        %vm1856 = vcmask 64512
        %v1858 = vsel %vm1856, %v1783, 0
        %v1861 = vsel %vm1856, %v1848, 0
        %v1864 = vsel %vm1856, %v1849, 0
        %v1867 = vsel %vm1856, %v1850, 0
        %v1870 = vsel %vm1856, %v1851, 0
        %v1873 = vsel %vm1856, %v1852, 0
        %v1876 = vsel %vm1856, %v1853, 0
        %v1879 = vsel %vm1856, %v1854, 0
        %v1882 = vsel %vm1856, %v1855, 0
        %1884 = vmatpush.bf16.xpose.msra.mxu0 %v1882
        %1885 = vmatpush.bf16.xpose.msra.mxu0 %v1879
        %1886 = vmatpush.bf16.xpose.msra.mxu0 %v1876
        %1887 = vmatpush.bf16.xpose.msra.mxu0 %v1873
        %1888 = vmatpush.bf16.xpose.msra.mxu0 %v1870
        %1889 = vmatpush.bf16.xpose.msra.mxu0 %v1867
        %1890 = vmatpush.bf16.xpose.msra.mxu0 %v1864
        %1891 = vmatpush.bf16.xpose.msra.mxu0 %v1861
        %1892 = vmatmul.bf16.gmra.mxu0 %v1858
        %v1893 = vpop.f32.mrf.mxu0
        %v1894 = vadd.f32 0.0, %v1893
        %v1895 = vpop.f32.mrf.mxu0
        %v1896 = vadd.f32 0.0, %v1895
        %1897 = vdwg.mxu0
        %v1898 = vmul.f32 %v1894, 0.35355338
        %v1899 = vmul.f32 %v1896, 0.35355338
        %v1900 = vsel %vm1780, -1e+30, %v1898
        %v1901 = vsel %vm1780, -1e+30, %v1899
        %1902 = vmax.xlane.f32.xlu0 %v1900
        %v1903 = vpop.xlane.xlu0 %1902
        %1904 = vmax.xlane.f32.xlu0 %v1901
        %v1905 = vpop.xlane.xlu0 %1904
        %v1906 = vsub.f32 %v1900, %v1903
        %v1907 = vsub.f32 %v1901, %v1905
        %v1908 = vmul.f32 %v1906, 1.442695
        %v1909 = vpow.pop %v1908
        %v1910 = vmul.f32 %v1907, 1.442695
        %v1911 = vpow.pop %v1910
        %1912 = vadd.xlane.f32.xlu0 %v1909
        %v1913 = vpop.xlane.xlu0 %1912
        %1914 = vadd.xlane.f32.xlu0 %v1911
        %v1915 = vpop.xlane.xlu0 %1914
        %v1916 = vrcp.pop %v1913
        %v1917 = vrcp.pop %v1915
        %v1918 = vmul.f32 %v1909, %v1916
        %v1919 = vmul.f32 %v1911, %v1917
        %1920 = vst [vmem:[%s586] sm:$0xff] %v1918
        %1921 = vst [vmem:[%s586 + $0x8] sm:$0xff] %v1919
        %v1922 = vld [vmem:[%s636] sm:$0xff]
        %v1923 = vld [vmem:[%s636 + $0x8] sm:$0xff]
        %v1924 = vrcp.pop %v1922
        %v1925 = vmul.f32 %v1922, %v1924
        %v1926 = vsub.f32 1.0, %v1925
        %v1927 = vmul.f32 %v1924, %v1926
        %v1928 = vadd.f32 %v1924, %v1927
        %vm1929 = vweird.f32 %v1922
        %vm1930 = vweird.f32 %v1924
        %vm1931 = vmor %vm1929, %vm1930
        %v1932 = vsel %vm1931, %v1924, %v1928
        %v1933 = vand.u32 2147483647, %v1922
        %vm1934 = vcmp.eq.f32.partialorder %v1933, 8.507059e+37
        %v1935 = vand.u32 %v1922, 2147483648
        %v1936 = vor.u32 1.1754944e-38, %v1935
        %v1937 = vsel %vm1934, %v1936, %v1932
        %v1938 = vmul.f32 1.0, %v1937
        %v1939 = vrcp.pop %v1923
        %v1940 = vmul.f32 %v1923, %v1939
        %v1941 = vsub.f32 1.0, %v1940
        %v1942 = vmul.f32 %v1939, %v1941
        %v1943 = vadd.f32 %v1939, %v1942
        %vm1944 = vweird.f32 %v1923
        %vm1945 = vweird.f32 %v1939
        %vm1946 = vmor %vm1944, %vm1945
        %v1947 = vsel %vm1946, %v1939, %v1943
        %v1948 = vand.u32 2147483647, %v1923
        %vm1949 = vcmp.eq.f32.partialorder %v1948, 8.507059e+37
        %v1950 = vand.u32 %v1923, 2147483648
        %v1951 = vor.u32 1.1754944e-38, %v1950
        %v1952 = vsel %vm1949, %v1951, %v1947
        %v1953 = vmul.f32 1.0, %v1952
        %v1954 = vmul.f32 %v1938, 0.3989423
        %v1955 = vmul.f32 %v1953, 0.3989423
        %v1956 = vmul.f32 %v1938, -0.5
        %v1957 = vmul.f32 %v1953, -0.5
        %v1958 = vmul.f32 %v1956, %v1938
        %v1959 = vmul.f32 %v1957, %v1953
        %1961 = vset.pattern.permute.xlu0 0
        %1962 = vperm.xlu0 %1961, %v1958
        %v1963 = vpop.permute.xlu0 %1962
        %1966 = vset.pattern.permute.xlu0 0
        %1967 = vperm.xlu0 %1966, %v1959
        %v1968 = vpop.permute.xlu0 %1967
        %v1970 = vmul.f32 %v1778, %v1963
        %v1971 = vmul.f32 %v1779, %v1968
        %v1972 = vmul.f32 %v1970, 1.442695
        %v1973 = vpow.pop %v1972
        %v1974 = vmul.f32 %v1971, 1.442695
        %v1975 = vpow.pop %v1974
        %1977 = vset.pattern.permute.xlu0 0
        %1978 = vperm.xlu0 %1977, %v1954
        %v1979 = vpop.permute.xlu0 %1978
        %1982 = vset.pattern.permute.xlu0 0
        %1983 = vperm.xlu0 %1982, %v1955
        %v1984 = vpop.permute.xlu0 %1983
        %v1986 = vmul.f32 %v1979, %v1973
        %v1987 = vmul.f32 %v1984, %v1975
        %1988 = vst [vmem:[%s593] sm:$0xff] %v1986
        %1989 = vst [vmem:[%s593 + $0x8] sm:$0xff] %v1987
        %v1990 = vpack.c.bf16 %v1919, %v1918
        %v2007 = vunpack.c.l.b16 %v1800
        %v2008 = vunpack.c.l.b16 %v1801
        %v2009 = vunpack.c.l.b16 %v1802
        %v2010 = vunpack.c.l.b16 %v1803
        %v2011 = vunpack.c.l.b16 %v1804
        %v2012 = vunpack.c.l.b16 %v1805
        %v2013 = vunpack.c.l.b16 %v1806
        %v2014 = vunpack.c.l.b16 %v1807
        %v2015 = vunpack.c.l.b16 %v1808
        %v2016 = vunpack.c.l.b16 %v1809
        %v2017 = vunpack.c.l.b16 %v1810
        %v2018 = vunpack.c.l.b16 %v1811
        %v2019 = vunpack.c.l.b16 %v1812
        %v2020 = vunpack.c.l.b16 %v1813
        %v2021 = vunpack.c.l.b16 %v1814
        %v2022 = vunpack.c.l.b16 %v1815
        %v2023 = vpack.c.b16 %v2008, %v2007
        %v2024 = vpack.c.b16 %v2010, %v2009
        %v2025 = vpack.c.b16 %v2012, %v2011
        %v2026 = vpack.c.b16 %v2014, %v2013
        %v2027 = vpack.c.b16 %v2016, %v2015
        %v2028 = vpack.c.b16 %v2018, %v2017
        %v2029 = vpack.c.b16 %v2020, %v2019
        %v2030 = vpack.c.b16 %v2022, %v2021
        %2039 = vmatpush.bf16.msra.mxu0 %v2030
        %2040 = vmatpush.bf16.msra.mxu0 %v2029
        %2041 = vmatpush.bf16.msra.mxu0 %v2028
        %2042 = vmatpush.bf16.msra.mxu0 %v2027
        %2043 = vmatpush.bf16.msra.mxu0 %v2026
        %2044 = vmatpush.bf16.msra.mxu0 %v2025
        %2045 = vmatpush.bf16.msra.mxu0 %v2024
        %2046 = vmatpush.bf16.msra.mxu0 %v2023
        %2047 = vmatmul.bf16.gmra.mxu0 %v1990
        %v2048 = vpop.f32.mrf.mxu0
        %v2049 = vadd.f32 0.0, %v2048
        %v2050 = vpop.f32.mrf.mxu0
        %v2051 = vadd.f32 0.0, %v2050
        %2052 = vdwg.mxu0
        %2053 = vst.msk [vmem:[#allocation5] sm:$0xff] %vm1856, %v2049
        %2054 = vst.msk [vmem:[#allocation5 + $0x8] sm:$0xff] %vm1856, %v2051
        %v2055 = vld [vmem:[#allocation4] sm:$0xff]
        %v2056 = vld [vmem:[#allocation4 + $0x8] sm:$0xff]
        %v2057 = vpack.c.bf16 %v2056, %v2055
        %s2058 = scalar_lea.vmem [#allocation2], 64
        %v2059 = vld [vmem:[%s2058] sm:$0xf]
        %v2060 = vld [vmem:[%s2058 + $0x4] sm:$0xf]
        %v2061 = vld [vmem:[%s2058 + $0x8] sm:$0xf]
        %v2062 = vld [vmem:[%s2058 + $0xc] sm:$0xf]
        %v2063 = vld [vmem:[%s2058 + $0x10] sm:$0xf]
        %v2064 = vld [vmem:[%s2058 + $0x14] sm:$0xf]
        %v2065 = vld [vmem:[%s2058 + $0x18] sm:$0xf]
        %v2066 = vld [vmem:[%s2058 + $0x1c] sm:$0xf]
        %v2067 = vld [vmem:[%s2058 + $0x20] sm:$0xf]
        %v2068 = vld [vmem:[%s2058 + $0x24] sm:$0xf]
        %v2069 = vld [vmem:[%s2058 + $0x28] sm:$0xf]
        %v2070 = vld [vmem:[%s2058 + $0x2c] sm:$0xf]
        %v2071 = vld [vmem:[%s2058 + $0x30] sm:$0xf]
        %v2072 = vld [vmem:[%s2058 + $0x34] sm:$0xf]
        %v2073 = vld [vmem:[%s2058 + $0x38] sm:$0xf]
        %v2074 = vld [vmem:[%s2058 + $0x3c] sm:$0xf]
        %s2075 = scalar_lea.vmem [#allocation3], 64
        %v2076 = vld [vmem:[%s2075] sm:$0xf]
        %v2077 = vld [vmem:[%s2075 + $0x4] sm:$0xf]
        %v2078 = vld [vmem:[%s2075 + $0x8] sm:$0xf]
        %v2079 = vld [vmem:[%s2075 + $0xc] sm:$0xf]
        %v2080 = vld [vmem:[%s2075 + $0x10] sm:$0xf]
        %v2081 = vld [vmem:[%s2075 + $0x14] sm:$0xf]
        %v2082 = vld [vmem:[%s2075 + $0x18] sm:$0xf]
        %v2083 = vld [vmem:[%s2075 + $0x1c] sm:$0xf]
        %v2084 = vld [vmem:[%s2075 + $0x20] sm:$0xf]
        %v2085 = vld [vmem:[%s2075 + $0x24] sm:$0xf]
        %v2086 = vld [vmem:[%s2075 + $0x28] sm:$0xf]
        %v2087 = vld [vmem:[%s2075 + $0x2c] sm:$0xf]
        %v2088 = vld [vmem:[%s2075 + $0x30] sm:$0xf]
        %v2089 = vld [vmem:[%s2075 + $0x34] sm:$0xf]
        %v2090 = vld [vmem:[%s2075 + $0x38] sm:$0xf]
        %v2091 = vld [vmem:[%s2075 + $0x3c] sm:$0xf]
        %2093 = vrot.lane.b32.xlu0 %v2057, 120
        %v2094 = vpop.permute.xlu0 %2093
        %v2111 = vunpack.c.l.b16 %v2059
        %v2112 = vunpack.c.l.b16 %v2060
        %v2113 = vunpack.c.l.b16 %v2061
        %v2114 = vunpack.c.l.b16 %v2062
        %v2115 = vunpack.c.l.b16 %v2063
        %v2116 = vunpack.c.l.b16 %v2064
        %v2117 = vunpack.c.l.b16 %v2065
        %v2118 = vunpack.c.l.b16 %v2066
        %v2119 = vunpack.c.l.b16 %v2067
        %v2120 = vunpack.c.l.b16 %v2068
        %v2121 = vunpack.c.l.b16 %v2069
        %v2122 = vunpack.c.l.b16 %v2070
        %v2123 = vunpack.c.l.b16 %v2071
        %v2124 = vunpack.c.l.b16 %v2072
        %v2125 = vunpack.c.l.b16 %v2073
        %v2126 = vunpack.c.l.b16 %v2074
        %v2127 = vpack.c.b16 %v2112, %v2111
        %v2128 = vpack.c.b16 %v2114, %v2113
        %v2129 = vpack.c.b16 %v2116, %v2115
        %v2130 = vpack.c.b16 %v2118, %v2117
        %v2131 = vpack.c.b16 %v2120, %v2119
        %v2132 = vpack.c.b16 %v2122, %v2121
        %v2133 = vpack.c.b16 %v2124, %v2123
        %v2134 = vpack.c.b16 %v2126, %v2125
        %v2136 = vsel %vm1856, %v2094, 0
        %v2139 = vsel %vm1856, %v2127, 0
        %v2142 = vsel %vm1856, %v2128, 0
        %v2145 = vsel %vm1856, %v2129, 0
        %v2148 = vsel %vm1856, %v2130, 0
        %v2151 = vsel %vm1856, %v2131, 0
        %v2154 = vsel %vm1856, %v2132, 0
        %v2157 = vsel %vm1856, %v2133, 0
        %v2160 = vsel %vm1856, %v2134, 0
        %2162 = vmatpush.bf16.xpose.msra.mxu0 %v2160
        %2163 = vmatpush.bf16.xpose.msra.mxu0 %v2157
        %2164 = vmatpush.bf16.xpose.msra.mxu0 %v2154
        %2165 = vmatpush.bf16.xpose.msra.mxu0 %v2151
        %2166 = vmatpush.bf16.xpose.msra.mxu0 %v2148
        %2167 = vmatpush.bf16.xpose.msra.mxu0 %v2145
        %2168 = vmatpush.bf16.xpose.msra.mxu0 %v2142
        %2169 = vmatpush.bf16.xpose.msra.mxu0 %v2139
        %2170 = vmatmul.bf16.gmra.mxu0 %v2136
        %v2171 = vpop.f32.mrf.mxu0
        %v2172 = vadd.f32 0.0, %v2171
        %v2173 = vpop.f32.mrf.mxu0
        %v2174 = vadd.f32 0.0, %v2173
        %2175 = vdwg.mxu0
        %v2176 = vmul.f32 %v2172, 0.35355338
        %v2177 = vmul.f32 %v2174, 0.35355338
        %v2178 = vsel %vm1780, -1e+30, %v2176
        %v2179 = vsel %vm1780, -1e+30, %v2177
        %2180 = vmax.xlane.f32.xlu0 %v2178
        %v2181 = vpop.xlane.xlu0 %2180
        %2182 = vmax.xlane.f32.xlu0 %v2179
        %v2183 = vpop.xlane.xlu0 %2182
        %v2184 = vsub.f32 %v2178, %v2181
        %v2185 = vsub.f32 %v2179, %v2183
        %v2186 = vmul.f32 %v2184, 1.442695
        %v2187 = vpow.pop %v2186
        %v2188 = vmul.f32 %v2185, 1.442695
        %v2189 = vpow.pop %v2188
        %2190 = vadd.xlane.f32.xlu0 %v2187
        %v2191 = vpop.xlane.xlu0 %2190
        %2192 = vadd.xlane.f32.xlu0 %v2189
        %v2193 = vpop.xlane.xlu0 %2192
        %v2194 = vrcp.pop %v2191
        %v2195 = vrcp.pop %v2193
        %v2196 = vmul.f32 %v2187, %v2194
        %v2197 = vmul.f32 %v2189, %v2195
        %s2198 = scalar_lea.vmem %s586, 16 [#allocation8]
        %2199 = vst [vmem:[%s2198] sm:$0xff] %v2196
        %2200 = vst [vmem:[%s2198 + $0x8] sm:$0xff] %v2197
        %v2201 = vld [vmem:[%s636] sm:$0xff]
        %v2202 = vld [vmem:[%s636 + $0x8] sm:$0xff]
        %v2203 = vrcp.pop %v2201
        %v2204 = vmul.f32 %v2201, %v2203
        %v2205 = vsub.f32 1.0, %v2204
        %v2206 = vmul.f32 %v2203, %v2205
        %v2207 = vadd.f32 %v2203, %v2206
        %vm2208 = vweird.f32 %v2201
        %vm2209 = vweird.f32 %v2203
        %vm2210 = vmor %vm2208, %vm2209
        %v2211 = vsel %vm2210, %v2203, %v2207
        %v2212 = vand.u32 2147483647, %v2201
        %vm2213 = vcmp.eq.f32.partialorder %v2212, 8.507059e+37
        %v2214 = vand.u32 %v2201, 2147483648
        %v2215 = vor.u32 1.1754944e-38, %v2214
        %v2216 = vsel %vm2213, %v2215, %v2211
        %v2217 = vmul.f32 1.0, %v2216
        %v2218 = vrcp.pop %v2202
        %v2219 = vmul.f32 %v2202, %v2218
        %v2220 = vsub.f32 1.0, %v2219
        %v2221 = vmul.f32 %v2218, %v2220
        %v2222 = vadd.f32 %v2218, %v2221
        %vm2223 = vweird.f32 %v2202
        %vm2224 = vweird.f32 %v2218
        %vm2225 = vmor %vm2223, %vm2224
        %v2226 = vsel %vm2225, %v2218, %v2222
        %v2227 = vand.u32 2147483647, %v2202
        %vm2228 = vcmp.eq.f32.partialorder %v2227, 8.507059e+37
        %v2229 = vand.u32 %v2202, 2147483648
        %v2230 = vor.u32 1.1754944e-38, %v2229
        %v2231 = vsel %vm2228, %v2230, %v2226
        %v2232 = vmul.f32 1.0, %v2231
        %v2233 = vmul.f32 %v2217, 0.3989423
        %v2234 = vmul.f32 %v2232, 0.3989423
        %v2235 = vmul.f32 %v2217, -0.5
        %v2236 = vmul.f32 %v2232, -0.5
        %v2237 = vmul.f32 %v2235, %v2217
        %v2238 = vmul.f32 %v2236, %v2232
        %2240 = vset.pattern.permute.xlu0 1
        %2241 = vperm.xlu0 %2240, %v2237
        %v2242 = vpop.permute.xlu0 %2241
        %2245 = vset.pattern.permute.xlu0 1
        %2246 = vperm.xlu0 %2245, %v2238
        %v2247 = vpop.permute.xlu0 %2246
        %v2249 = vmul.f32 %v1778, %v2242
        %v2250 = vmul.f32 %v1779, %v2247
        %v2251 = vmul.f32 %v2249, 1.442695
        %v2252 = vpow.pop %v2251
        %v2253 = vmul.f32 %v2250, 1.442695
        %v2254 = vpow.pop %v2253
        %2256 = vset.pattern.permute.xlu0 1
        %2257 = vperm.xlu0 %2256, %v2233
        %v2258 = vpop.permute.xlu0 %2257
        %2261 = vset.pattern.permute.xlu0 1
        %2262 = vperm.xlu0 %2261, %v2234
        %v2263 = vpop.permute.xlu0 %2262
        %v2265 = vmul.f32 %v2258, %v2252
        %v2266 = vmul.f32 %v2263, %v2254
        %s2267 = scalar_lea.vmem %s593, 16 [#allocation10]
        %2268 = vst [vmem:[%s2267] sm:$0xff] %v2265
        %2269 = vst [vmem:[%s2267 + $0x8] sm:$0xff] %v2266
        %v2270 = vpack.c.bf16 %v2197, %v2196
        %v2287 = vunpack.c.l.b16 %v2076
        %v2288 = vunpack.c.l.b16 %v2077
        %v2289 = vunpack.c.l.b16 %v2078
        %v2290 = vunpack.c.l.b16 %v2079
        %v2291 = vunpack.c.l.b16 %v2080
        %v2292 = vunpack.c.l.b16 %v2081
        %v2293 = vunpack.c.l.b16 %v2082
        %v2294 = vunpack.c.l.b16 %v2083
        %v2295 = vunpack.c.l.b16 %v2084
        %v2296 = vunpack.c.l.b16 %v2085
        %v2297 = vunpack.c.l.b16 %v2086
        %v2298 = vunpack.c.l.b16 %v2087
        %v2299 = vunpack.c.l.b16 %v2088
        %v2300 = vunpack.c.l.b16 %v2089
        %v2301 = vunpack.c.l.b16 %v2090
        %v2302 = vunpack.c.l.b16 %v2091
        %v2303 = vpack.c.b16 %v2288, %v2287
        %v2304 = vpack.c.b16 %v2290, %v2289
        %v2305 = vpack.c.b16 %v2292, %v2291
        %v2306 = vpack.c.b16 %v2294, %v2293
        %v2307 = vpack.c.b16 %v2296, %v2295
        %v2308 = vpack.c.b16 %v2298, %v2297
        %v2309 = vpack.c.b16 %v2300, %v2299
        %v2310 = vpack.c.b16 %v2302, %v2301
        %2319 = vmatpush.bf16.msra.mxu0 %v2310
        %2320 = vmatpush.bf16.msra.mxu0 %v2309
        %2321 = vmatpush.bf16.msra.mxu0 %v2308
        %2322 = vmatpush.bf16.msra.mxu0 %v2307
        %2323 = vmatpush.bf16.msra.mxu0 %v2306
        %2324 = vmatpush.bf16.msra.mxu0 %v2305
        %2325 = vmatpush.bf16.msra.mxu0 %v2304
        %2326 = vmatpush.bf16.msra.mxu0 %v2303
        %2327 = vmatmul.bf16.gmra.mxu0 %v2270
        %v2328 = vpop.f32.mrf.mxu0
        %v2329 = vadd.f32 0.0, %v2328
        %v2330 = vpop.f32.mrf.mxu0
        %v2331 = vadd.f32 0.0, %v2330
        %2332 = vdwg.mxu0
        %2335 = vrot.lane.b32.xlu0 %v2329, 8
        %v2336 = vpop.permute.xlu0 %2335
        %2337 = vrot.lane.b32.xlu0 %v2331, 8
        %v2338 = vpop.permute.xlu0 %2337
        %vm2341 = vcmask 130112
        %2342 = vst.msk [vmem:[#allocation5] sm:$0xff] %vm2341, %v2336
        %2343 = vst.msk [vmem:[#allocation5 + $0x8] sm:$0xff] %vm2341, %v2338
        %v2344 = vld [vmem:[#allocation4] sm:$0xff]
        %v2345 = vld [vmem:[#allocation4 + $0x8] sm:$0xff]
        %v2346 = vpack.c.bf16 %v2345, %v2344
        %s2347 = scalar_lea.vmem [#allocation2], 128
        %v2348 = vld [vmem:[%s2347] sm:$0xf]
        %v2349 = vld [vmem:[%s2347 + $0x4] sm:$0xf]
        %v2350 = vld [vmem:[%s2347 + $0x8] sm:$0xf]
        %v2351 = vld [vmem:[%s2347 + $0xc] sm:$0xf]
        %v2352 = vld [vmem:[%s2347 + $0x10] sm:$0xf]
        %v2353 = vld [vmem:[%s2347 + $0x14] sm:$0xf]
        %v2354 = vld [vmem:[%s2347 + $0x18] sm:$0xf]
        %v2355 = vld [vmem:[%s2347 + $0x1c] sm:$0xf]
        %v2356 = vld [vmem:[%s2347 + $0x20] sm:$0xf]
        %v2357 = vld [vmem:[%s2347 + $0x24] sm:$0xf]
        %v2358 = vld [vmem:[%s2347 + $0x28] sm:$0xf]
        %v2359 = vld [vmem:[%s2347 + $0x2c] sm:$0xf]
        %v2360 = vld [vmem:[%s2347 + $0x30] sm:$0xf]
        %v2361 = vld [vmem:[%s2347 + $0x34] sm:$0xf]
        %v2362 = vld [vmem:[%s2347 + $0x38] sm:$0xf]
        %v2363 = vld [vmem:[%s2347 + $0x3c] sm:$0xf]
        %s2364 = scalar_lea.vmem [#allocation3], 128
        %v2365 = vld [vmem:[%s2364] sm:$0xf]
        %v2366 = vld [vmem:[%s2364 + $0x4] sm:$0xf]
        %v2367 = vld [vmem:[%s2364 + $0x8] sm:$0xf]
        %v2368 = vld [vmem:[%s2364 + $0xc] sm:$0xf]
        %v2369 = vld [vmem:[%s2364 + $0x10] sm:$0xf]
        %v2370 = vld [vmem:[%s2364 + $0x14] sm:$0xf]
        %v2371 = vld [vmem:[%s2364 + $0x18] sm:$0xf]
        %v2372 = vld [vmem:[%s2364 + $0x1c] sm:$0xf]
        %v2373 = vld [vmem:[%s2364 + $0x20] sm:$0xf]
        %v2374 = vld [vmem:[%s2364 + $0x24] sm:$0xf]
        %v2375 = vld [vmem:[%s2364 + $0x28] sm:$0xf]
        %v2376 = vld [vmem:[%s2364 + $0x2c] sm:$0xf]
        %v2377 = vld [vmem:[%s2364 + $0x30] sm:$0xf]
        %v2378 = vld [vmem:[%s2364 + $0x34] sm:$0xf]
        %v2379 = vld [vmem:[%s2364 + $0x38] sm:$0xf]
        %v2380 = vld [vmem:[%s2364 + $0x3c] sm:$0xf]
        %2382 = vrot.lane.b32.xlu0 %v2346, 112
        %v2383 = vpop.permute.xlu0 %2382
        %v2400 = vunpack.c.l.b16 %v2348
        %v2401 = vunpack.c.l.b16 %v2349
        %v2402 = vunpack.c.l.b16 %v2350
        %v2403 = vunpack.c.l.b16 %v2351
        %v2404 = vunpack.c.l.b16 %v2352
        %v2405 = vunpack.c.l.b16 %v2353
        %v2406 = vunpack.c.l.b16 %v2354
        %v2407 = vunpack.c.l.b16 %v2355
        %v2408 = vunpack.c.l.b16 %v2356
        %v2409 = vunpack.c.l.b16 %v2357
        %v2410 = vunpack.c.l.b16 %v2358
        %v2411 = vunpack.c.l.b16 %v2359
        %v2412 = vunpack.c.l.b16 %v2360
        %v2413 = vunpack.c.l.b16 %v2361
        %v2414 = vunpack.c.l.b16 %v2362
        %v2415 = vunpack.c.l.b16 %v2363
        %v2416 = vpack.c.b16 %v2401, %v2400
        %v2417 = vpack.c.b16 %v2403, %v2402
        %v2418 = vpack.c.b16 %v2405, %v2404
        %v2419 = vpack.c.b16 %v2407, %v2406
        %v2420 = vpack.c.b16 %v2409, %v2408
        %v2421 = vpack.c.b16 %v2411, %v2410
        %v2422 = vpack.c.b16 %v2413, %v2412
        %v2423 = vpack.c.b16 %v2415, %v2414
        %v2425 = vsel %vm1856, %v2383, 0
        %v2428 = vsel %vm1856, %v2416, 0
        %v2431 = vsel %vm1856, %v2417, 0
        %v2434 = vsel %vm1856, %v2418, 0
        %v2437 = vsel %vm1856, %v2419, 0
        %v2440 = vsel %vm1856, %v2420, 0
        %v2443 = vsel %vm1856, %v2421, 0
        %v2446 = vsel %vm1856, %v2422, 0
        %v2449 = vsel %vm1856, %v2423, 0
        %2451 = vmatpush.bf16.xpose.msra.mxu0 %v2449
        %2452 = vmatpush.bf16.xpose.msra.mxu0 %v2446
        %2453 = vmatpush.bf16.xpose.msra.mxu0 %v2443
        %2454 = vmatpush.bf16.xpose.msra.mxu0 %v2440
        %2455 = vmatpush.bf16.xpose.msra.mxu0 %v2437
        %2456 = vmatpush.bf16.xpose.msra.mxu0 %v2434
        %2457 = vmatpush.bf16.xpose.msra.mxu0 %v2431
        %2458 = vmatpush.bf16.xpose.msra.mxu0 %v2428
        %2459 = vmatmul.bf16.gmra.mxu0 %v2425
        %v2460 = vpop.f32.mrf.mxu0
        %v2461 = vadd.f32 0.0, %v2460
        %v2462 = vpop.f32.mrf.mxu0
        %v2463 = vadd.f32 0.0, %v2462
        %2464 = vdwg.mxu0
        %v2465 = vmul.f32 %v2461, 0.35355338
        %v2466 = vmul.f32 %v2463, 0.35355338
        %v2467 = vsel %vm1780, -1e+30, %v2465
        %v2468 = vsel %vm1780, -1e+30, %v2466
        %2469 = vmax.xlane.f32.xlu0 %v2467
        %v2470 = vpop.xlane.xlu0 %2469
        %2471 = vmax.xlane.f32.xlu0 %v2468
        %v2472 = vpop.xlane.xlu0 %2471
        %v2473 = vsub.f32 %v2467, %v2470
        %v2474 = vsub.f32 %v2468, %v2472
        %v2475 = vmul.f32 %v2473, 1.442695
        %v2476 = vpow.pop %v2475
        %v2477 = vmul.f32 %v2474, 1.442695
        %v2478 = vpow.pop %v2477
        %2479 = vadd.xlane.f32.xlu0 %v2476
        %v2480 = vpop.xlane.xlu0 %2479
        %2481 = vadd.xlane.f32.xlu0 %v2478
        %v2482 = vpop.xlane.xlu0 %2481
        %v2483 = vrcp.pop %v2480
        %v2484 = vrcp.pop %v2482
        %v2485 = vmul.f32 %v2476, %v2483
        %v2486 = vmul.f32 %v2478, %v2484
        %s2487 = scalar_lea.vmem %s586, 32 [#allocation8]
        %2488 = vst [vmem:[%s2487] sm:$0xff] %v2485
        %2489 = vst [vmem:[%s2487 + $0x8] sm:$0xff] %v2486
        %v2490 = vld [vmem:[%s636] sm:$0xff]
        %v2491 = vld [vmem:[%s636 + $0x8] sm:$0xff]
        %v2492 = vrcp.pop %v2490
        %v2493 = vmul.f32 %v2490, %v2492
        %v2494 = vsub.f32 1.0, %v2493
        %v2495 = vmul.f32 %v2492, %v2494
        %v2496 = vadd.f32 %v2492, %v2495
        %vm2497 = vweird.f32 %v2490
        %vm2498 = vweird.f32 %v2492
        %vm2499 = vmor %vm2497, %vm2498
        %v2500 = vsel %vm2499, %v2492, %v2496
        %v2501 = vand.u32 2147483647, %v2490
        %vm2502 = vcmp.eq.f32.partialorder %v2501, 8.507059e+37
        %v2503 = vand.u32 %v2490, 2147483648
        %v2504 = vor.u32 1.1754944e-38, %v2503
        %v2505 = vsel %vm2502, %v2504, %v2500
        %v2506 = vmul.f32 1.0, %v2505
        %v2507 = vrcp.pop %v2491
        %v2508 = vmul.f32 %v2491, %v2507
        %v2509 = vsub.f32 1.0, %v2508
        %v2510 = vmul.f32 %v2507, %v2509
        %v2511 = vadd.f32 %v2507, %v2510
        %vm2512 = vweird.f32 %v2491
        %vm2513 = vweird.f32 %v2507
        %vm2514 = vmor %vm2512, %vm2513
        %v2515 = vsel %vm2514, %v2507, %v2511
        %v2516 = vand.u32 2147483647, %v2491
        %vm2517 = vcmp.eq.f32.partialorder %v2516, 8.507059e+37
        %v2518 = vand.u32 %v2491, 2147483648
        %v2519 = vor.u32 1.1754944e-38, %v2518
        %v2520 = vsel %vm2517, %v2519, %v2515
        %v2521 = vmul.f32 1.0, %v2520
        %v2522 = vmul.f32 %v2506, 0.3989423
        %v2523 = vmul.f32 %v2521, 0.3989423
        %v2524 = vmul.f32 %v2506, -0.5
        %v2525 = vmul.f32 %v2521, -0.5
        %v2526 = vmul.f32 %v2524, %v2506
        %v2527 = vmul.f32 %v2525, %v2521
        %2529 = vset.pattern.permute.xlu0 2
        %2530 = vperm.xlu0 %2529, %v2526
        %v2531 = vpop.permute.xlu0 %2530
        %2534 = vset.pattern.permute.xlu0 2
        %2535 = vperm.xlu0 %2534, %v2527
        %v2536 = vpop.permute.xlu0 %2535
        %v2538 = vmul.f32 %v1778, %v2531
        %v2539 = vmul.f32 %v1779, %v2536
        %v2540 = vmul.f32 %v2538, 1.442695
        %v2541 = vpow.pop %v2540
        %v2542 = vmul.f32 %v2539, 1.442695
        %v2543 = vpow.pop %v2542
        %2545 = vset.pattern.permute.xlu0 2
        %2546 = vperm.xlu0 %2545, %v2522
        %v2547 = vpop.permute.xlu0 %2546
        %2550 = vset.pattern.permute.xlu0 2
        %2551 = vperm.xlu0 %2550, %v2523
        %v2552 = vpop.permute.xlu0 %2551
        %v2554 = vmul.f32 %v2547, %v2541
        %v2555 = vmul.f32 %v2552, %v2543
        %s2556 = scalar_lea.vmem %s593, 32 [#allocation10]
        %2557 = vst [vmem:[%s2556] sm:$0xff] %v2554
        %2558 = vst [vmem:[%s2556 + $0x8] sm:$0xff] %v2555
        %v2559 = vpack.c.bf16 %v2486, %v2485
        %v2576 = vunpack.c.l.b16 %v2365
        %v2577 = vunpack.c.l.b16 %v2366
        %v2578 = vunpack.c.l.b16 %v2367
        %v2579 = vunpack.c.l.b16 %v2368
        %v2580 = vunpack.c.l.b16 %v2369
        %v2581 = vunpack.c.l.b16 %v2370
        %v2582 = vunpack.c.l.b16 %v2371
        %v2583 = vunpack.c.l.b16 %v2372
        %v2584 = vunpack.c.l.b16 %v2373
        %v2585 = vunpack.c.l.b16 %v2374
        %v2586 = vunpack.c.l.b16 %v2375
        %v2587 = vunpack.c.l.b16 %v2376
        %v2588 = vunpack.c.l.b16 %v2377
        %v2589 = vunpack.c.l.b16 %v2378
        %v2590 = vunpack.c.l.b16 %v2379
        %v2591 = vunpack.c.l.b16 %v2380
        %v2592 = vpack.c.b16 %v2577, %v2576
        %v2593 = vpack.c.b16 %v2579, %v2578
        %v2594 = vpack.c.b16 %v2581, %v2580
        %v2595 = vpack.c.b16 %v2583, %v2582
        %v2596 = vpack.c.b16 %v2585, %v2584
        %v2597 = vpack.c.b16 %v2587, %v2586
        %v2598 = vpack.c.b16 %v2589, %v2588
        %v2599 = vpack.c.b16 %v2591, %v2590
        %2608 = vmatpush.bf16.msra.mxu0 %v2599
        %2609 = vmatpush.bf16.msra.mxu0 %v2598
        %2610 = vmatpush.bf16.msra.mxu0 %v2597
        %2611 = vmatpush.bf16.msra.mxu0 %v2596
        %2612 = vmatpush.bf16.msra.mxu0 %v2595
        %2613 = vmatpush.bf16.msra.mxu0 %v2594
        %2614 = vmatpush.bf16.msra.mxu0 %v2593
        %2615 = vmatpush.bf16.msra.mxu0 %v2592
        %2616 = vmatmul.bf16.gmra.mxu0 %v2559
        %v2617 = vpop.f32.mrf.mxu0
        %v2618 = vadd.f32 0.0, %v2617
        %v2619 = vpop.f32.mrf.mxu0
        %v2620 = vadd.f32 0.0, %v2619
        %2621 = vdwg.mxu0
        %2624 = vrot.lane.b32.xlu0 %v2618, 16
        %v2625 = vpop.permute.xlu0 %2624
        %2626 = vrot.lane.b32.xlu0 %v2620, 16
        %v2627 = vpop.permute.xlu0 %2626
        %vm2630 = vcmask 195712
        %2631 = vst.msk [vmem:[#allocation5] sm:$0xff] %vm2630, %v2625
        %2632 = vst.msk [vmem:[#allocation5 + $0x8] sm:$0xff] %vm2630, %v2627
        %v2633 = vld [vmem:[#allocation4] sm:$0xff]
        %v2634 = vld [vmem:[#allocation4 + $0x8] sm:$0xff]
        %v2635 = vpack.c.bf16 %v2634, %v2633
        %s2636 = scalar_lea.vmem [#allocation2], 192
        %v2637 = vld [vmem:[%s2636] sm:$0xf]
        %v2638 = vld [vmem:[%s2636 + $0x4] sm:$0xf]
        %v2639 = vld [vmem:[%s2636 + $0x8] sm:$0xf]
        %v2640 = vld [vmem:[%s2636 + $0xc] sm:$0xf]
        %v2641 = vld [vmem:[%s2636 + $0x10] sm:$0xf]
        %v2642 = vld [vmem:[%s2636 + $0x14] sm:$0xf]
        %v2643 = vld [vmem:[%s2636 + $0x18] sm:$0xf]
        %v2644 = vld [vmem:[%s2636 + $0x1c] sm:$0xf]
        %v2645 = vld [vmem:[%s2636 + $0x20] sm:$0xf]
        %v2646 = vld [vmem:[%s2636 + $0x24] sm:$0xf]
        %v2647 = vld [vmem:[%s2636 + $0x28] sm:$0xf]
        %v2648 = vld [vmem:[%s2636 + $0x2c] sm:$0xf]
        %v2649 = vld [vmem:[%s2636 + $0x30] sm:$0xf]
        %v2650 = vld [vmem:[%s2636 + $0x34] sm:$0xf]
        %v2651 = vld [vmem:[%s2636 + $0x38] sm:$0xf]
        %v2652 = vld [vmem:[%s2636 + $0x3c] sm:$0xf]
        %s2653 = scalar_lea.vmem [#allocation3], 192
        %v2654 = vld [vmem:[%s2653] sm:$0xf]
        %v2655 = vld [vmem:[%s2653 + $0x4] sm:$0xf]
        %v2656 = vld [vmem:[%s2653 + $0x8] sm:$0xf]
        %v2657 = vld [vmem:[%s2653 + $0xc] sm:$0xf]
        %v2658 = vld [vmem:[%s2653 + $0x10] sm:$0xf]
        %v2659 = vld [vmem:[%s2653 + $0x14] sm:$0xf]
        %v2660 = vld [vmem:[%s2653 + $0x18] sm:$0xf]
        %v2661 = vld [vmem:[%s2653 + $0x1c] sm:$0xf]
        %v2662 = vld [vmem:[%s2653 + $0x20] sm:$0xf]
        %v2663 = vld [vmem:[%s2653 + $0x24] sm:$0xf]
        %v2664 = vld [vmem:[%s2653 + $0x28] sm:$0xf]
        %v2665 = vld [vmem:[%s2653 + $0x2c] sm:$0xf]
        %v2666 = vld [vmem:[%s2653 + $0x30] sm:$0xf]
        %v2667 = vld [vmem:[%s2653 + $0x34] sm:$0xf]
        %v2668 = vld [vmem:[%s2653 + $0x38] sm:$0xf]
        %v2669 = vld [vmem:[%s2653 + $0x3c] sm:$0xf]
        %2671 = vrot.lane.b32.xlu0 %v2635, 104
        %v2672 = vpop.permute.xlu0 %2671
        %v2689 = vunpack.c.l.b16 %v2637
        %v2690 = vunpack.c.l.b16 %v2638
        %v2691 = vunpack.c.l.b16 %v2639
        %v2692 = vunpack.c.l.b16 %v2640
        %v2693 = vunpack.c.l.b16 %v2641
        %v2694 = vunpack.c.l.b16 %v2642
        %v2695 = vunpack.c.l.b16 %v2643
        %v2696 = vunpack.c.l.b16 %v2644
        %v2697 = vunpack.c.l.b16 %v2645
        %v2698 = vunpack.c.l.b16 %v2646
        %v2699 = vunpack.c.l.b16 %v2647
        %v2700 = vunpack.c.l.b16 %v2648
        %v2701 = vunpack.c.l.b16 %v2649
        %v2702 = vunpack.c.l.b16 %v2650
        %v2703 = vunpack.c.l.b16 %v2651
        %v2704 = vunpack.c.l.b16 %v2652
        %v2705 = vpack.c.b16 %v2690, %v2689
        %v2706 = vpack.c.b16 %v2692, %v2691
        %v2707 = vpack.c.b16 %v2694, %v2693
        %v2708 = vpack.c.b16 %v2696, %v2695
        %v2709 = vpack.c.b16 %v2698, %v2697
        %v2710 = vpack.c.b16 %v2700, %v2699
        %v2711 = vpack.c.b16 %v2702, %v2701
        %v2712 = vpack.c.b16 %v2704, %v2703
        %v2714 = vsel %vm1856, %v2672, 0
        %v2717 = vsel %vm1856, %v2705, 0
        %v2720 = vsel %vm1856, %v2706, 0
        %v2723 = vsel %vm1856, %v2707, 0
        %v2726 = vsel %vm1856, %v2708, 0
        %v2729 = vsel %vm1856, %v2709, 0
        %v2732 = vsel %vm1856, %v2710, 0
        %v2735 = vsel %vm1856, %v2711, 0
        %v2738 = vsel %vm1856, %v2712, 0
        %2740 = vmatpush.bf16.xpose.msra.mxu0 %v2738
        %2741 = vmatpush.bf16.xpose.msra.mxu0 %v2735
        %2742 = vmatpush.bf16.xpose.msra.mxu0 %v2732
        %2743 = vmatpush.bf16.xpose.msra.mxu0 %v2729
        %2744 = vmatpush.bf16.xpose.msra.mxu0 %v2726
        %2745 = vmatpush.bf16.xpose.msra.mxu0 %v2723
        %2746 = vmatpush.bf16.xpose.msra.mxu0 %v2720
        %2747 = vmatpush.bf16.xpose.msra.mxu0 %v2717
        %2748 = vmatmul.bf16.gmra.mxu0 %v2714
        %v2749 = vpop.f32.mrf.mxu0
        %v2750 = vadd.f32 0.0, %v2749
        %v2751 = vpop.f32.mrf.mxu0
        %v2752 = vadd.f32 0.0, %v2751
        %2753 = vdwg.mxu0
        %v2754 = vmul.f32 %v2750, 0.35355338
        %v2755 = vmul.f32 %v2752, 0.35355338
        %v2756 = vsel %vm1780, -1e+30, %v2754
        %v2757 = vsel %vm1780, -1e+30, %v2755
        %2758 = vmax.xlane.f32.xlu0 %v2756
        %v2759 = vpop.xlane.xlu0 %2758
        %2760 = vmax.xlane.f32.xlu0 %v2757
        %v2761 = vpop.xlane.xlu0 %2760
        %v2762 = vsub.f32 %v2756, %v2759
        %v2763 = vsub.f32 %v2757, %v2761
        %v2764 = vmul.f32 %v2762, 1.442695
        %v2765 = vpow.pop %v2764
        %v2766 = vmul.f32 %v2763, 1.442695
        %v2767 = vpow.pop %v2766
        %2768 = vadd.xlane.f32.xlu0 %v2765
        %v2769 = vpop.xlane.xlu0 %2768
        %2770 = vadd.xlane.f32.xlu0 %v2767
        %v2771 = vpop.xlane.xlu0 %2770
        %v2772 = vrcp.pop %v2769
        %v2773 = vrcp.pop %v2771
        %v2774 = vmul.f32 %v2765, %v2772
        %v2775 = vmul.f32 %v2767, %v2773
        %s2776 = scalar_lea.vmem %s586, 48 [#allocation8]
        %2777 = vst [vmem:[%s2776] sm:$0xff] %v2774
        %2778 = vst [vmem:[%s2776 + $0x8] sm:$0xff] %v2775
        %v2779 = vld [vmem:[%s636] sm:$0xff]
        %v2780 = vld [vmem:[%s636 + $0x8] sm:$0xff]
        %v2781 = vrcp.pop %v2779
        %v2782 = vmul.f32 %v2779, %v2781
        %v2783 = vsub.f32 1.0, %v2782
        %v2784 = vmul.f32 %v2781, %v2783
        %v2785 = vadd.f32 %v2781, %v2784
        %vm2786 = vweird.f32 %v2779
        %vm2787 = vweird.f32 %v2781
        %vm2788 = vmor %vm2786, %vm2787
        %v2789 = vsel %vm2788, %v2781, %v2785
        %v2790 = vand.u32 2147483647, %v2779
        %vm2791 = vcmp.eq.f32.partialorder %v2790, 8.507059e+37
        %v2792 = vand.u32 %v2779, 2147483648
        %v2793 = vor.u32 1.1754944e-38, %v2792
        %v2794 = vsel %vm2791, %v2793, %v2789
        %v2795 = vmul.f32 1.0, %v2794
        %v2796 = vrcp.pop %v2780
        %v2797 = vmul.f32 %v2780, %v2796
        %v2798 = vsub.f32 1.0, %v2797
        %v2799 = vmul.f32 %v2796, %v2798
        %v2800 = vadd.f32 %v2796, %v2799
        %vm2801 = vweird.f32 %v2780
        %vm2802 = vweird.f32 %v2796
        %vm2803 = vmor %vm2801, %vm2802
        %v2804 = vsel %vm2803, %v2796, %v2800
        %v2805 = vand.u32 2147483647, %v2780
        %vm2806 = vcmp.eq.f32.partialorder %v2805, 8.507059e+37
        %v2807 = vand.u32 %v2780, 2147483648
        %v2808 = vor.u32 1.1754944e-38, %v2807
        %v2809 = vsel %vm2806, %v2808, %v2804
        %v2810 = vmul.f32 1.0, %v2809
        %v2811 = vmul.f32 %v2795, 0.3989423
        %v2812 = vmul.f32 %v2810, 0.3989423
        %v2813 = vmul.f32 %v2795, -0.5
        %v2814 = vmul.f32 %v2810, -0.5
        %v2815 = vmul.f32 %v2813, %v2795
        %v2816 = vmul.f32 %v2814, %v2810
        %2818 = vset.pattern.permute.xlu0 3
        %2819 = vperm.xlu0 %2818, %v2815
        %v2820 = vpop.permute.xlu0 %2819
        %2823 = vset.pattern.permute.xlu0 3
        %2824 = vperm.xlu0 %2823, %v2816
        %v2825 = vpop.permute.xlu0 %2824
        %v2827 = vmul.f32 %v1778, %v2820
        %v2828 = vmul.f32 %v1779, %v2825
        %v2829 = vmul.f32 %v2827, 1.442695
        %v2830 = vpow.pop %v2829
        %v2831 = vmul.f32 %v2828, 1.442695
        %v2832 = vpow.pop %v2831
        %2834 = vset.pattern.permute.xlu0 3
        %2835 = vperm.xlu0 %2834, %v2811
        %v2836 = vpop.permute.xlu0 %2835
        %2839 = vset.pattern.permute.xlu0 3
        %2840 = vperm.xlu0 %2839, %v2812
        %v2841 = vpop.permute.xlu0 %2840
        %v2843 = vmul.f32 %v2836, %v2830
        %v2844 = vmul.f32 %v2841, %v2832
        %s2845 = scalar_lea.vmem %s593, 48 [#allocation10]
        %2846 = vst [vmem:[%s2845] sm:$0xff] %v2843
        %2847 = vst [vmem:[%s2845 + $0x8] sm:$0xff] %v2844
        %v2848 = vpack.c.bf16 %v2775, %v2774
        %v2865 = vunpack.c.l.b16 %v2654
        %v2866 = vunpack.c.l.b16 %v2655
        %v2867 = vunpack.c.l.b16 %v2656
        %v2868 = vunpack.c.l.b16 %v2657
        %v2869 = vunpack.c.l.b16 %v2658
        %v2870 = vunpack.c.l.b16 %v2659
        %v2871 = vunpack.c.l.b16 %v2660
        %v2872 = vunpack.c.l.b16 %v2661
        %v2873 = vunpack.c.l.b16 %v2662
        %v2874 = vunpack.c.l.b16 %v2663
        %v2875 = vunpack.c.l.b16 %v2664
        %v2876 = vunpack.c.l.b16 %v2665
        %v2877 = vunpack.c.l.b16 %v2666
        %v2878 = vunpack.c.l.b16 %v2667
        %v2879 = vunpack.c.l.b16 %v2668
        %v2880 = vunpack.c.l.b16 %v2669
        %v2881 = vpack.c.b16 %v2866, %v2865
        %v2882 = vpack.c.b16 %v2868, %v2867
        %v2883 = vpack.c.b16 %v2870, %v2869
        %v2884 = vpack.c.b16 %v2872, %v2871
        %v2885 = vpack.c.b16 %v2874, %v2873
        %v2886 = vpack.c.b16 %v2876, %v2875
        %v2887 = vpack.c.b16 %v2878, %v2877
        %v2888 = vpack.c.b16 %v2880, %v2879
        %2897 = vmatpush.bf16.msra.mxu0 %v2888
        %2898 = vmatpush.bf16.msra.mxu0 %v2887
        %2899 = vmatpush.bf16.msra.mxu0 %v2886
        %2900 = vmatpush.bf16.msra.mxu0 %v2885
        %2901 = vmatpush.bf16.msra.mxu0 %v2884
        %2902 = vmatpush.bf16.msra.mxu0 %v2883
        %2903 = vmatpush.bf16.msra.mxu0 %v2882
        %2904 = vmatpush.bf16.msra.mxu0 %v2881
        %2905 = vmatmul.bf16.gmra.mxu0 %v2848
        %v2906 = vpop.f32.mrf.mxu0
        %v2907 = vadd.f32 0.0, %v2906
        %v2908 = vpop.f32.mrf.mxu0
        %v2909 = vadd.f32 0.0, %v2908
        %2910 = vdwg.mxu0
        %2913 = vrot.lane.b32.xlu0 %v2907, 24
        %v2914 = vpop.permute.xlu0 %2913
        %2915 = vrot.lane.b32.xlu0 %v2909, 24
        %v2916 = vpop.permute.xlu0 %2915
        %vm2919 = vcmask 261312
        %2920 = vst.msk [vmem:[#allocation5] sm:$0xff] %vm2919, %v2914
        %2921 = vst.msk [vmem:[#allocation5 + $0x8] sm:$0xff] %vm2919, %v2916
        %v2922 = vld [vmem:[#allocation5] sm:$0xff]
        %v2923 = vld [vmem:[#allocation5 + $0x8] sm:$0xff]
        %v2924 = vpack.c.bf16 %v2923, %v2922
        %v2925 = vld [vmem:[%s11] sm:$0xf]
        %v2926 = vld [vmem:[%s11 + $0x4] sm:$0xf]
        %v2927 = vld [vmem:[%s11 + $0x8] sm:$0xf]
        %v2928 = vld [vmem:[%s11 + $0xc] sm:$0xf]
        %v2929 = vld [vmem:[%s12] sm:$0x1]
        %v2931 = vperm.slane %v2929, 0
        %v2937 = vunpack.c.l.b16 %v2925
        %v2938 = vunpack.c.l.b16 %v2926
        %v2939 = vunpack.c.l.b16 %v2927
        %v2940 = vunpack.c.l.b16 %v2928
        %v2941 = vpack.c.b16 %v2938, %v2937
        %v2942 = vpack.c.b16 %v2940, %v2939
        %v2946 = vsel %vm1658, %v2924, 0
        %2948 = vmatpush.bf16.msra.mxu0 0
        %2949 = vmatpush.bf16.msra.mxu0 0
        %2950 = vmatpush.bf16.msra.mxu0 0
        %2951 = vmatpush.bf16.msra.mxu0 0
        %2952 = vmatpush.bf16.msra.mxu0 0
        %2953 = vmatpush.bf16.msra.mxu0 0
        %2954 = vmatpush.bf16.msra.mxu0 %v2942
        %2955 = vmatpush.bf16.msra.mxu0 %v2941
        %2956 = vmatmul.bf16.gmra.mxu0 %v2946
        %v2957 = vpop.f32.mrf.mxu0
        %v2958 = vadd.f32 %v2931, %v2957
        %v2959 = vpop.f32.mrf.mxu0
        %v2960 = vadd.f32 %v2931, %v2959
        %2961 = vdwg.mxu0
        %2962 = vst.msk [vmem:[%s579] sm:$0xff] %vm1658, %v2958
        %2963 = vst.msk [vmem:[%s579 + $0x8] sm:$0xff] %vm1658, %v2960
        %s2964 = sand.u32 %s346, 1
        %s2965 = scalar_lea.sflag [#allocation7], %s2964
        %s2966 = sand.u32 %s346, 1
        %s2967 = smul.addr %s2966, 16
        %s2968 = scalar_lea.vmem [#allocation6], %s2967
        %s2969 = sand.u32 %s34, 1
        %s2970 = scalar_lea.sflag [#allocation9], %s2969
        %s2971 = sand.u32 %s374, 1
        %s2972 = smul.addr %s2971, 64
        %s2973 = scalar_lea.vmem [#allocation8], %s2972
        %s2974 = sand.u32 %s34, 1
        %s2975 = scalar_lea.sflag [#allocation9], %s2974
        %s2976 = sand.u32 %s402, 1
        %s2977 = smul.addr %s2976, 64
        %s2978 = scalar_lea.vmem [#allocation10], %s2977
        %s2979 = smul.u32 2, %s39
        %p2980 = scmp.lt.s32.totalorder %s38, 1
        %s2981 = scalar_select %p2980, %s38, 1
        %p2982 = scmp.lt.s32.totalorder %s2979, 1
        %s2983 = scalar_select %p2982, %s2979, 1
        %s2984 = smul.addr %s2981, 2
        %s2985 = sadd.s32 %s2983, %s2984
        %s2986 = smul.addr %s2985, 8
        %s2987 = scalar_lea.vmem %s16, %s2986
        // Predicated region
        $region77: #{tpu_custom_call.1} parent=71 // pred_check
          %p2988 = pneg %p356
        $region78: #{tpu_custom_call.1} parent=71 // pred_check_branch
          %2990 = sbr.rel (%p2988) target = $region80
        $region79: #{tpu_custom_call.1} parent=71 // pred_region
          %s2991 = smul.u32 2, %s39
          %2993 = vsyncadd %s2965, 0
          %s2994 = smul.addr %s38, 2
          %s2995 = sadd.s32 %s2991, %s2994
          %s2996 = smul.addr %s2995, 8
          %s2997 = scalar_lea.hbm %s13, %s2996
          %s2998 = sshll.u32 %s2968, 4
          %s2999 = int_to_ptr.vmem [resolvable:$true] %s2998
          %s3000 = sshll.u32 %s2997, 4
          %s3001 = int_to_ptr.hbm [resolvable:$true] %s3000
          %3006 = dma.vmem_to_hbm [thread:$0]  %s2999, 256, %s3001, %s2965, 128, 128, 8
        $region80: #{tpu_custom_call.1} parent=71 // pred_fallthru
          _
        // Predicated region
        $region81: #{tpu_custom_call.1} parent=71 // pred_check
          %p3007 = pneg %p384
        $region82: #{tpu_custom_call.1} parent=71 // pred_check_branch
          %3009 = sbr.rel (%p3007) target = $region84
        $region83: #{tpu_custom_call.1} parent=71 // pred_region
          %s3010 = smul.u32 2, %s39
          %3012 = vsyncadd %s2970, 0
          %s3013 = smul.addr %s38, 8
          %s3014 = sadd.s32 %s3010, %s3013
          %s3015 = smul.addr %s3014, 8
          %s3016 = scalar_lea.hbm %s14, %s3015
          %s3017 = sshll.u32 %s2973, 4
          %s3018 = int_to_ptr.vmem [resolvable:$true] %s3017
          %s3019 = sshll.u32 %s3016, 4
          %s3020 = int_to_ptr.hbm [resolvable:$true] %s3019
          %3025 = dma.vmem_to_hbm [thread:$0]  %s3018, 1024, %s3020, %s2970, 128, 128, 8
        $region84: #{tpu_custom_call.1} parent=71 // pred_fallthru
          _
        // Predicated region
        $region85: #{tpu_custom_call.1} parent=71 // pred_check
          %p3026 = pneg %p412
        $region86: #{tpu_custom_call.1} parent=71 // pred_check_branch
          %3028 = sbr.rel (%p3026) target = $region88
        $region87: #{tpu_custom_call.1} parent=71 // pred_region
          %s3029 = smul.u32 2, %s39
          %3031 = vsyncadd %s2975, 0
          %s3032 = smul.addr %s38, 8
          %s3033 = sadd.s32 %s3029, %s3032
          %s3034 = smul.addr %s3033, 8
          %s3035 = scalar_lea.hbm %s15, %s3034
          %s3036 = sshll.u32 %s2978, 4
          %s3037 = int_to_ptr.vmem [resolvable:$true] %s3036
          %s3038 = sshll.u32 %s3035, 4
          %s3039 = int_to_ptr.hbm [resolvable:$true] %s3038
          %3044 = dma.vmem_to_hbm [thread:$0]  %s3037, 1024, %s3039, %s2975, 128, 128, 8
        $region88: #{tpu_custom_call.1} parent=71 // pred_fallthru
          _
        // Predicated region
        $region89: #{tpu_custom_call.1} parent=71 // pred_check
          %p3045 = pneg %p440
        $region90: #{tpu_custom_call.1} parent=71 // pred_check_branch
          %3047 = sbr.rel (%p3045) target = $region92
        $region91: #{tpu_custom_call.1} parent=71 // pred_region
          %s3048 = smul.u32 2, %s39
        $region92: #{tpu_custom_call.1} parent=71 // pred_fallthru
          _
      $region72: #{tpu_custom_call.1} parent=5 // pred_fallthru
        _
      %p3049 = scmp.le.s32.totalorder 2, %s29
      // Predicated region
      $region93: #{tpu_custom_call.1} parent=5 // pred_check
        %p3050 = pneg %p3049
      $region94: #{tpu_custom_call.1} parent=5 // pred_check_branch
        %3052 = sbr.rel (%p3050) target = $region96
      $region95: #{tpu_custom_call.1} parent=5 // pred_region
        %s3053 = ssub.s32 %s29, 2
        // Predicated region
        $region97: #{tpu_custom_call.1} parent=95 // pred_check
          %p3054 = pneg %p362
        $region98: #{tpu_custom_call.1} parent=95 // pred_check_branch
          %3056 = sbr.rel (%p3054) target = $region100
        $region99: #{tpu_custom_call.1} parent=95 // pred_region
          %s3057 = sand.u32 %s347, 1
          %s3058 = scalar_lea.sflag [#allocation7], %s3057
          %s3059 = sand.u32 %s347, 1
          %s3060 = smul.addr %s3059, 16
          %s3061 = scalar_lea.vmem [#allocation6], %s3060
          %3063 = dma.done %s3058, 256
        $region100: #{tpu_custom_call.1} parent=95 // pred_fallthru
          _
        // Predicated region
        $region101: #{tpu_custom_call.1} parent=95 // pred_check
          %p3064 = pneg %p390
        $region102: #{tpu_custom_call.1} parent=95 // pred_check_branch
          %3066 = sbr.rel (%p3064) target = $region104
        $region103: #{tpu_custom_call.1} parent=95 // pred_region
          %s3067 = sand.u32 %s35, 1
          %s3068 = scalar_lea.sflag [#allocation9], %s3067
          %s3069 = sand.u32 %s375, 1
          %s3070 = smul.addr %s3069, 64
          %s3071 = scalar_lea.vmem [#allocation8], %s3070
          %3073 = dma.done %s3068, 1024
        $region104: #{tpu_custom_call.1} parent=95 // pred_fallthru
          _
        // Predicated region
        $region105: #{tpu_custom_call.1} parent=95 // pred_check
          %p3074 = pneg %p418
        $region106: #{tpu_custom_call.1} parent=95 // pred_check_branch
          %3076 = sbr.rel (%p3074) target = $region108
        $region107: #{tpu_custom_call.1} parent=95 // pred_region
          %s3077 = sand.u32 %s35, 1
          %s3078 = scalar_lea.sflag [#allocation9], %s3077
          %s3079 = sand.u32 %s403, 1
          %s3080 = smul.addr %s3079, 64
          %s3081 = scalar_lea.vmem [#allocation10], %s3080
          %3083 = dma.done %s3078, 1024
        $region108: #{tpu_custom_call.1} parent=95 // pred_fallthru
          _
        // Predicated region
        $region109: #{tpu_custom_call.1} parent=95 // pred_check
          %p3084 = pneg %p446
        $region110: #{tpu_custom_call.1} parent=95 // pred_check_branch
          %3086 = sbr.rel (%p3084) target = $region112
        $region111: #{tpu_custom_call.1} parent=95 // pred_region
          %s3087 = smul.u32 2, %s41
          %p3088 = scmp.lt.s32.totalorder %s40, 1
          %s3089 = scalar_select %p3088, %s40, 1
          %p3090 = scmp.lt.s32.totalorder %s3087, 1
          %s3091 = scalar_select %p3090, %s3087, 1
          %s3092 = smul.addr %s3089, 2
          %s3093 = sadd.s32 %s3091, %s3092
          %s3094 = smul.addr %s3093, 8
          %s3095 = scalar_lea.vmem %s16, %s3094
        $region112: #{tpu_custom_call.1} parent=95 // pred_fallthru
          _
      $region96: #{tpu_custom_call.1} parent=5 // pred_fallthru
        _
    $region6: #{tpu_custom_call.1} parent=1 // loop_footer
      %s33 = sadd.s32 1, %s29
    $region7: #{tpu_custom_call.1} parent=1 // loop_footer_branch
      %28 = sbr.rel target = $region3
    $region8: #{tpu_custom_call.1} parent=1 // loop_exit
      _
    %3096 = vsyncpa [#allocation7], 1
    %s3097 = scalar_lea.sflag [#allocation7], 1
    %3098 = vsyncpa %s3097, 1
    %3099 = vsyncpa [#allocation9], 1
    %s3100 = scalar_lea.sflag [#allocation9], 1
    %3101 = vsyncpa %s3100, 1

</llo_original>
